<compile_context>
chip_gen: v7x
topology: tpu7x:2x2x1
jax: 0.10.0
libtpu: 0.0.40
codegen_flags: <defaults>
</compile_context>

<pallas_src>
import jax
import jax.numpy as jnp
from jax.experimental import pallas as pl
from jax.experimental.pallas import tpu as pltpu

FC1_DIMS = 1024
FC2_DIMS = 512
LANE = 128
SUBLANE = 8


def _round_up(a, m):
    return (a + m - 1) // m * m


def _cdiv(a, b):
    return (a + b - 1) // b


# ----------------------------------------------------------------------------
# Kernel
# ----------------------------------------------------------------------------
def mlp_kernel(x_ref, w1_ref, b1_ref, w2q_ref, s2_ref, b2_ref,
               w3q_ref, s3_ref, b3_ref, o_ref):
    """Fused y = fc3(relu(fc2(relu(fc1(x))))).

    w1: bf16.  w2/w3: int8 with per-output-column scales s2/s3 (f32).
    int8 is exactly representable in bf16, so the MXU multiplies the raw
    quantized integers and the dequant scale is applied to the f32
    accumulator (cheaper and more accurate than dequantizing the weight tile).
    """
    # fc1 + relu  (bf16 MXU inputs, f32 accumulate; bias added on the f32 acc)
    x = x_ref[...].astype(jnp.bfloat16)
    h1 = jnp.dot(x, w1_ref[...], preferred_element_type=jnp.float32)
    h1 = jnp.maximum(h1 + b1_ref[...], 0.0)

    # fc2 + relu  (int8-as-bf16 weights, scale folded into the accumulator)
    h2 = jnp.dot(h1.astype(jnp.bfloat16), w2q_ref[...].astype(jnp.bfloat16),
                 preferred_element_type=jnp.float32)
    h2 = jnp.maximum(h2 * s2_ref[...] + b2_ref[...], 0.0)

    # fc3 (no activation), lane-padded output
    out = jnp.dot(h2.astype(jnp.bfloat16), w3q_ref[...].astype(jnp.bfloat16),
                  preferred_element_type=jnp.float32)
    o_ref[...] = (out * s3_ref[...] + b3_ref[...]).astype(o_ref.dtype)


# ----------------------------------------------------------------------------
# Parameter preparation (one-time, reuse across calls)
# ----------------------------------------------------------------------------
def _quantize_int8_cols(w):
    """Symmetric per-output-column absmax int8 quantization."""
    absmax = jnp.max(jnp.abs(w), axis=0, keepdims=True)          # (1, fan_out)
    scale = jnp.maximum(absmax, 1e-8) / 127.0
    q = jnp.clip(jnp.round(w / scale), -127.0, 127.0).astype(jnp.int8)
    return q, scale.astype(jnp.float32)


def prepare_params(params):
    """f32 master params -> kernel params.

    fc1 weight cast to bf16; fc2/fc3 weights quantized to int8 with per-column
    scales; fc3 weight/bias zero-padded to a 128-lane output.  Call once.
    """
    w1, b1, w2, b2, w3, b3 = params
    num_actions = w3.shape[1]
    n_pad = _round_up(num_actions, LANE)
    w3p = jnp.zeros((w3.shape[0], n_pad), jnp.float32).at[:, :num_actions].set(w3)
    b3p = jnp.zeros((1, n_pad), jnp.float32).at[:, :num_actions].set(b3)
    w2q, s2 = _quantize_int8_cols(w2)
    w3q, s3 = _quantize_int8_cols(w3p)
    prepped = (w1.astype(jnp.bfloat16), b1.astype(jnp.float32),
               w2q, s2, b2.astype(jnp.float32),
               w3q, s3, b3p.astype(jnp.float32))
    return prepped, num_actions


# ----------------------------------------------------------------------------
# Forward wrapper
# ----------------------------------------------------------------------------
_BUFFERED_STATE = {"ok": True}   # fall back once if Buffered(1) is unsupported


def _choose_batch_tiling(B, tile_b):
    """Adaptive batch tile: avoids padding nearly a full tile of junk rows."""
    b_min = _round_up(B, SUBLANE)
    if b_min <= tile_b:
        return b_min, b_min
    n_tiles = _cdiv(B, tile_b)
    tb = _round_up(_cdiv(B, n_tiles), SUBLANE)
    b_pad = _round_up(B, tb)
    return tb, b_pad


def network_forward(x, prepped, num_actions, *, tile_b=1024):
    """Pallas forward pass. x: (B, in_features) f32 -> (B, num_actions) f32."""
    w1, b1, w2q, s2, b2, w3q, s3, b3 = prepped
    B, K = x.shape
    n_pad = w3q.shape[1]

    tb, b_pad = _choose_batch_tiling(B, tile_b)
    if b_pad != B:
        x = jnp.zeros((b_pad, K), x.dtype).at[:B, :].set(x)
    grid = (b_pad // tb,)

    weights = (w1, b1, w2q, s2, b2, w3q, s3, b3)

    def call(single_buffer_weights):
        def wspec(a):
            # Weights/biases/scales are grid-invariant (block index pinned to
            # 0): single-buffer them so the duplicate buffer's VMEM is freed
            # for a bigger batch tile.
            if single_buffer_weights:
                return pl.BlockSpec(a.shape, lambda i: (0,) * a.ndim,
                                    pipeline_mode=pl.Buffered(1))
            return pl.BlockSpec(a.shape, lambda i: (0,) * a.ndim)

        return pl.pallas_call(
            mlp_kernel,
            out_shape=jax.ShapeDtypeStruct((b_pad, n_pad), jnp.float32),
            grid=grid,
            in_specs=[pl.BlockSpec((tb, K), lambda i: (i, 0))]   # x: batch-tiled
                     + [wspec(a) for a in weights],               # VMEM-resident
            out_specs=pl.BlockSpec((tb, n_pad), lambda i: (i, 0)),  # lane-dense
            compiler_params=pltpu.CompilerParams(
                dimension_semantics=("parallel",),   # megacore split when grid>1
                vmem_limit_bytes=32 << 20,           # fits tb=1024; OK on v7x 64 MiB
            ),
        )(x, *weights)

    if _BUFFERED_STATE["ok"] and hasattr(pl, "Buffered"):
        try:
            out = call(True)
        except Exception:
            _BUFFERED_STATE["ok"] = False
            out = call(False)
    else:
        out = call(False)

    return out[:B, :num_actions]


# ----------------------------------------------------------------------------
# Init + references
# ----------------------------------------------------------------------------
def init_params(key, in_features, num_actions):
    """Mimics nn.Linear's U(-1/sqrt(fan_in), 1/sqrt(fan_in)) init.

    Weights stored transposed to (fan_in, fan_out) so the kernel computes
    x @ W directly (PyTorch stores (fan_out, fan_in))."""
    ks = jax.random.split(key, 6)

    def linear(kw, kb, fan_in, fan_out):
        bound = 1.0 / jnp.sqrt(jnp.float32(fan_in))
        w = jax.random.uniform(kw, (fan_in, fan_out), jnp.float32, -bound, bound)
        b = jax.random.uniform(kb, (1, fan_out), jnp.float32, -bound, bound)
        return w, b

    w1, b1 = linear(ks[0], ks[1], in_features, FC1_DIMS)
    w2, b2 = linear(ks[2], ks[3], FC1_DIMS, FC2_DIMS)
    w3, b3 = linear(ks[4], ks[5], FC2_DIMS, num_actions)
    return (w1, b1, w2, b2, w3, b3)


def reference_forward_f32(x, params):
    w1, b1, w2, b2, w3, b3 = params
    h1 = jnp.maximum(x @ w1 + b1, 0.0)
    h2 = jnp.maximum(h1 @ w2 + b2, 0.0)
    return h2 @ w3 + b3


def reference_forward_kernel_math(x, prepped, num_actions):
    """Plain-JAX mirror of the kernel's dtype / quantization choices."""
    w1, b1, w2q, s2, b2, w3q, s3, b3 = prepped
    bf = jnp.bfloat16
    h1 = jnp.dot(x.astype(bf), w1, preferred_element_type=jnp.float32) + b1
    h1 = jnp.maximum(h1, 0.0)
    h2 = jnp.dot(h1.astype(bf), w2q.astype(bf),
                 preferred_element_type=jnp.float32) * s2 + b2
    h2 = jnp.maximum(h2, 0.0)
    out = jnp.dot(h2.astype(bf), w3q.astype(bf),
                  preferred_element_type=jnp.float32) * s3 + b3
    return out[:, :num_actions]


if __name__ == "__main__":
    key = jax.random.PRNGKey(0)
    k_x, k_p, k_x2 = jax.random.split(key, 3)

    in_features = 16      # inputShape = (16,)
    num_actions = 8

    params = init_params(k_p, in_features, num_actions)
    prepped, n_act = prepare_params(params)   # one-time; reuse across RL steps

    # Small latency-bound batch (single tile, B=8 serving case).
    batch = 8
    x = jax.random.normal(k_x, (batch, in_features), jnp.float32)
    out = jax.block_until_ready(network_forward(x, prepped, n_act))
    assert out.shape == (batch, num_actions)
    assert jnp.allclose(out, reference_forward_kernel_math(x, prepped, n_act),
                        atol=2e-3, rtol=2e-3), "mismatch vs quant-matched reference"
    assert jnp.allclose(out, reference_forward_f32(x, params),
                        atol=5e-2, rtol=5e-2), "mismatch vs f32 reference"

    # Larger batch exercising the multi-tile + remainder-handling path.
    batch2 = 603
    x2 = jax.random.normal(k_x2, (batch2, in_features), jnp.float32)
    out2 = jax.block_until_ready(network_forward(x2, prepped, n_act, tile_b=256))
    assert out2.shape == (batch2, num_actions)
    assert jnp.allclose(out2, reference_forward_kernel_math(x2, prepped, n_act),
                        atol=2e-3, rtol=2e-3), "mismatch vs quant-matched reference (tiled)"
    assert jnp.allclose(out2, reference_forward_f32(x2, params),
                        atol=5e-2, rtol=5e-2), "mismatch vs f32 reference (tiled)"

    # TODO(synk): optimizer (Adam), MSELoss, and .to(device) are training-side
    # state with no forward-pass Pallas equivalent; only forward() is implemented.
    print("KERNEL_OK")
</pallas_src>

<mosaic_0001>
module attributes {stable_mosaic.version = 11 : i64} {
  func.func @mlp_kernel(%arg0: i32, %arg1: memref<8x16xf32, #tpu.memory_space<vmem>>, %arg2: memref<16x1024xbf16, #tpu.memory_space<vmem>>, %arg3: memref<1x1024xf32, #tpu.memory_space<vmem>>, %arg4: memref<1024x512xi8, #tpu.memory_space<vmem>>, %arg5: memref<1x512xf32, #tpu.memory_space<vmem>>, %arg6: memref<1x512xf32, #tpu.memory_space<vmem>>, %arg7: memref<512x128xi8, #tpu.memory_space<vmem>>, %arg8: memref<1x128xf32, #tpu.memory_space<vmem>>, %arg9: memref<1x128xf32, #tpu.memory_space<vmem>>, %arg10: memref<8x128xf32, #tpu.memory_space<vmem>>) attributes {dimension_semantics = [#tpu.dimension_semantics<parallel>], iteration_bounds = array<i64: 1>, scalar_prefetch = 0 : i64, scratch_operands = 0 : i64, tpu.core_type = #tpu.core_type<tc>, window_params = [{transform_indices = @transform_0, window_bounds = array<i64: 8, 16>}, {pipeline_mode = #tpu.pipeline_mode<synchronous>, transform_indices = @transform_1, window_bounds = array<i64: 16, 1024>}, {pipeline_mode = #tpu.pipeline_mode<synchronous>, transform_indices = @transform_2, window_bounds = array<i64: 1, 1024>}, {pipeline_mode = #tpu.pipeline_mode<synchronous>, transform_indices = @transform_3, window_bounds = array<i64: 1024, 512>}, {pipeline_mode = #tpu.pipeline_mode<synchronous>, transform_indices = @transform_4, window_bounds = array<i64: 1, 512>}, {pipeline_mode = #tpu.pipeline_mode<synchronous>, transform_indices = @transform_5, window_bounds = array<i64: 1, 512>}, {pipeline_mode = #tpu.pipeline_mode<synchronous>, transform_indices = @transform_6, window_bounds = array<i64: 512, 128>}, {pipeline_mode = #tpu.pipeline_mode<synchronous>, transform_indices = @transform_7, window_bounds = array<i64: 1, 128>}, {pipeline_mode = #tpu.pipeline_mode<synchronous>, transform_indices = @transform_8, window_bounds = array<i64: 1, 128>}, {transform_indices = @transform_9, window_bounds = array<i64: 8, 128>}]} {
    %c0 = arith.constant 0 : index
    %c0_0 = arith.constant 0 : index
    %0 = vector.load %arg1[%c0, %c0_0] : memref<8x16xf32, #tpu.memory_space<vmem>>, vector<8x16xf32>
    %1 = arith.truncf %0 : vector<8x16xf32> to vector<8x16xbf16>
    %c0_1 = arith.constant 0 : index
    %c0_2 = arith.constant 0 : index
    %2 = vector.load %arg2[%c0_1, %c0_2] : memref<16x1024xbf16, #tpu.memory_space<vmem>>, vector<16x1024xbf16>
    %cst = arith.constant dense<0.000000e+00> : vector<8x1024xf32>
    %3 = tpu.matmul %1, %2, %cst {dimension_numbers = #tpu.dot_dimension_numbers<[1], [0], [0], [1], [0, 0, 1, 1], [], []>} : vector<8x16xbf16>, vector<16x1024xbf16>, vector<8x1024xf32> -> vector<8x1024xf32>
    %c0_3 = arith.constant 0 : index
    %c0_4 = arith.constant 0 : index
    %4 = vector.load %arg3[%c0_3, %c0_4] : memref<1x1024xf32, #tpu.memory_space<vmem>>, vector<1x1024xf32>
    %5 = vector.broadcast %4 : vector<1x1024xf32> to vector<8x1024xf32>
    %6 = arith.addf %3, %5 : vector<8x1024xf32>
    %cst_5 = arith.constant 0.000000e+00 : f32
    %7 = vector.broadcast %cst_5 : f32 to vector<8x1024xf32>
    %8 = arith.maximumf %6, %7 : vector<8x1024xf32>
    %9 = arith.truncf %8 : vector<8x1024xf32> to vector<8x1024xbf16>
    %c0_6 = arith.constant 0 : index
    %c0_7 = arith.constant 0 : index
    %10 = vector.load %arg4[%c0_6, %c0_7] : memref<1024x512xi8, #tpu.memory_space<vmem>>, vector<1024x512xi8>
    %11 = arith.sitofp %10 : vector<1024x512xi8> to vector<1024x512xbf16>
    %cst_8 = arith.constant dense<0.000000e+00> : vector<8x512xf32>
    %12 = tpu.matmul %9, %11, %cst_8 {dimension_numbers = #tpu.dot_dimension_numbers<[1], [0], [0], [1], [0, 0, 1, 1], [], []>} : vector<8x1024xbf16>, vector<1024x512xbf16>, vector<8x512xf32> -> vector<8x512xf32>
    %c0_9 = arith.constant 0 : index
    %c0_10 = arith.constant 0 : index
    %13 = vector.load %arg5[%c0_9, %c0_10] : memref<1x512xf32, #tpu.memory_space<vmem>>, vector<1x512xf32>
    %14 = vector.broadcast %13 : vector<1x512xf32> to vector<8x512xf32>
    %15 = arith.mulf %12, %14 : vector<8x512xf32>
    %c0_11 = arith.constant 0 : index
    %c0_12 = arith.constant 0 : index
    %16 = vector.load %arg6[%c0_11, %c0_12] : memref<1x512xf32, #tpu.memory_space<vmem>>, vector<1x512xf32>
    %17 = vector.broadcast %16 : vector<1x512xf32> to vector<8x512xf32>
    %18 = arith.addf %15, %17 : vector<8x512xf32>
    %cst_13 = arith.constant 0.000000e+00 : f32
    %19 = vector.broadcast %cst_13 : f32 to vector<8x512xf32>
    %20 = arith.maximumf %18, %19 : vector<8x512xf32>
    %21 = arith.truncf %20 : vector<8x512xf32> to vector<8x512xbf16>
    %c0_14 = arith.constant 0 : index
    %c0_15 = arith.constant 0 : index
    %22 = vector.load %arg7[%c0_14, %c0_15] : memref<512x128xi8, #tpu.memory_space<vmem>>, vector<512x128xi8>
    %23 = arith.sitofp %22 : vector<512x128xi8> to vector<512x128xbf16>
    %cst_16 = arith.constant dense<0.000000e+00> : vector<8x128xf32>
    %24 = tpu.matmul %21, %23, %cst_16 {dimension_numbers = #tpu.dot_dimension_numbers<[1], [0], [0], [1], [0, 0, 1, 1], [], []>} : vector<8x512xbf16>, vector<512x128xbf16>, vector<8x128xf32> -> vector<8x128xf32>
    %c0_17 = arith.constant 0 : index
    %c0_18 = arith.constant 0 : index
    %25 = vector.load %arg8[%c0_17, %c0_18] : memref<1x128xf32, #tpu.memory_space<vmem>>, vector<1x128xf32>
    %26 = vector.broadcast %25 : vector<1x128xf32> to vector<8x128xf32>
    %27 = arith.mulf %24, %26 : vector<8x128xf32>
    %c0_19 = arith.constant 0 : index
    %c0_20 = arith.constant 0 : index
    %28 = vector.load %arg9[%c0_19, %c0_20] : memref<1x128xf32, #tpu.memory_space<vmem>>, vector<1x128xf32>
    %29 = vector.broadcast %28 : vector<1x128xf32> to vector<8x128xf32>
    %30 = arith.addf %27, %29 : vector<8x128xf32>
    %c0_21 = arith.constant 0 : index
    %c0_22 = arith.constant 0 : index
    %31 = vector.load %arg10[%c0_21, %c0_22] : memref<8x128xf32, #tpu.memory_space<vmem>>, vector<8x128xf32>
    tpu.vector_store %arg10[%c0_21, %c0_22], %30 {strides = array<i32>} : memref<8x128xf32, #tpu.memory_space<vmem>>, vector<8x128xf32>,
    return
  }
  func.func @transform_0(%arg0: i32) -> (i32, i32) {
    %c0_i32 = arith.constant 0 : i32
    %c0_i32_0 = arith.constant 0 : i32
    return %arg0, %c0_i32 : i32, i32
  }
  func.func @transform_1(%arg0: i32) -> (i32, i32) {
    %c0_i32 = arith.constant 0 : i32
    %c0_i32_0 = arith.constant 0 : i32
    %c0_i32_1 = arith.constant 0 : i32
    return %c0_i32, %c0_i32_0 : i32, i32
  }
  func.func @transform_2(%arg0: i32) -> (i32, i32) {
    %c0_i32 = arith.constant 0 : i32
    %c0_i32_0 = arith.constant 0 : i32
    %c0_i32_1 = arith.constant 0 : i32
    return %c0_i32, %c0_i32_0 : i32, i32
  }
  func.func @transform_3(%arg0: i32) -> (i32, i32) {
    %c0_i32 = arith.constant 0 : i32
    %c0_i32_0 = arith.constant 0 : i32
    %c0_i32_1 = arith.constant 0 : i32
    return %c0_i32, %c0_i32_0 : i32, i32
  }
  func.func @transform_4(%arg0: i32) -> (i32, i32) {
    %c0_i32 = arith.constant 0 : i32
    %c0_i32_0 = arith.constant 0 : i32
    %c0_i32_1 = arith.constant 0 : i32
    return %c0_i32, %c0_i32_0 : i32, i32
  }
  func.func @transform_5(%arg0: i32) -> (i32, i32) {
    %c0_i32 = arith.constant 0 : i32
    %c0_i32_0 = arith.constant 0 : i32
    %c0_i32_1 = arith.constant 0 : i32
    return %c0_i32, %c0_i32_0 : i32, i32
  }
  func.func @transform_6(%arg0: i32) -> (i32, i32) {
    %c0_i32 = arith.constant 0 : i32
    %c0_i32_0 = arith.constant 0 : i32
    %c0_i32_1 = arith.constant 0 : i32
    return %c0_i32, %c0_i32_0 : i32, i32
  }
  func.func @transform_7(%arg0: i32) -> (i32, i32) {
    %c0_i32 = arith.constant 0 : i32
    %c0_i32_0 = arith.constant 0 : i32
    %c0_i32_1 = arith.constant 0 : i32
    return %c0_i32, %c0_i32_0 : i32, i32
  }
  func.func @transform_8(%arg0: i32) -> (i32, i32) {
    %c0_i32 = arith.constant 0 : i32
    %c0_i32_0 = arith.constant 0 : i32
    %c0_i32_1 = arith.constant 0 : i32
    return %c0_i32, %c0_i32_0 : i32, i32
  }
  func.func @transform_9(%arg0: i32) -> (i32, i32) {
    %c0_i32 = arith.constant 0 : i32
    %c0_i32_0 = arith.constant 0 : i32
    return %arg0, %c0_i32 : i32, i32
  }
}

module attributes {stable_mosaic.version = 11 : i64} {
  func.func @mlp_kernel(%arg0: i32, %arg1: memref<8x16xf32, #tpu.memory_space<vmem>>, %arg2: memref<16x1024xbf16, #tpu.memory_space<vmem>>, %arg3: memref<1x1024xf32, #tpu.memory_space<vmem>>, %arg4: memref<1024x512xi8, #tpu.memory_space<vmem>>, %arg5: memref<1x512xf32, #tpu.memory_space<vmem>>, %arg6: memref<1x512xf32, #tpu.memory_space<vmem>>, %arg7: memref<512x128xi8, #tpu.memory_space<vmem>>, %arg8: memref<1x128xf32, #tpu.memory_space<vmem>>, %arg9: memref<1x128xf32, #tpu.memory_space<vmem>>, %arg10: memref<8x128xf32, #tpu.memory_space<vmem>>) attributes {dimension_semantics = [#tpu.dimension_semantics<parallel>], iteration_bounds = array<i64: 1>, scalar_prefetch = 0 : i64, scratch_operands = 0 : i64, tpu.core_type = #tpu.core_type<tc>, window_params = [{transform_indices = @transform_0, window_bounds = array<i64: 8, 16>}, {pipeline_mode = #tpu.pipeline_mode<synchronous>, transform_indices = @transform_1, window_bounds = array<i64: 16, 1024>}, {pipeline_mode = #tpu.pipeline_mode<synchronous>, transform_indices = @transform_2, window_bounds = array<i64: 1, 1024>}, {pipeline_mode = #tpu.pipeline_mode<synchronous>, transform_indices = @transform_3, window_bounds = array<i64: 1024, 512>}, {pipeline_mode = #tpu.pipeline_mode<synchronous>, transform_indices = @transform_4, window_bounds = array<i64: 1, 512>}, {pipeline_mode = #tpu.pipeline_mode<synchronous>, transform_indices = @transform_5, window_bounds = array<i64: 1, 512>}, {pipeline_mode = #tpu.pipeline_mode<synchronous>, transform_indices = @transform_6, window_bounds = array<i64: 512, 128>}, {pipeline_mode = #tpu.pipeline_mode<synchronous>, transform_indices = @transform_7, window_bounds = array<i64: 1, 128>}, {pipeline_mode = #tpu.pipeline_mode<synchronous>, transform_indices = @transform_8, window_bounds = array<i64: 1, 128>}, {transform_indices = @transform_9, window_bounds = array<i64: 8, 128>}]} {
    %c0 = arith.constant 0 : index
    %c0_0 = arith.constant 0 : index
    %0 = vector.load %arg1[%c0, %c0_0] : memref<8x16xf32, #tpu.memory_space<vmem>>, vector<8x16xf32>
    %1 = arith.truncf %0 : vector<8x16xf32> to vector<8x16xbf16>
    %c0_1 = arith.constant 0 : index
    %c0_2 = arith.constant 0 : index
    %2 = vector.load %arg2[%c0_1, %c0_2] : memref<16x1024xbf16, #tpu.memory_space<vmem>>, vector<16x1024xbf16>
    %cst = arith.constant dense<0.000000e+00> : vector<8x1024xf32>
    %3 = tpu.matmul %1, %2, %cst {dimension_numbers = #tpu.dot_dimension_numbers<[1], [0], [0], [1], [0, 0, 1, 1], [], []>} : vector<8x16xbf16>, vector<16x1024xbf16>, vector<8x1024xf32> -> vector<8x1024xf32>
    %c0_3 = arith.constant 0 : index
    %c0_4 = arith.constant 0 : index
    %4 = vector.load %arg3[%c0_3, %c0_4] : memref<1x1024xf32, #tpu.memory_space<vmem>>, vector<1x1024xf32>
    %5 = vector.broadcast %4 : vector<1x1024xf32> to vector<8x1024xf32>
    %6 = arith.addf %3, %5 : vector<8x1024xf32>
    %cst_5 = arith.constant 0.000000e+00 : f32
    %7 = vector.broadcast %cst_5 : f32 to vector<8x1024xf32>
    %8 = arith.maximumf %6, %7 : vector<8x1024xf32>
    %9 = arith.truncf %8 : vector<8x1024xf32> to vector<8x1024xbf16>
    %c0_6 = arith.constant 0 : index
    %c0_7 = arith.constant 0 : index
    %10 = vector.load %arg4[%c0_6, %c0_7] : memref<1024x512xi8, #tpu.memory_space<vmem>>, vector<1024x512xi8>
    %11 = arith.sitofp %10 : vector<1024x512xi8> to vector<1024x512xbf16>
    %cst_8 = arith.constant dense<0.000000e+00> : vector<8x512xf32>
    %12 = tpu.matmul %9, %11, %cst_8 {dimension_numbers = #tpu.dot_dimension_numbers<[1], [0], [0], [1], [0, 0, 1, 1], [], []>} : vector<8x1024xbf16>, vector<1024x512xbf16>, vector<8x512xf32> -> vector<8x512xf32>
    %c0_9 = arith.constant 0 : index
    %c0_10 = arith.constant 0 : index
    %13 = vector.load %arg5[%c0_9, %c0_10] : memref<1x512xf32, #tpu.memory_space<vmem>>, vector<1x512xf32>
    %14 = vector.broadcast %13 : vector<1x512xf32> to vector<8x512xf32>
    %15 = arith.mulf %12, %14 : vector<8x512xf32>
    %c0_11 = arith.constant 0 : index
    %c0_12 = arith.constant 0 : index
    %16 = vector.load %arg6[%c0_11, %c0_12] : memref<1x512xf32, #tpu.memory_space<vmem>>, vector<1x512xf32>
    %17 = vector.broadcast %16 : vector<1x512xf32> to vector<8x512xf32>
    %18 = arith.addf %15, %17 : vector<8x512xf32>
    %cst_13 = arith.constant 0.000000e+00 : f32
    %19 = vector.broadcast %cst_13 : f32 to vector<8x512xf32>
    %20 = arith.maximumf %18, %19 : vector<8x512xf32>
    %21 = arith.truncf %20 : vector<8x512xf32> to vector<8x512xbf16>
    %c0_14 = arith.constant 0 : index
    %c0_15 = arith.constant 0 : index
    %22 = vector.load %arg7[%c0_14, %c0_15] : memref<512x128xi8, #tpu.memory_space<vmem>>, vector<512x128xi8>
    %23 = arith.sitofp %22 : vector<512x128xi8> to vector<512x128xbf16>
    %cst_16 = arith.constant dense<0.000000e+00> : vector<8x128xf32>
    %24 = tpu.matmul %21, %23, %cst_16 {dimension_numbers = #tpu.dot_dimension_numbers<[1], [0], [0], [1], [0, 0, 1, 1], [], []>} : vector<8x512xbf16>, vector<512x128xbf16>, vector<8x128xf32> -> vector<8x128xf32>
    %c0_17 = arith.constant 0 : index
    %c0_18 = arith.constant 0 : index
    %25 = vector.load %arg8[%c0_17, %c0_18] : memref<1x128xf32, #tpu.memory_space<vmem>>, vector<1x128xf32>
    %26 = vector.broadcast %25 : vector<1x128xf32> to vector<8x128xf32>
    %27 = arith.mulf %24, %26 : vector<8x128xf32>
    %c0_19 = arith.constant 0 : index
    %c0_20 = arith.constant 0 : index
    %28 = vector.load %arg9[%c0_19, %c0_20] : memref<1x128xf32, #tpu.memory_space<vmem>>, vector<1x128xf32>
    %29 = vector.broadcast %28 : vector<1x128xf32> to vector<8x128xf32>
    %30 = arith.addf %27, %29 : vector<8x128xf32>
    %c0_21 = arith.constant 0 : index
    %c0_22 = arith.constant 0 : index
    %31 = vector.load %arg10[%c0_21, %c0_22] : memref<8x128xf32, #tpu.memory_space<vmem>>, vector<8x128xf32>
    tpu.vector_store %arg10[%c0_21, %c0_22], %30 {strides = array<i32>} : memref<8x128xf32, #tpu.memory_space<vmem>>, vector<8x128xf32>,
    return
  }
  func.func @transform_0(%arg0: i32) -> (i32, i32) {
    %c0_i32 = arith.constant 0 : i32
    %c0_i32_0 = arith.constant 0 : i32
    return %arg0, %c0_i32 : i32, i32
  }
  func.func @transform_1(%arg0: i32) -> (i32, i32) {
    %c0_i32 = arith.constant 0 : i32
    %c0_i32_0 = arith.constant 0 : i32
    %c0_i32_1 = arith.constant 0 : i32
    return %c0_i32, %c0_i32_0 : i32, i32
  }
  func.func @transform_2(%arg0: i32) -> (i32, i32) {
    %c0_i32 = arith.constant 0 : i32
    %c0_i32_0 = arith.constant 0 : i32
    %c0_i32_1 = arith.constant 0 : i32
    return %c0_i32, %c0_i32_0 : i32, i32
  }
  func.func @transform_3(%arg0: i32) -> (i32, i32) {
    %c0_i32 = arith.constant 0 : i32
    %c0_i32_0 = arith.constant 0 : i32
    %c0_i32_1 = arith.constant 0 : i32
    return %c0_i32, %c0_i32_0 : i32, i32
  }
  func.func @transform_4(%arg0: i32) -> (i32, i32) {
    %c0_i32 = arith.constant 0 : i32
    %c0_i32_0 = arith.constant 0 : i32
    %c0_i32_1 = arith.constant 0 : i32
    return %c0_i32, %c0_i32_0 : i32, i32
  }
  func.func @transform_5(%arg0: i32) -> (i32, i32) {
    %c0_i32 = arith.constant 0 : i32
    %c0_i32_0 = arith.constant 0 : i32
    %c0_i32_1 = arith.constant 0 : i32
    return %c0_i32, %c0_i32_0 : i32, i32
  }
  func.func @transform_6(%arg0: i32) -> (i32, i32) {
    %c0_i32 = arith.constant 0 : i32
    %c0_i32_0 = arith.constant 0 : i32
    %c0_i32_1 = arith.constant 0 : i32
    return %c0_i32, %c0_i32_0 : i32, i32
  }
  func.func @transform_7(%arg0: i32) -> (i32, i32) {
    %c0_i32 = arith.constant 0 : i32
    %c0_i32_0 = arith.constant 0 : i32
    %c0_i32_1 = arith.constant 0 : i32
    return %c0_i32, %c0_i32_0 : i32, i32
  }
  func.func @transform_8(%arg0: i32) -> (i32, i32) {
    %c0_i32 = arith.constant 0 : i32
    %c0_i32_0 = arith.constant 0 : i32
    %c0_i32_1 = arith.constant 0 : i32
    return %c0_i32, %c0_i32_0 : i32, i32
  }
  func.func @transform_9(%arg0: i32) -> (i32, i32) {
    %c0_i32 = arith.constant 0 : i32
    %c0_i32_0 = arith.constant 0 : i32
    return %arg0, %c0_i32 : i32, i32
  }
}

</mosaic_0001>

<llo_original>
// kernel: tpu_custom_call.1
$region0: #{tpu_custom_call.1}
  #allocation0 [shape = 'u32[]', space=smem, size = 0x4, offset = 0x4, fixed_abs, tag = 'smem constant byte address 0x4 - core index']
  #allocation1 [shape = 'u32[144,128]{1,0:T(1,128)}', space=vmem, size = 0x12000, scoped, tag = 'internal scratch']
  %s0 = inlined_call_operand.hbm [shape: f32[8,16], index: 0, kind: input, shape index: {}]
  %s1 = inlined_call_operand.hbm [shape: bf16[16,1024], index: 1, kind: input, shape index: {}]
  %s2 = inlined_call_operand.hbm [shape: f32[1,1024], index: 2, kind: input, shape index: {}]
  %s3 = inlined_call_operand.hbm [shape: s8[1024,512], index: 3, kind: input, shape index: {}]
  %s4 = inlined_call_operand.vmem [shape: f32[1,512], index: 4, kind: input, shape index: {}]
  %s5 = inlined_call_operand.vmem [shape: f32[1,512], index: 5, kind: input, shape index: {}]
  %s6 = inlined_call_operand.hbm [shape: s8[512,128], index: 6, kind: input, shape index: {}]
  %s7 = inlined_call_operand.vmem [shape: f32[1,128], index: 7, kind: input, shape index: {}]
  %s8 = inlined_call_operand.vmem [shape: f32[1,128], index: 8, kind: input, shape index: {}]
  %s9 = inlined_call_operand.hbm [shape: f32[8,128], index: 9, kind: output, shape index: {}]
  %s10 = sld [smem:[#allocation0]]
  $region66: #{tpu_custom_call.1} parent=0
    _
  %s12 = ssub.s32 1, %s10
  %s13 = scalar_select 0, %s12, %s10
  $region1: #{tpu_custom_call.1} parent=0
    #allocation2 [shape = 'u8[4096]{0}', space=vmem, size = 0x1000, scoped, tag = 'input window, operand 0, single buffered']
    #allocation3 [shape = 's32[1]{0}', space=sflag, size = 0x4, scoped, tag = 'scoped memory for tpu_custom_call.1']
    #allocation4 [shape = 's32[1]{0}', space=sflag, size = 0x4, scoped, tag = 'scoped memory for tpu_custom_call.1']
    #allocation5 [shape = 'u8[32768]{0}', space=vmem, size = 0x8000, scoped, tag = 'input window, operand 1, single buffered']
    #allocation6 [shape = 's32[1]{0}', space=sflag, size = 0x4, scoped, tag = 'scoped memory for tpu_custom_call.1']
    #allocation7 [shape = 'u8[4096]{0}', space=vmem, size = 0x1000, scoped, tag = 'input window, operand 2, single buffered']
    #allocation8 [shape = 'u8[524288]{0}', space=vmem, size = 0x80000, scoped, tag = 'input window, operand 3, single buffered']
    #allocation9 [shape = 's32[1]{0}', space=sflag, size = 0x4, scoped, tag = 'scoped memory for tpu_custom_call.1']
    #allocation10 [shape = 'u8[65536]{0}', space=vmem, size = 0x10000, scoped, tag = 'input window, operand 6, single buffered']
    #allocation11 [shape = 'u8[4096]{0}', space=vmem, size = 0x1000, scoped, tag = 'output window, operand 0, single buffered']
    %14 = vsyncpa [#allocation3], 0
    %15 = vsyncpa [#allocation6], 0
    %16 = vsyncpa [#allocation9], 0
    %17 = vsyncpa [#allocation4], 0
    // Predicated region
    $region2: #{tpu_custom_call.1} parent=1 // pred_check
      _
    $region3: #{tpu_custom_call.1} parent=1 // pred_check_branch
      %19 = sbr.rel (0) target = $region5
    $region4: #{tpu_custom_call.1} parent=1 // pred_region
      %s21 = ssub.s32 128, 128
      %22 = vsyncadd [#allocation3], %s21
      %s24 = sshll.u32 [#allocation2], 4
      %s25 = int_to_ptr.vmem [resolvable:$true] %s24
      %27 = dma.hbm_to_vmem [thread:$0]  %s0, 128, %s25, [#allocation3]
    $region5: #{tpu_custom_call.1} parent=1 // pred_fallthru
      _
    // Predicated region
    $region6: #{tpu_custom_call.1} parent=1 // pred_check
      _
    $region7: #{tpu_custom_call.1} parent=1 // pred_check_branch
      %29 = sbr.rel (0) target = $region9
    $region8: #{tpu_custom_call.1} parent=1 // pred_region
      %s31 = ssub.s32 1024, 1024
      %32 = vsyncadd [#allocation6], %s31
      %s33 = sshll.u32 [#allocation5], 4
      %s34 = int_to_ptr.vmem [resolvable:$true] %s33
      %39 = dma.hbm_to_vmem [thread:$0]  %s1, 1024, %s34, [#allocation6], 512, 512, 32
    $region9: #{tpu_custom_call.1} parent=1 // pred_fallthru
      _
    // Predicated region
    $region10: #{tpu_custom_call.1} parent=1 // pred_check
      _
    $region11: #{tpu_custom_call.1} parent=1 // pred_check_branch
      %41 = sbr.rel (0) target = $region13
    $region12: #{tpu_custom_call.1} parent=1 // pred_region
      %s43 = ssub.s32 128, 128
      %44 = vsyncadd [#allocation6], %s43
      %s46 = sshll.u32 [#allocation7], 4
      %s47 = int_to_ptr.vmem [resolvable:$true] %s46
      %49 = dma.hbm_to_vmem [thread:$0]  %s2, 128, %s47, [#allocation6]
    $region13: #{tpu_custom_call.1} parent=1 // pred_fallthru
      _
    // Predicated region
    $region14: #{tpu_custom_call.1} parent=1 // pred_check
      _
    $region15: #{tpu_custom_call.1} parent=1 // pred_check_branch
      %51 = sbr.rel (0) target = $region17
    $region16: #{tpu_custom_call.1} parent=1 // pred_region
      %s53 = ssub.s32 16384, 16384
      %54 = vsyncadd [#allocation9], %s53
      %s55 = sshll.u32 [#allocation8], 4
      %s56 = int_to_ptr.vmem [resolvable:$true] %s55
      %61 = dma.hbm_to_vmem [thread:$0]  %s3, 16384, %s56, [#allocation9], 512, 512, 32
    $region17: #{tpu_custom_call.1} parent=1 // pred_fallthru
      _
    // Predicated region
    $region18: #{tpu_custom_call.1} parent=1 // pred_check
      _
    $region19: #{tpu_custom_call.1} parent=1 // pred_check_branch
      %63 = sbr.rel (0) target = $region21
    $region20: #{tpu_custom_call.1} parent=1 // pred_region
      _
    $region21: #{tpu_custom_call.1} parent=1 // pred_fallthru
      _
    // Predicated region
    $region22: #{tpu_custom_call.1} parent=1 // pred_check
      _
    $region23: #{tpu_custom_call.1} parent=1 // pred_check_branch
      %65 = sbr.rel (0) target = $region25
    $region24: #{tpu_custom_call.1} parent=1 // pred_region
      _
    $region25: #{tpu_custom_call.1} parent=1 // pred_fallthru
      _
    // Predicated region
    $region26: #{tpu_custom_call.1} parent=1 // pred_check
      _
    $region27: #{tpu_custom_call.1} parent=1 // pred_check_branch
      %67 = sbr.rel (0) target = $region29
    $region28: #{tpu_custom_call.1} parent=1 // pred_region
      %s69 = ssub.s32 2048, 2048
      %70 = vsyncadd [#allocation9], %s69
      %s71 = sshll.u32 [#allocation10], 4
      %s72 = int_to_ptr.vmem [resolvable:$true] %s71
      %77 = dma.hbm_to_vmem [thread:$0]  %s6, 2048, %s72, [#allocation9], 128, 128, 8
    $region29: #{tpu_custom_call.1} parent=1 // pred_fallthru
      _
    // Predicated region
    $region30: #{tpu_custom_call.1} parent=1 // pred_check
      _
    $region31: #{tpu_custom_call.1} parent=1 // pred_check_branch
      %79 = sbr.rel (0) target = $region33
    $region32: #{tpu_custom_call.1} parent=1 // pred_region
      _
    $region33: #{tpu_custom_call.1} parent=1 // pred_fallthru
      _
    // Predicated region
    $region34: #{tpu_custom_call.1} parent=1 // pred_check
      _
    $region35: #{tpu_custom_call.1} parent=1 // pred_check_branch
      %81 = sbr.rel (0) target = $region37
    $region36: #{tpu_custom_call.1} parent=1 // pred_region
      _
    $region37: #{tpu_custom_call.1} parent=1 // pred_fallthru
      _
    // Predicated region
    $region38: #{tpu_custom_call.1} parent=1 // pred_check
      _
    $region39: #{tpu_custom_call.1} parent=1 // pred_check_branch
      %83 = sbr.rel (0) target = $region41
    $region40: #{tpu_custom_call.1} parent=1 // pred_region
      %84 = dma.done [#allocation3], 128
    $region41: #{tpu_custom_call.1} parent=1 // pred_fallthru
      _
    // Predicated region
    $region42: #{tpu_custom_call.1} parent=1 // pred_check
      _
    $region43: #{tpu_custom_call.1} parent=1 // pred_check_branch
      %86 = sbr.rel (0) target = $region45
    $region44: #{tpu_custom_call.1} parent=1 // pred_region
      %87 = dma.done [#allocation6], 1024
    $region45: #{tpu_custom_call.1} parent=1 // pred_fallthru
      _
    // Predicated region
    $region46: #{tpu_custom_call.1} parent=1 // pred_check
      _
    $region47: #{tpu_custom_call.1} parent=1 // pred_check_branch
      %89 = sbr.rel (0) target = $region49
    $region48: #{tpu_custom_call.1} parent=1 // pred_region
      %90 = dma.done [#allocation6], 128
    $region49: #{tpu_custom_call.1} parent=1 // pred_fallthru
      _
    // Predicated region
    $region50: #{tpu_custom_call.1} parent=1 // pred_check
      _
    $region51: #{tpu_custom_call.1} parent=1 // pred_check_branch
      %92 = sbr.rel (0) target = $region53
    $region52: #{tpu_custom_call.1} parent=1 // pred_region
      %93 = dma.done [#allocation9], 16384
    $region53: #{tpu_custom_call.1} parent=1 // pred_fallthru
      _
    // Predicated region
    $region54: #{tpu_custom_call.1} parent=1 // pred_check
      _
    $region55: #{tpu_custom_call.1} parent=1 // pred_check_branch
      %95 = sbr.rel (0) target = $region57
    $region56: #{tpu_custom_call.1} parent=1 // pred_region
      %96 = dma.done [#allocation9], 2048
    $region57: #{tpu_custom_call.1} parent=1 // pred_fallthru
      _
    %v98 = vld [vmem:[#allocation2] sm:$0xff]
    %v99 = vpack.c.bf16 %v98, %v98
    %v100 = vld [vmem:[#allocation5] sm:$0xff]
    %v101 = vld [vmem:[#allocation5 + $0x8] sm:$0xff]
    %v102 = vld [vmem:[#allocation5 + $0x10] sm:$0xff]
    %v103 = vld [vmem:[#allocation5 + $0x18] sm:$0xff]
    %v104 = vld [vmem:[#allocation5 + $0x20] sm:$0xff]
    %v105 = vld [vmem:[#allocation5 + $0x28] sm:$0xff]
    %v106 = vld [vmem:[#allocation5 + $0x30] sm:$0xff]
    %v107 = vld [vmem:[#allocation5 + $0x38] sm:$0xff]
    %v108 = vld [vmem:[#allocation7] sm:$0xff]
    %v110 = vlaneseq
    %v111 = vshrl.u32 %v110, 7
    %v112 = vsub.s32 0, %v111
    %v113 = vrot.slane %v108, %v112
    %v114 = vlaneseq
    %v115 = vshrl.u32 %v114, 7
    %v116 = vsub.s32 1, %v115
    %v117 = vrot.slane %v108, %v116
    %v118 = vlaneseq
    %v119 = vshrl.u32 %v118, 7
    %v120 = vsub.s32 2, %v119
    %v121 = vrot.slane %v108, %v120
    %v122 = vlaneseq
    %v123 = vshrl.u32 %v122, 7
    %v124 = vsub.s32 3, %v123
    %v125 = vrot.slane %v108, %v124
    %v126 = vlaneseq
    %v127 = vshrl.u32 %v126, 7
    %v128 = vsub.s32 4, %v127
    %v129 = vrot.slane %v108, %v128
    %v130 = vlaneseq
    %v131 = vshrl.u32 %v130, 7
    %v132 = vsub.s32 5, %v131
    %v133 = vrot.slane %v108, %v132
    %v134 = vlaneseq
    %v135 = vshrl.u32 %v134, 7
    %v136 = vsub.s32 6, %v135
    %v137 = vrot.slane %v108, %v136
    %v138 = vlaneseq
    %v139 = vshrl.u32 %v138, 7
    %v140 = vsub.s32 7, %v139
    %v141 = vrot.slane %v108, %v140
    %v158 = vunpack.c.l.b16 %v100
    %v159 = vunpack.c.h.b16 %v100
    %v160 = vunpack.c.l.b16 %v101
    %v161 = vunpack.c.h.b16 %v101
    %v162 = vunpack.c.l.b16 %v102
    %v163 = vunpack.c.h.b16 %v102
    %v164 = vunpack.c.l.b16 %v103
    %v165 = vunpack.c.h.b16 %v103
    %v166 = vunpack.c.l.b16 %v104
    %v167 = vunpack.c.h.b16 %v104
    %v168 = vunpack.c.l.b16 %v105
    %v169 = vunpack.c.h.b16 %v105
    %v170 = vunpack.c.l.b16 %v106
    %v171 = vunpack.c.h.b16 %v106
    %v172 = vunpack.c.l.b16 %v107
    %v173 = vunpack.c.h.b16 %v107
    %v174 = vpack.c.b16 %v166, %v158
    %v175 = vpack.c.b16 %v167, %v159
    %v176 = vpack.c.b16 %v168, %v160
    %v177 = vpack.c.b16 %v169, %v161
    %v178 = vpack.c.b16 %v170, %v162
    %v179 = vpack.c.b16 %v171, %v163
    %v180 = vpack.c.b16 %v172, %v164
    %v181 = vpack.c.b16 %v173, %v165
    %vm190 = vcmask 130048
    %v192 = vsel %vm190, %v99, 0
    %194 = vmatprep.subr.bf16.mxu0 %v175
    %195 = vmatpush1.bf16.msra.mxu0 %v174
    %196 = vmatprep.subr.bf16.mxu0 0
    %197 = vmatpush1.bf16.msra.mxu0 0
    %198 = vmatprep.subr.bf16.mxu0 0
    %199 = vmatpush1.bf16.msra.mxu0 0
    %200 = vmatprep.subr.bf16.mxu0 0
    %201 = vmatpush1.bf16.msra.mxu0 0
    %202 = vmatprep.subr.bf16.mxu0 0
    %203 = vmatpush1.bf16.msra.mxu0 0
    %204 = vmatprep.subr.bf16.mxu0 0
    %205 = vmatpush1.bf16.msra.mxu0 0
    %206 = vmatprep.subr.bf16.mxu0 0
    %207 = vmatpush1.bf16.msra.mxu0 0
    %208 = vmatprep.subr.bf16.mxu0 0
    %209 = vmatpush1.bf16.msra.mxu0 0
    %210 = vmatprep.subr.bf16.mxu0 0
    %211 = vmatpush1.bf16.msra.mxu0 0
    %212 = vmatprep.subr.bf16.mxu0 0
    %213 = vmatpush1.bf16.msra.mxu0 0
    %214 = vmatprep.subr.bf16.mxu0 0
    %215 = vmatpush1.bf16.msra.mxu0 0
    %216 = vmatprep.subr.bf16.mxu0 0
    %217 = vmatpush1.bf16.msra.mxu0 0
    %218 = vmatprep.subr.bf16.mxu0 0
    %219 = vmatpush1.bf16.msra.mxu0 0
    %220 = vmatprep.subr.bf16.mxu0 0
    %221 = vmatpush1.bf16.msra.mxu0 0
    %222 = vmatprep.subr.bf16.mxu0 0
    %223 = vmatpush1.bf16.msra.mxu0 0
    %224 = vmatprep.subr.bf16.mxu0 0
    %225 = vmatpush1.bf16.msra.mxu0 0
    %226 = vmatprep.mubr.bf16.mxu0 0
    %227 = vmatmul.mubr.bf16.gmra.mrb[0].mxu0 %v192
    %v228 = vpop.f32.mrb[0].mxu0
    %v229 = vadd.f32 %v113, %v228
    %v230 = vpop.f32.mrb[0].mxu0
    %v231 = vadd.f32 %v117, %v230
    %v232 = vpop.f32.mrb[0].mxu0
    %v233 = vpop.f32.mrb[0].mxu0
    %234 = vdwg.mxu0
    %235 = vmatprep.subr.bf16.mxu0 %v177
    %236 = vmatpush1.bf16.msra.mxu0 %v176
    %237 = vmatprep.subr.bf16.mxu0 0
    %238 = vmatpush1.bf16.msra.mxu0 0
    %239 = vmatprep.subr.bf16.mxu0 0
    %240 = vmatpush1.bf16.msra.mxu0 0
    %241 = vmatprep.subr.bf16.mxu0 0
    %242 = vmatpush1.bf16.msra.mxu0 0
    %243 = vmatprep.subr.bf16.mxu0 0
    %244 = vmatpush1.bf16.msra.mxu0 0
    %245 = vmatprep.subr.bf16.mxu0 0
    %246 = vmatpush1.bf16.msra.mxu0 0
    %247 = vmatprep.subr.bf16.mxu0 0
    %248 = vmatpush1.bf16.msra.mxu0 0
    %249 = vmatprep.subr.bf16.mxu0 0
    %250 = vmatpush1.bf16.msra.mxu0 0
    %251 = vmatprep.subr.bf16.mxu0 0
    %252 = vmatpush1.bf16.msra.mxu0 0
    %253 = vmatprep.subr.bf16.mxu0 0
    %254 = vmatpush1.bf16.msra.mxu0 0
    %255 = vmatprep.subr.bf16.mxu0 0
    %256 = vmatpush1.bf16.msra.mxu0 0
    %257 = vmatprep.subr.bf16.mxu0 0
    %258 = vmatpush1.bf16.msra.mxu0 0
    %259 = vmatprep.subr.bf16.mxu0 0
    %260 = vmatpush1.bf16.msra.mxu0 0
    %261 = vmatprep.subr.bf16.mxu0 0
    %262 = vmatpush1.bf16.msra.mxu0 0
    %263 = vmatprep.subr.bf16.mxu0 0
    %264 = vmatpush1.bf16.msra.mxu0 0
    %265 = vmatprep.subr.bf16.mxu0 0
    %266 = vmatpush1.bf16.msra.mxu0 0
    %267 = vmatprep.mubr.bf16.mxu0 0
    %268 = vmatmul.mubr.bf16.gmra.mrb[0].mxu0 %v192
    %v269 = vpop.f32.mrb[0].mxu0
    %v270 = vadd.f32 %v121, %v269
    %v271 = vpop.f32.mrb[0].mxu0
    %v272 = vadd.f32 %v125, %v271
    %v273 = vpop.f32.mrb[0].mxu0
    %v274 = vpop.f32.mrb[0].mxu0
    %275 = vdwg.mxu0
    %276 = vmatprep.subr.bf16.mxu0 %v179
    %277 = vmatpush1.bf16.msra.mxu0 %v178
    %278 = vmatprep.subr.bf16.mxu0 0
    %279 = vmatpush1.bf16.msra.mxu0 0
    %280 = vmatprep.subr.bf16.mxu0 0
    %281 = vmatpush1.bf16.msra.mxu0 0
    %282 = vmatprep.subr.bf16.mxu0 0
    %283 = vmatpush1.bf16.msra.mxu0 0
    %284 = vmatprep.subr.bf16.mxu0 0
    %285 = vmatpush1.bf16.msra.mxu0 0
    %286 = vmatprep.subr.bf16.mxu0 0
    %287 = vmatpush1.bf16.msra.mxu0 0
    %288 = vmatprep.subr.bf16.mxu0 0
    %289 = vmatpush1.bf16.msra.mxu0 0
    %290 = vmatprep.subr.bf16.mxu0 0
    %291 = vmatpush1.bf16.msra.mxu0 0
    %292 = vmatprep.subr.bf16.mxu0 0
    %293 = vmatpush1.bf16.msra.mxu0 0
    %294 = vmatprep.subr.bf16.mxu0 0
    %295 = vmatpush1.bf16.msra.mxu0 0
    %296 = vmatprep.subr.bf16.mxu0 0
    %297 = vmatpush1.bf16.msra.mxu0 0
    %298 = vmatprep.subr.bf16.mxu0 0
    %299 = vmatpush1.bf16.msra.mxu0 0
    %300 = vmatprep.subr.bf16.mxu0 0
    %301 = vmatpush1.bf16.msra.mxu0 0
    %302 = vmatprep.subr.bf16.mxu0 0
    %303 = vmatpush1.bf16.msra.mxu0 0
    %304 = vmatprep.subr.bf16.mxu0 0
    %305 = vmatpush1.bf16.msra.mxu0 0
    %306 = vmatprep.subr.bf16.mxu0 0
    %307 = vmatpush1.bf16.msra.mxu0 0
    %308 = vmatprep.mubr.bf16.mxu0 0
    %309 = vmatmul.mubr.bf16.gmra.mrb[0].mxu0 %v192
    %v310 = vpop.f32.mrb[0].mxu0
    %v311 = vadd.f32 %v129, %v310
    %v312 = vpop.f32.mrb[0].mxu0
    %v313 = vadd.f32 %v133, %v312
    %v314 = vpop.f32.mrb[0].mxu0
    %v315 = vpop.f32.mrb[0].mxu0
    %316 = vdwg.mxu0
    %317 = vmatprep.subr.bf16.mxu0 %v181
    %318 = vmatpush1.bf16.msra.mxu0 %v180
    %319 = vmatprep.subr.bf16.mxu0 0
    %320 = vmatpush1.bf16.msra.mxu0 0
    %321 = vmatprep.subr.bf16.mxu0 0
    %322 = vmatpush1.bf16.msra.mxu0 0
    %323 = vmatprep.subr.bf16.mxu0 0
    %324 = vmatpush1.bf16.msra.mxu0 0
    %325 = vmatprep.subr.bf16.mxu0 0
    %326 = vmatpush1.bf16.msra.mxu0 0
    %327 = vmatprep.subr.bf16.mxu0 0
    %328 = vmatpush1.bf16.msra.mxu0 0
    %329 = vmatprep.subr.bf16.mxu0 0
    %330 = vmatpush1.bf16.msra.mxu0 0
    %331 = vmatprep.subr.bf16.mxu0 0
    %332 = vmatpush1.bf16.msra.mxu0 0
    %333 = vmatprep.subr.bf16.mxu0 0
    %334 = vmatpush1.bf16.msra.mxu0 0
    %335 = vmatprep.subr.bf16.mxu0 0
    %336 = vmatpush1.bf16.msra.mxu0 0
    %337 = vmatprep.subr.bf16.mxu0 0
    %338 = vmatpush1.bf16.msra.mxu0 0
    %339 = vmatprep.subr.bf16.mxu0 0
    %340 = vmatpush1.bf16.msra.mxu0 0
    %341 = vmatprep.subr.bf16.mxu0 0
    %342 = vmatpush1.bf16.msra.mxu0 0
    %343 = vmatprep.subr.bf16.mxu0 0
    %344 = vmatpush1.bf16.msra.mxu0 0
    %345 = vmatprep.subr.bf16.mxu0 0
    %346 = vmatpush1.bf16.msra.mxu0 0
    %347 = vmatprep.subr.bf16.mxu0 0
    %348 = vmatpush1.bf16.msra.mxu0 0
    %349 = vmatprep.mubr.bf16.mxu0 0
    %350 = vmatmul.mubr.bf16.gmra.mrb[0].mxu0 %v192
    %v351 = vpop.f32.mrb[0].mxu0
    %v352 = vadd.f32 %v137, %v351
    %v353 = vpop.f32.mrb[0].mxu0
    %v354 = vadd.f32 %v141, %v353
    %v355 = vpop.f32.mrb[0].mxu0
    %v356 = vpop.f32.mrb[0].mxu0
    %357 = vdwg.mxu0
    %v358 = vmax.f32 %v229, 0.0
    %v359 = vmax.f32 %v231, 0.0
    %v360 = vmax.f32 %v270, 0.0
    %v361 = vmax.f32 %v272, 0.0
    %v362 = vmax.f32 %v311, 0.0
    %v363 = vmax.f32 %v313, 0.0
    %v364 = vmax.f32 %v352, 0.0
    %v365 = vmax.f32 %v354, 0.0
    %v366 = vpack.c.bf16 %v358, %v358
    %v367 = vpack.c.bf16 %v359, %v359
    %v368 = vpack.c.bf16 %v360, %v360
    %v369 = vpack.c.bf16 %v361, %v361
    %v370 = vpack.c.bf16 %v362, %v362
    %v371 = vpack.c.bf16 %v363, %v363
    %v372 = vpack.c.bf16 %v364, %v364
    %v373 = vpack.c.bf16 %v365, %v365
    %v374 = vld [vmem:[#allocation8] sm:$0xff]
    %v375 = vld [vmem:[#allocation8 + $0x8] sm:$0xff]
    %v376 = vld [vmem:[#allocation8 + $0x10] sm:$0xff]
    %v377 = vld [vmem:[#allocation8 + $0x18] sm:$0xff]
    %v378 = vld [vmem:[#allocation8 + $0x20] sm:$0xff]
    %v379 = vld [vmem:[#allocation8 + $0x28] sm:$0xff]
    %v380 = vld [vmem:[#allocation8 + $0x30] sm:$0xff]
    %v381 = vld [vmem:[#allocation8 + $0x38] sm:$0xff]
    %v382 = vld [vmem:[#allocation8 + $0x40] sm:$0xff]
    %v383 = vld [vmem:[#allocation8 + $0x48] sm:$0xff]
    %v384 = vld [vmem:[#allocation8 + $0x50] sm:$0xff]
    %v385 = vld [vmem:[#allocation8 + $0x58] sm:$0xff]
    %v386 = vld [vmem:[#allocation8 + $0x60] sm:$0xff]
    %v387 = vld [vmem:[#allocation8 + $0x68] sm:$0xff]
    %v388 = vld [vmem:[#allocation8 + $0x70] sm:$0xff]
    %v389 = vld [vmem:[#allocation8 + $0x78] sm:$0xff]
    %v390 = vld [vmem:[#allocation8 + $0x80] sm:$0xff]
    %v391 = vld [vmem:[#allocation8 + $0x88] sm:$0xff]
    %v392 = vld [vmem:[#allocation8 + $0x90] sm:$0xff]
    %v393 = vld [vmem:[#allocation8 + $0x98] sm:$0xff]
    %v394 = vld [vmem:[#allocation8 + $0xa0] sm:$0xff]
    %v395 = vld [vmem:[#allocation8 + $0xa8] sm:$0xff]
    %v396 = vld [vmem:[#allocation8 + $0xb0] sm:$0xff]
    %v397 = vld [vmem:[#allocation8 + $0xb8] sm:$0xff]
    %v398 = vld [vmem:[#allocation8 + $0xc0] sm:$0xff]
    %v399 = vld [vmem:[#allocation8 + $0xc8] sm:$0xff]
    %v400 = vld [vmem:[#allocation8 + $0xd0] sm:$0xff]
    %v401 = vld [vmem:[#allocation8 + $0xd8] sm:$0xff]
    %v402 = vld [vmem:[#allocation8 + $0xe0] sm:$0xff]
    %v403 = vld [vmem:[#allocation8 + $0xe8] sm:$0xff]
    %v404 = vld [vmem:[#allocation8 + $0xf0] sm:$0xff]
    %v405 = vld [vmem:[#allocation8 + $0xf8] sm:$0xff]
    %v406 = vld [vmem:[#allocation8 + $0x100] sm:$0xff]
    %v407 = vld [vmem:[#allocation8 + $0x108] sm:$0xff]
    %v408 = vld [vmem:[#allocation8 + $0x110] sm:$0xff]
    %v409 = vld [vmem:[#allocation8 + $0x118] sm:$0xff]
    %v410 = vld [vmem:[#allocation8 + $0x120] sm:$0xff]
    %v411 = vld [vmem:[#allocation8 + $0x128] sm:$0xff]
    %v412 = vld [vmem:[#allocation8 + $0x130] sm:$0xff]
    %v413 = vld [vmem:[#allocation8 + $0x138] sm:$0xff]
    %v414 = vld [vmem:[#allocation8 + $0x140] sm:$0xff]
    %v415 = vld [vmem:[#allocation8 + $0x148] sm:$0xff]
    %v416 = vld [vmem:[#allocation8 + $0x150] sm:$0xff]
    %v417 = vld [vmem:[#allocation8 + $0x158] sm:$0xff]
    %v418 = vld [vmem:[#allocation8 + $0x160] sm:$0xff]
    %v419 = vld [vmem:[#allocation8 + $0x168] sm:$0xff]
    %v420 = vld [vmem:[#allocation8 + $0x170] sm:$0xff]
    %v421 = vld [vmem:[#allocation8 + $0x178] sm:$0xff]
    %v422 = vld [vmem:[#allocation8 + $0x180] sm:$0xff]
    %v423 = vld [vmem:[#allocation8 + $0x188] sm:$0xff]
    %v424 = vld [vmem:[#allocation8 + $0x190] sm:$0xff]
    %v425 = vld [vmem:[#allocation8 + $0x198] sm:$0xff]
    %v426 = vld [vmem:[#allocation8 + $0x1a0] sm:$0xff]
    %v427 = vld [vmem:[#allocation8 + $0x1a8] sm:$0xff]
    %v428 = vld [vmem:[#allocation8 + $0x1b0] sm:$0xff]
    %v429 = vld [vmem:[#allocation8 + $0x1b8] sm:$0xff]
    %v430 = vld [vmem:[#allocation8 + $0x1c0] sm:$0xff]
    %v431 = vld [vmem:[#allocation8 + $0x1c8] sm:$0xff]
    %v432 = vld [vmem:[#allocation8 + $0x1d0] sm:$0xff]
    %v433 = vld [vmem:[#allocation8 + $0x1d8] sm:$0xff]
    %v434 = vld [vmem:[#allocation8 + $0x1e0] sm:$0xff]
    %v435 = vld [vmem:[#allocation8 + $0x1e8] sm:$0xff]
    %v436 = vld [vmem:[#allocation8 + $0x1f0] sm:$0xff]
    %v437 = vld [vmem:[#allocation8 + $0x1f8] sm:$0xff]
    %v438 = vld [vmem:[#allocation8 + $0x200] sm:$0xff]
    %v439 = vld [vmem:[#allocation8 + $0x208] sm:$0xff]
    %v440 = vld [vmem:[#allocation8 + $0x210] sm:$0xff]
    %v441 = vld [vmem:[#allocation8 + $0x218] sm:$0xff]
    %v442 = vld [vmem:[#allocation8 + $0x220] sm:$0xff]
    %v443 = vld [vmem:[#allocation8 + $0x228] sm:$0xff]
    %v444 = vld [vmem:[#allocation8 + $0x230] sm:$0xff]
    %v445 = vld [vmem:[#allocation8 + $0x238] sm:$0xff]
    %v446 = vld [vmem:[#allocation8 + $0x240] sm:$0xff]
    %v447 = vld [vmem:[#allocation8 + $0x248] sm:$0xff]
    %v448 = vld [vmem:[#allocation8 + $0x250] sm:$0xff]
    %v449 = vld [vmem:[#allocation8 + $0x258] sm:$0xff]
    %v450 = vld [vmem:[#allocation8 + $0x260] sm:$0xff]
    %v451 = vld [vmem:[#allocation8 + $0x268] sm:$0xff]
    %v452 = vld [vmem:[#allocation8 + $0x270] sm:$0xff]
    %v453 = vld [vmem:[#allocation8 + $0x278] sm:$0xff]
    %v454 = vld [vmem:[#allocation8 + $0x280] sm:$0xff]
    %v455 = vld [vmem:[#allocation8 + $0x288] sm:$0xff]
    %v456 = vld [vmem:[#allocation8 + $0x290] sm:$0xff]
    %v457 = vld [vmem:[#allocation8 + $0x298] sm:$0xff]
    %v458 = vld [vmem:[#allocation8 + $0x2a0] sm:$0xff]
    %v459 = vld [vmem:[#allocation8 + $0x2a8] sm:$0xff]
    %v460 = vld [vmem:[#allocation8 + $0x2b0] sm:$0xff]
    %v461 = vld [vmem:[#allocation8 + $0x2b8] sm:$0xff]
    %v462 = vld [vmem:[#allocation8 + $0x2c0] sm:$0xff]
    %v463 = vld [vmem:[#allocation8 + $0x2c8] sm:$0xff]
    %v464 = vld [vmem:[#allocation8 + $0x2d0] sm:$0xff]
    %v465 = vld [vmem:[#allocation8 + $0x2d8] sm:$0xff]
    %v466 = vld [vmem:[#allocation8 + $0x2e0] sm:$0xff]
    %v467 = vld [vmem:[#allocation8 + $0x2e8] sm:$0xff]
    %v468 = vld [vmem:[#allocation8 + $0x2f0] sm:$0xff]
    %v469 = vld [vmem:[#allocation8 + $0x2f8] sm:$0xff]
    %v470 = vld [vmem:[#allocation8 + $0x300] sm:$0xff]
    %v471 = vld [vmem:[#allocation8 + $0x308] sm:$0xff]
    %v472 = vld [vmem:[#allocation8 + $0x310] sm:$0xff]
    %v473 = vld [vmem:[#allocation8 + $0x318] sm:$0xff]
    %v474 = vld [vmem:[#allocation8 + $0x320] sm:$0xff]
    %v475 = vld [vmem:[#allocation8 + $0x328] sm:$0xff]
    %v476 = vld [vmem:[#allocation8 + $0x330] sm:$0xff]
    %v477 = vld [vmem:[#allocation8 + $0x338] sm:$0xff]
    %v478 = vld [vmem:[#allocation8 + $0x340] sm:$0xff]
    %v479 = vld [vmem:[#allocation8 + $0x348] sm:$0xff]
    %v480 = vld [vmem:[#allocation8 + $0x350] sm:$0xff]
    %v481 = vld [vmem:[#allocation8 + $0x358] sm:$0xff]
    %v482 = vld [vmem:[#allocation8 + $0x360] sm:$0xff]
    %v483 = vld [vmem:[#allocation8 + $0x368] sm:$0xff]
    %v484 = vld [vmem:[#allocation8 + $0x370] sm:$0xff]
    %v485 = vld [vmem:[#allocation8 + $0x378] sm:$0xff]
    %v486 = vld [vmem:[#allocation8 + $0x380] sm:$0xff]
    %v487 = vld [vmem:[#allocation8 + $0x388] sm:$0xff]
    %v488 = vld [vmem:[#allocation8 + $0x390] sm:$0xff]
    %v489 = vld [vmem:[#allocation8 + $0x398] sm:$0xff]
    %v490 = vld [vmem:[#allocation8 + $0x3a0] sm:$0xff]
    %v491 = vld [vmem:[#allocation8 + $0x3a8] sm:$0xff]
    %v492 = vld [vmem:[#allocation8 + $0x3b0] sm:$0xff]
    %v493 = vld [vmem:[#allocation8 + $0x3b8] sm:$0xff]
    %v494 = vld [vmem:[#allocation8 + $0x3c0] sm:$0xff]
    %v495 = vld [vmem:[#allocation8 + $0x3c8] sm:$0xff]
    %v496 = vld [vmem:[#allocation8 + $0x3d0] sm:$0xff]
    %v497 = vld [vmem:[#allocation8 + $0x3d8] sm:$0xff]
    %v498 = vld [vmem:[#allocation8 + $0x3e0] sm:$0xff]
    %v499 = vld [vmem:[#allocation8 + $0x3e8] sm:$0xff]
    %v500 = vld [vmem:[#allocation8 + $0x3f0] sm:$0xff]
    %v501 = vld [vmem:[#allocation8 + $0x3f8] sm:$0xff]
    %v502 = vunpack.c.l.s8.bf16 %v374
    %v503 = vunpack.c.l.s8.bf16 %v375
    %v504 = vunpack.c.l.s8.bf16 %v376
    %v505 = vunpack.c.l.s8.bf16 %v377
    %v506 = vunpack.c.h.s8.bf16 %v374
    %v507 = vunpack.c.h.s8.bf16 %v375
    %v508 = vunpack.c.h.s8.bf16 %v376
    %v509 = vunpack.c.h.s8.bf16 %v377
    %v510 = vunpack.c.l.s8.bf16 %v378
    %v511 = vunpack.c.l.s8.bf16 %v379
    %v512 = vunpack.c.l.s8.bf16 %v380
    %v513 = vunpack.c.l.s8.bf16 %v381
    %v514 = vunpack.c.h.s8.bf16 %v378
    %v515 = vunpack.c.h.s8.bf16 %v379
    %v516 = vunpack.c.h.s8.bf16 %v380
    %v517 = vunpack.c.h.s8.bf16 %v381
    %v518 = vunpack.c.l.s8.bf16 %v382
    %v519 = vunpack.c.l.s8.bf16 %v383
    %v520 = vunpack.c.l.s8.bf16 %v384
    %v521 = vunpack.c.l.s8.bf16 %v385
    %v522 = vunpack.c.h.s8.bf16 %v382
    %v523 = vunpack.c.h.s8.bf16 %v383
    %v524 = vunpack.c.h.s8.bf16 %v384
    %v525 = vunpack.c.h.s8.bf16 %v385
    %v526 = vunpack.c.l.s8.bf16 %v386
    %v527 = vunpack.c.l.s8.bf16 %v387
    %v528 = vunpack.c.l.s8.bf16 %v388
    %v529 = vunpack.c.l.s8.bf16 %v389
    %v530 = vunpack.c.h.s8.bf16 %v386
    %v531 = vunpack.c.h.s8.bf16 %v387
    %v532 = vunpack.c.h.s8.bf16 %v388
    %v533 = vunpack.c.h.s8.bf16 %v389
    %v534 = vunpack.c.l.s8.bf16 %v390
    %v535 = vunpack.c.l.s8.bf16 %v391
    %v536 = vunpack.c.l.s8.bf16 %v392
    %v537 = vunpack.c.l.s8.bf16 %v393
    %v538 = vunpack.c.h.s8.bf16 %v390
    %v539 = vunpack.c.h.s8.bf16 %v391
    %v540 = vunpack.c.h.s8.bf16 %v392
    %v541 = vunpack.c.h.s8.bf16 %v393
    %v542 = vunpack.c.l.s8.bf16 %v394
    %v543 = vunpack.c.l.s8.bf16 %v395
    %v544 = vunpack.c.l.s8.bf16 %v396
    %v545 = vunpack.c.l.s8.bf16 %v397
    %v546 = vunpack.c.h.s8.bf16 %v394
    %v547 = vunpack.c.h.s8.bf16 %v395
    %v548 = vunpack.c.h.s8.bf16 %v396
    %v549 = vunpack.c.h.s8.bf16 %v397
    %v550 = vunpack.c.l.s8.bf16 %v398
    %v551 = vunpack.c.l.s8.bf16 %v399
    %v552 = vunpack.c.l.s8.bf16 %v400
    %v553 = vunpack.c.l.s8.bf16 %v401
    %v554 = vunpack.c.h.s8.bf16 %v398
    %v555 = vunpack.c.h.s8.bf16 %v399
    %v556 = vunpack.c.h.s8.bf16 %v400
    %v557 = vunpack.c.h.s8.bf16 %v401
    %v558 = vunpack.c.l.s8.bf16 %v402
    %v559 = vunpack.c.l.s8.bf16 %v403
    %v560 = vunpack.c.l.s8.bf16 %v404
    %v561 = vunpack.c.l.s8.bf16 %v405
    %v562 = vunpack.c.h.s8.bf16 %v402
    %v563 = vunpack.c.h.s8.bf16 %v403
    %v564 = vunpack.c.h.s8.bf16 %v404
    %v565 = vunpack.c.h.s8.bf16 %v405
    %v566 = vunpack.c.l.s8.bf16 %v406
    %v567 = vunpack.c.l.s8.bf16 %v407
    %v568 = vunpack.c.l.s8.bf16 %v408
    %v569 = vunpack.c.l.s8.bf16 %v409
    %v570 = vunpack.c.h.s8.bf16 %v406
    %v571 = vunpack.c.h.s8.bf16 %v407
    %v572 = vunpack.c.h.s8.bf16 %v408
    %v573 = vunpack.c.h.s8.bf16 %v409
    %v574 = vunpack.c.l.s8.bf16 %v410
    %v575 = vunpack.c.l.s8.bf16 %v411
    %v576 = vunpack.c.l.s8.bf16 %v412
    %v577 = vunpack.c.l.s8.bf16 %v413
    %v578 = vunpack.c.h.s8.bf16 %v410
    %v579 = vunpack.c.h.s8.bf16 %v411
    %v580 = vunpack.c.h.s8.bf16 %v412
    %v581 = vunpack.c.h.s8.bf16 %v413
    %v582 = vunpack.c.l.s8.bf16 %v414
    %v583 = vunpack.c.l.s8.bf16 %v415
    %v584 = vunpack.c.l.s8.bf16 %v416
    %v585 = vunpack.c.l.s8.bf16 %v417
    %v586 = vunpack.c.h.s8.bf16 %v414
    %v587 = vunpack.c.h.s8.bf16 %v415
    %v588 = vunpack.c.h.s8.bf16 %v416
    %v589 = vunpack.c.h.s8.bf16 %v417
    %v590 = vunpack.c.l.s8.bf16 %v418
    %v591 = vunpack.c.l.s8.bf16 %v419
    %v592 = vunpack.c.l.s8.bf16 %v420
    %v593 = vunpack.c.l.s8.bf16 %v421
    %v594 = vunpack.c.h.s8.bf16 %v418
    %v595 = vunpack.c.h.s8.bf16 %v419
    %v596 = vunpack.c.h.s8.bf16 %v420
    %v597 = vunpack.c.h.s8.bf16 %v421
    %v598 = vunpack.c.l.s8.bf16 %v422
    %v599 = vunpack.c.l.s8.bf16 %v423
    %v600 = vunpack.c.l.s8.bf16 %v424
    %v601 = vunpack.c.l.s8.bf16 %v425
    %v602 = vunpack.c.h.s8.bf16 %v422
    %v603 = vunpack.c.h.s8.bf16 %v423
    %v604 = vunpack.c.h.s8.bf16 %v424
    %v605 = vunpack.c.h.s8.bf16 %v425
    %v606 = vunpack.c.l.s8.bf16 %v426
    %v607 = vunpack.c.l.s8.bf16 %v427
    %v608 = vunpack.c.l.s8.bf16 %v428
    %v609 = vunpack.c.l.s8.bf16 %v429
    %v610 = vunpack.c.h.s8.bf16 %v426
    %v611 = vunpack.c.h.s8.bf16 %v427
    %v612 = vunpack.c.h.s8.bf16 %v428
    %v613 = vunpack.c.h.s8.bf16 %v429
    %v614 = vunpack.c.l.s8.bf16 %v430
    %v615 = vunpack.c.l.s8.bf16 %v431
    %v616 = vunpack.c.l.s8.bf16 %v432
    %v617 = vunpack.c.l.s8.bf16 %v433
    %v618 = vunpack.c.h.s8.bf16 %v430
    %v619 = vunpack.c.h.s8.bf16 %v431
    %v620 = vunpack.c.h.s8.bf16 %v432
    %v621 = vunpack.c.h.s8.bf16 %v433
    %v622 = vunpack.c.l.s8.bf16 %v434
    %v623 = vunpack.c.l.s8.bf16 %v435
    %v624 = vunpack.c.l.s8.bf16 %v436
    %v625 = vunpack.c.l.s8.bf16 %v437
    %v626 = vunpack.c.h.s8.bf16 %v434
    %v627 = vunpack.c.h.s8.bf16 %v435
    %v628 = vunpack.c.h.s8.bf16 %v436
    %v629 = vunpack.c.h.s8.bf16 %v437
    %v630 = vunpack.c.l.s8.bf16 %v438
    %v631 = vunpack.c.l.s8.bf16 %v439
    %v632 = vunpack.c.l.s8.bf16 %v440
    %v633 = vunpack.c.l.s8.bf16 %v441
    %v634 = vunpack.c.h.s8.bf16 %v438
    %v635 = vunpack.c.h.s8.bf16 %v439
    %v636 = vunpack.c.h.s8.bf16 %v440
    %v637 = vunpack.c.h.s8.bf16 %v441
    %v638 = vunpack.c.l.s8.bf16 %v442
    %v639 = vunpack.c.l.s8.bf16 %v443
    %v640 = vunpack.c.l.s8.bf16 %v444
    %v641 = vunpack.c.l.s8.bf16 %v445
    %v642 = vunpack.c.h.s8.bf16 %v442
    %v643 = vunpack.c.h.s8.bf16 %v443
    %v644 = vunpack.c.h.s8.bf16 %v444
    %v645 = vunpack.c.h.s8.bf16 %v445
    %v646 = vunpack.c.l.s8.bf16 %v446
    %v647 = vunpack.c.l.s8.bf16 %v447
    %v648 = vunpack.c.l.s8.bf16 %v448
    %v649 = vunpack.c.l.s8.bf16 %v449
    %v650 = vunpack.c.h.s8.bf16 %v446
    %v651 = vunpack.c.h.s8.bf16 %v447
    %v652 = vunpack.c.h.s8.bf16 %v448
    %v653 = vunpack.c.h.s8.bf16 %v449
    %v654 = vunpack.c.l.s8.bf16 %v450
    %v655 = vunpack.c.l.s8.bf16 %v451
    %v656 = vunpack.c.l.s8.bf16 %v452
    %v657 = vunpack.c.l.s8.bf16 %v453
    %v658 = vunpack.c.h.s8.bf16 %v450
    %v659 = vunpack.c.h.s8.bf16 %v451
    %v660 = vunpack.c.h.s8.bf16 %v452
    %v661 = vunpack.c.h.s8.bf16 %v453
    %v662 = vunpack.c.l.s8.bf16 %v454
    %v663 = vunpack.c.l.s8.bf16 %v455
    %v664 = vunpack.c.l.s8.bf16 %v456
    %v665 = vunpack.c.l.s8.bf16 %v457
    %v666 = vunpack.c.h.s8.bf16 %v454
    %v667 = vunpack.c.h.s8.bf16 %v455
    %v668 = vunpack.c.h.s8.bf16 %v456
    %v669 = vunpack.c.h.s8.bf16 %v457
    %v670 = vunpack.c.l.s8.bf16 %v458
    %v671 = vunpack.c.l.s8.bf16 %v459
    %v672 = vunpack.c.l.s8.bf16 %v460
    %v673 = vunpack.c.l.s8.bf16 %v461
    %v674 = vunpack.c.h.s8.bf16 %v458
    %v675 = vunpack.c.h.s8.bf16 %v459
    %v676 = vunpack.c.h.s8.bf16 %v460
    %v677 = vunpack.c.h.s8.bf16 %v461
    %v678 = vunpack.c.l.s8.bf16 %v462
    %v679 = vunpack.c.l.s8.bf16 %v463
    %v680 = vunpack.c.l.s8.bf16 %v464
    %v681 = vunpack.c.l.s8.bf16 %v465
    %v682 = vunpack.c.h.s8.bf16 %v462
    %v683 = vunpack.c.h.s8.bf16 %v463
    %v684 = vunpack.c.h.s8.bf16 %v464
    %v685 = vunpack.c.h.s8.bf16 %v465
    %v686 = vunpack.c.l.s8.bf16 %v466
    %v687 = vunpack.c.l.s8.bf16 %v467
    %v688 = vunpack.c.l.s8.bf16 %v468
    %v689 = vunpack.c.l.s8.bf16 %v469
    %v690 = vunpack.c.h.s8.bf16 %v466
    %v691 = vunpack.c.h.s8.bf16 %v467
    %v692 = vunpack.c.h.s8.bf16 %v468
    %v693 = vunpack.c.h.s8.bf16 %v469
    %v694 = vunpack.c.l.s8.bf16 %v470
    %v695 = vunpack.c.l.s8.bf16 %v471
    %v696 = vunpack.c.l.s8.bf16 %v472
    %v697 = vunpack.c.l.s8.bf16 %v473
    %v698 = vunpack.c.h.s8.bf16 %v470
    %v699 = vunpack.c.h.s8.bf16 %v471
    %v700 = vunpack.c.h.s8.bf16 %v472
    %v701 = vunpack.c.h.s8.bf16 %v473
    %v702 = vunpack.c.l.s8.bf16 %v474
    %v703 = vunpack.c.l.s8.bf16 %v475
    %v704 = vunpack.c.l.s8.bf16 %v476
    %v705 = vunpack.c.l.s8.bf16 %v477
    %v706 = vunpack.c.h.s8.bf16 %v474
    %v707 = vunpack.c.h.s8.bf16 %v475
    %v708 = vunpack.c.h.s8.bf16 %v476
    %v709 = vunpack.c.h.s8.bf16 %v477
    %v710 = vunpack.c.l.s8.bf16 %v478
    %v711 = vunpack.c.l.s8.bf16 %v479
    %v712 = vunpack.c.l.s8.bf16 %v480
    %v713 = vunpack.c.l.s8.bf16 %v481
    %v714 = vunpack.c.h.s8.bf16 %v478
    %v715 = vunpack.c.h.s8.bf16 %v479
    %v716 = vunpack.c.h.s8.bf16 %v480
    %v717 = vunpack.c.h.s8.bf16 %v481
    %v718 = vunpack.c.l.s8.bf16 %v482
    %v719 = vunpack.c.l.s8.bf16 %v483
    %v720 = vunpack.c.l.s8.bf16 %v484
    %v721 = vunpack.c.l.s8.bf16 %v485
    %v722 = vunpack.c.h.s8.bf16 %v482
    %v723 = vunpack.c.h.s8.bf16 %v483
    %v724 = vunpack.c.h.s8.bf16 %v484
    %v725 = vunpack.c.h.s8.bf16 %v485
    %v726 = vunpack.c.l.s8.bf16 %v486
    %v727 = vunpack.c.l.s8.bf16 %v487
    %v728 = vunpack.c.l.s8.bf16 %v488
    %v729 = vunpack.c.l.s8.bf16 %v489
    %v730 = vunpack.c.h.s8.bf16 %v486
    %v731 = vunpack.c.h.s8.bf16 %v487
    %v732 = vunpack.c.h.s8.bf16 %v488
    %v733 = vunpack.c.h.s8.bf16 %v489
    %v734 = vunpack.c.l.s8.bf16 %v490
    %v735 = vunpack.c.l.s8.bf16 %v491
    %v736 = vunpack.c.l.s8.bf16 %v492
    %v737 = vunpack.c.l.s8.bf16 %v493
    %v738 = vunpack.c.h.s8.bf16 %v490
    %v739 = vunpack.c.h.s8.bf16 %v491
    %v740 = vunpack.c.h.s8.bf16 %v492
    %v741 = vunpack.c.h.s8.bf16 %v493
    %v742 = vunpack.c.l.s8.bf16 %v494
    %v743 = vunpack.c.l.s8.bf16 %v495
    %v744 = vunpack.c.l.s8.bf16 %v496
    %v745 = vunpack.c.l.s8.bf16 %v497
    %v746 = vunpack.c.h.s8.bf16 %v494
    %v747 = vunpack.c.h.s8.bf16 %v495
    %v748 = vunpack.c.h.s8.bf16 %v496
    %v749 = vunpack.c.h.s8.bf16 %v497
    %v750 = vunpack.c.l.s8.bf16 %v498
    %v751 = vunpack.c.l.s8.bf16 %v499
    %v752 = vunpack.c.l.s8.bf16 %v500
    %v753 = vunpack.c.l.s8.bf16 %v501
    %v754 = vunpack.c.h.s8.bf16 %v498
    %v755 = vunpack.c.h.s8.bf16 %v499
    %v756 = vunpack.c.h.s8.bf16 %v500
    %v757 = vunpack.c.h.s8.bf16 %v501
    %758 = vmatprep.subr.bf16.mxu0 %v503
    %759 = vmatpush1.bf16.msra.mxu0 %v502
    %760 = vmatprep.subr.bf16.mxu0 %v507
    %761 = vmatpush1.bf16.msra.mxu0 %v506
    %762 = vmatprep.subr.bf16.mxu0 %v511
    %763 = vmatpush1.bf16.msra.mxu0 %v510
    %764 = vmatprep.subr.bf16.mxu0 %v515
    %765 = vmatpush1.bf16.msra.mxu0 %v514
    %766 = vmatprep.subr.bf16.mxu0 %v519
    %767 = vmatpush1.bf16.msra.mxu0 %v518
    %768 = vmatprep.subr.bf16.mxu0 %v523
    %769 = vmatpush1.bf16.msra.mxu0 %v522
    %770 = vmatprep.subr.bf16.mxu0 %v527
    %771 = vmatpush1.bf16.msra.mxu0 %v526
    %772 = vmatprep.subr.bf16.mxu0 %v531
    %773 = vmatpush1.bf16.msra.mxu0 %v530
    %774 = vmatprep.subr.bf16.mxu0 %v535
    %775 = vmatpush1.bf16.msra.mxu0 %v534
    %776 = vmatprep.subr.bf16.mxu0 %v539
    %777 = vmatpush1.bf16.msra.mxu0 %v538
    %778 = vmatprep.subr.bf16.mxu0 %v543
    %779 = vmatpush1.bf16.msra.mxu0 %v542
    %780 = vmatprep.subr.bf16.mxu0 %v547
    %781 = vmatpush1.bf16.msra.mxu0 %v546
    %782 = vmatprep.subr.bf16.mxu0 %v551
    %783 = vmatpush1.bf16.msra.mxu0 %v550
    %784 = vmatprep.subr.bf16.mxu0 %v555
    %785 = vmatpush1.bf16.msra.mxu0 %v554
    %786 = vmatprep.subr.bf16.mxu0 %v559
    %787 = vmatpush1.bf16.msra.mxu0 %v558
    %788 = vmatprep.subr.bf16.mxu0 %v563
    %789 = vmatpush1.bf16.msra.mxu0 %v562
    %790 = vmatprep.mubr.bf16.mxu0 %v367
    %791 = vmatmul.mubr.bf16.gmra.mrb[0].mxu0 %v366
    %v792 = vpop.f32.mrb[0].mxu0
    %v793 = vadd.f32 0.0, %v792
    %v794 = vpop.f32.mrb[0].mxu0
    %v795 = vadd.f32 0.0, %v794
    %v796 = vpop.f32.mrb[0].mxu0
    %v797 = vpop.f32.mrb[0].mxu0
    %798 = vdwg.mxu0
    %799 = vmatprep.subr.bf16.mxu0 %v567
    %800 = vmatpush1.bf16.msra.mxu0 %v566
    %801 = vmatprep.subr.bf16.mxu0 %v571
    %802 = vmatpush1.bf16.msra.mxu0 %v570
    %803 = vmatprep.subr.bf16.mxu0 %v575
    %804 = vmatpush1.bf16.msra.mxu0 %v574
    %805 = vmatprep.subr.bf16.mxu0 %v579
    %806 = vmatpush1.bf16.msra.mxu0 %v578
    %807 = vmatprep.subr.bf16.mxu0 %v583
    %808 = vmatpush1.bf16.msra.mxu0 %v582
    %809 = vmatprep.subr.bf16.mxu0 %v587
    %810 = vmatpush1.bf16.msra.mxu0 %v586
    %811 = vmatprep.subr.bf16.mxu0 %v591
    %812 = vmatpush1.bf16.msra.mxu0 %v590
    %813 = vmatprep.subr.bf16.mxu0 %v595
    %814 = vmatpush1.bf16.msra.mxu0 %v594
    %815 = vmatprep.subr.bf16.mxu0 %v599
    %816 = vmatpush1.bf16.msra.mxu0 %v598
    %817 = vmatprep.subr.bf16.mxu0 %v603
    %818 = vmatpush1.bf16.msra.mxu0 %v602
    %819 = vmatprep.subr.bf16.mxu0 %v607
    %820 = vmatpush1.bf16.msra.mxu0 %v606
    %821 = vmatprep.subr.bf16.mxu0 %v611
    %822 = vmatpush1.bf16.msra.mxu0 %v610
    %823 = vmatprep.subr.bf16.mxu0 %v615
    %824 = vmatpush1.bf16.msra.mxu0 %v614
    %825 = vmatprep.subr.bf16.mxu0 %v619
    %826 = vmatpush1.bf16.msra.mxu0 %v618
    %827 = vmatprep.subr.bf16.mxu0 %v623
    %828 = vmatpush1.bf16.msra.mxu0 %v622
    %829 = vmatprep.subr.bf16.mxu0 %v627
    %830 = vmatpush1.bf16.msra.mxu0 %v626
    %831 = vmatprep.mubr.bf16.mxu0 %v369
    %832 = vmatmul.mubr.bf16.gmra.mrb[0].mxu0 %v368
    %v833 = vpop.f32.mrb[0].mxu0
    %v834 = vadd.f32 %v793, %v833
    %v835 = vpop.f32.mrb[0].mxu0
    %v836 = vadd.f32 %v795, %v835
    %v837 = vpop.f32.mrb[0].mxu0
    %v838 = vpop.f32.mrb[0].mxu0
    %839 = vdwg.mxu0
    %840 = vmatprep.subr.bf16.mxu0 %v631
    %841 = vmatpush1.bf16.msra.mxu0 %v630
    %842 = vmatprep.subr.bf16.mxu0 %v635
    %843 = vmatpush1.bf16.msra.mxu0 %v634
    %844 = vmatprep.subr.bf16.mxu0 %v639
    %845 = vmatpush1.bf16.msra.mxu0 %v638
    %846 = vmatprep.subr.bf16.mxu0 %v643
    %847 = vmatpush1.bf16.msra.mxu0 %v642
    %848 = vmatprep.subr.bf16.mxu0 %v647
    %849 = vmatpush1.bf16.msra.mxu0 %v646
    %850 = vmatprep.subr.bf16.mxu0 %v651
    %851 = vmatpush1.bf16.msra.mxu0 %v650
    %852 = vmatprep.subr.bf16.mxu0 %v655
    %853 = vmatpush1.bf16.msra.mxu0 %v654
    %854 = vmatprep.subr.bf16.mxu0 %v659
    %855 = vmatpush1.bf16.msra.mxu0 %v658
    %856 = vmatprep.subr.bf16.mxu0 %v663
    %857 = vmatpush1.bf16.msra.mxu0 %v662
    %858 = vmatprep.subr.bf16.mxu0 %v667
    %859 = vmatpush1.bf16.msra.mxu0 %v666
    %860 = vmatprep.subr.bf16.mxu0 %v671
    %861 = vmatpush1.bf16.msra.mxu0 %v670
    %862 = vmatprep.subr.bf16.mxu0 %v675
    %863 = vmatpush1.bf16.msra.mxu0 %v674
    %864 = vmatprep.subr.bf16.mxu0 %v679
    %865 = vmatpush1.bf16.msra.mxu0 %v678
    %866 = vmatprep.subr.bf16.mxu0 %v683
    %867 = vmatpush1.bf16.msra.mxu0 %v682
    %868 = vmatprep.subr.bf16.mxu0 %v687
    %869 = vmatpush1.bf16.msra.mxu0 %v686
    %870 = vmatprep.subr.bf16.mxu0 %v691
    %871 = vmatpush1.bf16.msra.mxu0 %v690
    %872 = vmatprep.mubr.bf16.mxu0 %v371
    %873 = vmatmul.mubr.bf16.gmra.mrb[0].mxu0 %v370
    %v874 = vpop.f32.mrb[0].mxu0
    %v875 = vadd.f32 %v834, %v874
    %v876 = vpop.f32.mrb[0].mxu0
    %v877 = vadd.f32 %v836, %v876
    %v878 = vpop.f32.mrb[0].mxu0
    %v879 = vpop.f32.mrb[0].mxu0
    %880 = vdwg.mxu0
    %881 = vmatprep.subr.bf16.mxu0 %v695
    %882 = vmatpush1.bf16.msra.mxu0 %v694
    %883 = vmatprep.subr.bf16.mxu0 %v699
    %884 = vmatpush1.bf16.msra.mxu0 %v698
    %885 = vmatprep.subr.bf16.mxu0 %v703
    %886 = vmatpush1.bf16.msra.mxu0 %v702
    %887 = vmatprep.subr.bf16.mxu0 %v707
    %888 = vmatpush1.bf16.msra.mxu0 %v706
    %889 = vmatprep.subr.bf16.mxu0 %v711
    %890 = vmatpush1.bf16.msra.mxu0 %v710
    %891 = vmatprep.subr.bf16.mxu0 %v715
    %892 = vmatpush1.bf16.msra.mxu0 %v714
    %893 = vmatprep.subr.bf16.mxu0 %v719
    %894 = vmatpush1.bf16.msra.mxu0 %v718
    %895 = vmatprep.subr.bf16.mxu0 %v723
    %896 = vmatpush1.bf16.msra.mxu0 %v722
    %897 = vmatprep.subr.bf16.mxu0 %v727
    %898 = vmatpush1.bf16.msra.mxu0 %v726
    %899 = vmatprep.subr.bf16.mxu0 %v731
    %900 = vmatpush1.bf16.msra.mxu0 %v730
    %901 = vmatprep.subr.bf16.mxu0 %v735
    %902 = vmatpush1.bf16.msra.mxu0 %v734
    %903 = vmatprep.subr.bf16.mxu0 %v739
    %904 = vmatpush1.bf16.msra.mxu0 %v738
    %905 = vmatprep.subr.bf16.mxu0 %v743
    %906 = vmatpush1.bf16.msra.mxu0 %v742
    %907 = vmatprep.subr.bf16.mxu0 %v747
    %908 = vmatpush1.bf16.msra.mxu0 %v746
    %909 = vmatprep.subr.bf16.mxu0 %v751
    %910 = vmatpush1.bf16.msra.mxu0 %v750
    %911 = vmatprep.subr.bf16.mxu0 %v755
    %912 = vmatpush1.bf16.msra.mxu0 %v754
    %913 = vmatprep.mubr.bf16.mxu0 %v373
    %914 = vmatmul.mubr.bf16.gmra.mrb[0].mxu0 %v372
    %v915 = vpop.f32.mrb[0].mxu0
    %v916 = vadd.f32 %v875, %v915
    %v917 = vpop.f32.mrb[0].mxu0
    %v918 = vadd.f32 %v877, %v917
    %v919 = vpop.f32.mrb[0].mxu0
    %v920 = vpop.f32.mrb[0].mxu0
    %921 = vdwg.mxu0
    %922 = vmatprep.subr.bf16.mxu0 %v505
    %923 = vmatpush1.bf16.msra.mxu0 %v504
    %924 = vmatprep.subr.bf16.mxu0 %v509
    %925 = vmatpush1.bf16.msra.mxu0 %v508
    %926 = vmatprep.subr.bf16.mxu0 %v513
    %927 = vmatpush1.bf16.msra.mxu0 %v512
    %928 = vmatprep.subr.bf16.mxu0 %v517
    %929 = vmatpush1.bf16.msra.mxu0 %v516
    %930 = vmatprep.subr.bf16.mxu0 %v521
    %931 = vmatpush1.bf16.msra.mxu0 %v520
    %932 = vmatprep.subr.bf16.mxu0 %v525
    %933 = vmatpush1.bf16.msra.mxu0 %v524
    %934 = vmatprep.subr.bf16.mxu0 %v529
    %935 = vmatpush1.bf16.msra.mxu0 %v528
    %936 = vmatprep.subr.bf16.mxu0 %v533
    %937 = vmatpush1.bf16.msra.mxu0 %v532
    %938 = vmatprep.subr.bf16.mxu0 %v537
    %939 = vmatpush1.bf16.msra.mxu0 %v536
    %940 = vmatprep.subr.bf16.mxu0 %v541
    %941 = vmatpush1.bf16.msra.mxu0 %v540
    %942 = vmatprep.subr.bf16.mxu0 %v545
    %943 = vmatpush1.bf16.msra.mxu0 %v544
    %944 = vmatprep.subr.bf16.mxu0 %v549
    %945 = vmatpush1.bf16.msra.mxu0 %v548
    %946 = vmatprep.subr.bf16.mxu0 %v553
    %947 = vmatpush1.bf16.msra.mxu0 %v552
    %948 = vmatprep.subr.bf16.mxu0 %v557
    %949 = vmatpush1.bf16.msra.mxu0 %v556
    %950 = vmatprep.subr.bf16.mxu0 %v561
    %951 = vmatpush1.bf16.msra.mxu0 %v560
    %952 = vmatprep.subr.bf16.mxu0 %v565
    %953 = vmatpush1.bf16.msra.mxu0 %v564
    %954 = vmatprep.mubr.bf16.mxu0 %v367
    %955 = vmatmul.mubr.bf16.gmra.mrb[0].mxu0 %v366
    %v956 = vpop.f32.mrb[0].mxu0
    %v957 = vadd.f32 0.0, %v956
    %v958 = vpop.f32.mrb[0].mxu0
    %v959 = vadd.f32 0.0, %v958
    %v960 = vpop.f32.mrb[0].mxu0
    %v961 = vpop.f32.mrb[0].mxu0
    %962 = vdwg.mxu0
    %963 = vmatprep.subr.bf16.mxu0 %v569
    %964 = vmatpush1.bf16.msra.mxu0 %v568
    %965 = vmatprep.subr.bf16.mxu0 %v573
    %966 = vmatpush1.bf16.msra.mxu0 %v572
    %967 = vmatprep.subr.bf16.mxu0 %v577
    %968 = vmatpush1.bf16.msra.mxu0 %v576
    %969 = vmatprep.subr.bf16.mxu0 %v581
    %970 = vmatpush1.bf16.msra.mxu0 %v580
    %971 = vmatprep.subr.bf16.mxu0 %v585
    %972 = vmatpush1.bf16.msra.mxu0 %v584
    %973 = vmatprep.subr.bf16.mxu0 %v589
    %974 = vmatpush1.bf16.msra.mxu0 %v588
    %975 = vmatprep.subr.bf16.mxu0 %v593
    %976 = vmatpush1.bf16.msra.mxu0 %v592
    %977 = vmatprep.subr.bf16.mxu0 %v597
    %978 = vmatpush1.bf16.msra.mxu0 %v596
    %979 = vmatprep.subr.bf16.mxu0 %v601
    %980 = vmatpush1.bf16.msra.mxu0 %v600
    %981 = vmatprep.subr.bf16.mxu0 %v605
    %982 = vmatpush1.bf16.msra.mxu0 %v604
    %983 = vmatprep.subr.bf16.mxu0 %v609
    %984 = vmatpush1.bf16.msra.mxu0 %v608
    %985 = vmatprep.subr.bf16.mxu0 %v613
    %986 = vmatpush1.bf16.msra.mxu0 %v612
    %987 = vmatprep.subr.bf16.mxu0 %v617
    %988 = vmatpush1.bf16.msra.mxu0 %v616
    %989 = vmatprep.subr.bf16.mxu0 %v621
    %990 = vmatpush1.bf16.msra.mxu0 %v620
    %991 = vmatprep.subr.bf16.mxu0 %v625
    %992 = vmatpush1.bf16.msra.mxu0 %v624
    %993 = vmatprep.subr.bf16.mxu0 %v629
    %994 = vmatpush1.bf16.msra.mxu0 %v628
    %995 = vmatprep.mubr.bf16.mxu0 %v369
    %996 = vmatmul.mubr.bf16.gmra.mrb[0].mxu0 %v368
    %v997 = vpop.f32.mrb[0].mxu0
    %v998 = vadd.f32 %v957, %v997
    %v999 = vpop.f32.mrb[0].mxu0
    %v1000 = vadd.f32 %v959, %v999
    %v1001 = vpop.f32.mrb[0].mxu0
    %v1002 = vpop.f32.mrb[0].mxu0
    %1003 = vdwg.mxu0
    %1004 = vmatprep.subr.bf16.mxu0 %v633
    %1005 = vmatpush1.bf16.msra.mxu0 %v632
    %1006 = vmatprep.subr.bf16.mxu0 %v637
    %1007 = vmatpush1.bf16.msra.mxu0 %v636
    %1008 = vmatprep.subr.bf16.mxu0 %v641
    %1009 = vmatpush1.bf16.msra.mxu0 %v640
    %1010 = vmatprep.subr.bf16.mxu0 %v645
    %1011 = vmatpush1.bf16.msra.mxu0 %v644
    %1012 = vmatprep.subr.bf16.mxu0 %v649
    %1013 = vmatpush1.bf16.msra.mxu0 %v648
    %1014 = vmatprep.subr.bf16.mxu0 %v653
    %1015 = vmatpush1.bf16.msra.mxu0 %v652
    %1016 = vmatprep.subr.bf16.mxu0 %v657
    %1017 = vmatpush1.bf16.msra.mxu0 %v656
    %1018 = vmatprep.subr.bf16.mxu0 %v661
    %1019 = vmatpush1.bf16.msra.mxu0 %v660
    %1020 = vmatprep.subr.bf16.mxu0 %v665
    %1021 = vmatpush1.bf16.msra.mxu0 %v664
    %1022 = vmatprep.subr.bf16.mxu0 %v669
    %1023 = vmatpush1.bf16.msra.mxu0 %v668
    %1024 = vmatprep.subr.bf16.mxu0 %v673
    %1025 = vmatpush1.bf16.msra.mxu0 %v672
    %1026 = vmatprep.subr.bf16.mxu0 %v677
    %1027 = vmatpush1.bf16.msra.mxu0 %v676
    %1028 = vmatprep.subr.bf16.mxu0 %v681
    %1029 = vmatpush1.bf16.msra.mxu0 %v680
    %1030 = vmatprep.subr.bf16.mxu0 %v685
    %1031 = vmatpush1.bf16.msra.mxu0 %v684
    %1032 = vmatprep.subr.bf16.mxu0 %v689
    %1033 = vmatpush1.bf16.msra.mxu0 %v688
    %1034 = vmatprep.subr.bf16.mxu0 %v693
    %1035 = vmatpush1.bf16.msra.mxu0 %v692
    %1036 = vmatprep.mubr.bf16.mxu0 %v371
    %1037 = vmatmul.mubr.bf16.gmra.mrb[0].mxu0 %v370
    %v1038 = vpop.f32.mrb[0].mxu0
    %v1039 = vadd.f32 %v998, %v1038
    %v1040 = vpop.f32.mrb[0].mxu0
    %v1041 = vadd.f32 %v1000, %v1040
    %v1042 = vpop.f32.mrb[0].mxu0
    %v1043 = vpop.f32.mrb[0].mxu0
    %1044 = vdwg.mxu0
    %1045 = vmatprep.subr.bf16.mxu0 %v697
    %1046 = vmatpush1.bf16.msra.mxu0 %v696
    %1047 = vmatprep.subr.bf16.mxu0 %v701
    %1048 = vmatpush1.bf16.msra.mxu0 %v700
    %1049 = vmatprep.subr.bf16.mxu0 %v705
    %1050 = vmatpush1.bf16.msra.mxu0 %v704
    %1051 = vmatprep.subr.bf16.mxu0 %v709
    %1052 = vmatpush1.bf16.msra.mxu0 %v708
    %1053 = vmatprep.subr.bf16.mxu0 %v713
    %1054 = vmatpush1.bf16.msra.mxu0 %v712
    %1055 = vmatprep.subr.bf16.mxu0 %v717
    %1056 = vmatpush1.bf16.msra.mxu0 %v716
    %1057 = vmatprep.subr.bf16.mxu0 %v721
    %1058 = vmatpush1.bf16.msra.mxu0 %v720
    %1059 = vmatprep.subr.bf16.mxu0 %v725
    %1060 = vmatpush1.bf16.msra.mxu0 %v724
    %1061 = vmatprep.subr.bf16.mxu0 %v729
    %1062 = vmatpush1.bf16.msra.mxu0 %v728
    %1063 = vmatprep.subr.bf16.mxu0 %v733
    %1064 = vmatpush1.bf16.msra.mxu0 %v732
    %1065 = vmatprep.subr.bf16.mxu0 %v737
    %1066 = vmatpush1.bf16.msra.mxu0 %v736
    %1067 = vmatprep.subr.bf16.mxu0 %v741
    %1068 = vmatpush1.bf16.msra.mxu0 %v740
    %1069 = vmatprep.subr.bf16.mxu0 %v745
    %1070 = vmatpush1.bf16.msra.mxu0 %v744
    %1071 = vmatprep.subr.bf16.mxu0 %v749
    %1072 = vmatpush1.bf16.msra.mxu0 %v748
    %1073 = vmatprep.subr.bf16.mxu0 %v753
    %1074 = vmatpush1.bf16.msra.mxu0 %v752
    %1075 = vmatprep.subr.bf16.mxu0 %v757
    %1076 = vmatpush1.bf16.msra.mxu0 %v756
    %1077 = vmatprep.mubr.bf16.mxu0 %v373
    %1078 = vmatmul.mubr.bf16.gmra.mrb[0].mxu0 %v372
    %v1079 = vpop.f32.mrb[0].mxu0
    %v1080 = vadd.f32 %v1039, %v1079
    %v1081 = vpop.f32.mrb[0].mxu0
    %v1082 = vadd.f32 %v1041, %v1081
    %v1083 = vpop.f32.mrb[0].mxu0
    %v1084 = vpop.f32.mrb[0].mxu0
    %1085 = vdwg.mxu0
    %v1086 = vld [vmem:[%s4] sm:$0xf]
    %v1088 = vlaneseq
    %v1089 = vshrl.u32 %v1088, 7
    %v1090 = vsub.s32 0, %v1089
    %v1091 = vrot.slane %v1086, %v1090
    %v1092 = vlaneseq
    %v1093 = vshrl.u32 %v1092, 7
    %v1094 = vsub.s32 1, %v1093
    %v1095 = vrot.slane %v1086, %v1094
    %v1096 = vlaneseq
    %v1097 = vshrl.u32 %v1096, 7
    %v1098 = vsub.s32 2, %v1097
    %v1099 = vrot.slane %v1086, %v1098
    %v1100 = vlaneseq
    %v1101 = vshrl.u32 %v1100, 7
    %v1102 = vsub.s32 3, %v1101
    %v1103 = vrot.slane %v1086, %v1102
    %v1108 = vmul.f32 %v916, %v1091
    %v1109 = vmul.f32 %v918, %v1095
    %v1110 = vmul.f32 %v1080, %v1099
    %v1111 = vmul.f32 %v1082, %v1103
    %v1112 = vld [vmem:[%s5] sm:$0xf]
    %v1114 = vlaneseq
    %v1115 = vshrl.u32 %v1114, 7
    %v1116 = vsub.s32 0, %v1115
    %v1117 = vrot.slane %v1112, %v1116
    %v1118 = vlaneseq
    %v1119 = vshrl.u32 %v1118, 7
    %v1120 = vsub.s32 1, %v1119
    %v1121 = vrot.slane %v1112, %v1120
    %v1122 = vlaneseq
    %v1123 = vshrl.u32 %v1122, 7
    %v1124 = vsub.s32 2, %v1123
    %v1125 = vrot.slane %v1112, %v1124
    %v1126 = vlaneseq
    %v1127 = vshrl.u32 %v1126, 7
    %v1128 = vsub.s32 3, %v1127
    %v1129 = vrot.slane %v1112, %v1128
    %v1134 = vadd.f32 %v1108, %v1117
    %v1135 = vadd.f32 %v1109, %v1121
    %v1136 = vadd.f32 %v1110, %v1125
    %v1137 = vadd.f32 %v1111, %v1129
    %v1138 = vmax.f32 %v1134, 0.0
    %v1139 = vmax.f32 %v1135, 0.0
    %v1140 = vmax.f32 %v1136, 0.0
    %v1141 = vmax.f32 %v1137, 0.0
    %v1142 = vpack.c.bf16 %v1138, %v1138
    %v1143 = vpack.c.bf16 %v1139, %v1139
    %v1144 = vpack.c.bf16 %v1140, %v1140
    %v1145 = vpack.c.bf16 %v1141, %v1141
    %v1146 = vld [vmem:[#allocation10] sm:$0xff]
    %v1147 = vld [vmem:[#allocation10 + $0x8] sm:$0xff]
    %v1148 = vld [vmem:[#allocation10 + $0x10] sm:$0xff]
    %v1149 = vld [vmem:[#allocation10 + $0x18] sm:$0xff]
    %v1150 = vld [vmem:[#allocation10 + $0x20] sm:$0xff]
    %v1151 = vld [vmem:[#allocation10 + $0x28] sm:$0xff]
    %v1152 = vld [vmem:[#allocation10 + $0x30] sm:$0xff]
    %v1153 = vld [vmem:[#allocation10 + $0x38] sm:$0xff]
    %v1154 = vld [vmem:[#allocation10 + $0x40] sm:$0xff]
    %v1155 = vld [vmem:[#allocation10 + $0x48] sm:$0xff]
    %v1156 = vld [vmem:[#allocation10 + $0x50] sm:$0xff]
    %v1157 = vld [vmem:[#allocation10 + $0x58] sm:$0xff]
    %v1158 = vld [vmem:[#allocation10 + $0x60] sm:$0xff]
    %v1159 = vld [vmem:[#allocation10 + $0x68] sm:$0xff]
    %v1160 = vld [vmem:[#allocation10 + $0x70] sm:$0xff]
    %v1161 = vld [vmem:[#allocation10 + $0x78] sm:$0xff]
    %v1162 = vunpack.c.l.s8.bf16 %v1146
    %v1163 = vunpack.c.h.s8.bf16 %v1146
    %v1164 = vunpack.c.l.s8.bf16 %v1147
    %v1165 = vunpack.c.h.s8.bf16 %v1147
    %v1166 = vunpack.c.l.s8.bf16 %v1148
    %v1167 = vunpack.c.h.s8.bf16 %v1148
    %v1168 = vunpack.c.l.s8.bf16 %v1149
    %v1169 = vunpack.c.h.s8.bf16 %v1149
    %v1170 = vunpack.c.l.s8.bf16 %v1150
    %v1171 = vunpack.c.h.s8.bf16 %v1150
    %v1172 = vunpack.c.l.s8.bf16 %v1151
    %v1173 = vunpack.c.h.s8.bf16 %v1151
    %v1174 = vunpack.c.l.s8.bf16 %v1152
    %v1175 = vunpack.c.h.s8.bf16 %v1152
    %v1176 = vunpack.c.l.s8.bf16 %v1153
    %v1177 = vunpack.c.h.s8.bf16 %v1153
    %v1178 = vunpack.c.l.s8.bf16 %v1154
    %v1179 = vunpack.c.h.s8.bf16 %v1154
    %v1180 = vunpack.c.l.s8.bf16 %v1155
    %v1181 = vunpack.c.h.s8.bf16 %v1155
    %v1182 = vunpack.c.l.s8.bf16 %v1156
    %v1183 = vunpack.c.h.s8.bf16 %v1156
    %v1184 = vunpack.c.l.s8.bf16 %v1157
    %v1185 = vunpack.c.h.s8.bf16 %v1157
    %v1186 = vunpack.c.l.s8.bf16 %v1158
    %v1187 = vunpack.c.h.s8.bf16 %v1158
    %v1188 = vunpack.c.l.s8.bf16 %v1159
    %v1189 = vunpack.c.h.s8.bf16 %v1159
    %v1190 = vunpack.c.l.s8.bf16 %v1160
    %v1191 = vunpack.c.h.s8.bf16 %v1160
    %v1192 = vunpack.c.l.s8.bf16 %v1161
    %v1193 = vunpack.c.h.s8.bf16 %v1161
    %1194 = vmatprep.subr.bf16.mxu0 0
    %1195 = vmatpush1.bf16.msra.mxu0 %v1162
    %1196 = vmatprep.subr.bf16.mxu0 0
    %1197 = vmatpush1.bf16.msra.mxu0 %v1163
    %1198 = vmatprep.subr.bf16.mxu0 0
    %1199 = vmatpush1.bf16.msra.mxu0 %v1164
    %1200 = vmatprep.subr.bf16.mxu0 0
    %1201 = vmatpush1.bf16.msra.mxu0 %v1165
    %1202 = vmatprep.subr.bf16.mxu0 0
    %1203 = vmatpush1.bf16.msra.mxu0 %v1166
    %1204 = vmatprep.subr.bf16.mxu0 0
    %1205 = vmatpush1.bf16.msra.mxu0 %v1167
    %1206 = vmatprep.subr.bf16.mxu0 0
    %1207 = vmatpush1.bf16.msra.mxu0 %v1168
    %1208 = vmatprep.subr.bf16.mxu0 0
    %1209 = vmatpush1.bf16.msra.mxu0 %v1169
    %1210 = vmatprep.subr.bf16.mxu0 0
    %1211 = vmatpush1.bf16.msra.mxu0 %v1170
    %1212 = vmatprep.subr.bf16.mxu0 0
    %1213 = vmatpush1.bf16.msra.mxu0 %v1171
    %1214 = vmatprep.subr.bf16.mxu0 0
    %1215 = vmatpush1.bf16.msra.mxu0 %v1172
    %1216 = vmatprep.subr.bf16.mxu0 0
    %1217 = vmatpush1.bf16.msra.mxu0 %v1173
    %1218 = vmatprep.subr.bf16.mxu0 0
    %1219 = vmatpush1.bf16.msra.mxu0 %v1174
    %1220 = vmatprep.subr.bf16.mxu0 0
    %1221 = vmatpush1.bf16.msra.mxu0 %v1175
    %1222 = vmatprep.subr.bf16.mxu0 0
    %1223 = vmatpush1.bf16.msra.mxu0 %v1176
    %1224 = vmatprep.subr.bf16.mxu0 0
    %1225 = vmatpush1.bf16.msra.mxu0 %v1177
    %1226 = vmatprep.mubr.bf16.mxu0 %v1143
    %1227 = vmatmul.mubr.bf16.gmra.mrb[0].mxu0 %v1142
    %v1228 = vpop.f32.mrb[0].mxu0
    %v1229 = vadd.f32 0.0, %v1228
    %v1230 = vpop.f32.mrb[0].mxu0
    %v1231 = vpop.f32.mrb[0].mxu0
    %v1232 = vpop.f32.mrb[0].mxu0
    %1233 = vdwg.mxu0
    %1234 = vmatprep.subr.bf16.mxu0 0
    %1235 = vmatpush1.bf16.msra.mxu0 %v1178
    %1236 = vmatprep.subr.bf16.mxu0 0
    %1237 = vmatpush1.bf16.msra.mxu0 %v1179
    %1238 = vmatprep.subr.bf16.mxu0 0
    %1239 = vmatpush1.bf16.msra.mxu0 %v1180
    %1240 = vmatprep.subr.bf16.mxu0 0
    %1241 = vmatpush1.bf16.msra.mxu0 %v1181
    %1242 = vmatprep.subr.bf16.mxu0 0
    %1243 = vmatpush1.bf16.msra.mxu0 %v1182
    %1244 = vmatprep.subr.bf16.mxu0 0
    %1245 = vmatpush1.bf16.msra.mxu0 %v1183
    %1246 = vmatprep.subr.bf16.mxu0 0
    %1247 = vmatpush1.bf16.msra.mxu0 %v1184
    %1248 = vmatprep.subr.bf16.mxu0 0
    %1249 = vmatpush1.bf16.msra.mxu0 %v1185
    %1250 = vmatprep.subr.bf16.mxu0 0
    %1251 = vmatpush1.bf16.msra.mxu0 %v1186
    %1252 = vmatprep.subr.bf16.mxu0 0
    %1253 = vmatpush1.bf16.msra.mxu0 %v1187
    %1254 = vmatprep.subr.bf16.mxu0 0
    %1255 = vmatpush1.bf16.msra.mxu0 %v1188
    %1256 = vmatprep.subr.bf16.mxu0 0
    %1257 = vmatpush1.bf16.msra.mxu0 %v1189
    %1258 = vmatprep.subr.bf16.mxu0 0
    %1259 = vmatpush1.bf16.msra.mxu0 %v1190
    %1260 = vmatprep.subr.bf16.mxu0 0
    %1261 = vmatpush1.bf16.msra.mxu0 %v1191
    %1262 = vmatprep.subr.bf16.mxu0 0
    %1263 = vmatpush1.bf16.msra.mxu0 %v1192
    %1264 = vmatprep.subr.bf16.mxu0 0
    %1265 = vmatpush1.bf16.msra.mxu0 %v1193
    %1266 = vmatprep.mubr.bf16.mxu0 %v1145
    %1267 = vmatmul.mubr.bf16.gmra.mrb[0].mxu0 %v1144
    %v1268 = vpop.f32.mrb[0].mxu0
    %v1269 = vadd.f32 %v1229, %v1268
    %v1270 = vpop.f32.mrb[0].mxu0
    %v1271 = vpop.f32.mrb[0].mxu0
    %v1272 = vpop.f32.mrb[0].mxu0
    %1273 = vdwg.mxu0
    %v1274 = vld [vmem:[%s7] sm:$0x1]
    %v1276 = vlaneseq
    %v1277 = vshrl.u32 %v1276, 7
    %v1278 = vsub.s32 0, %v1277
    %v1279 = vrot.slane %v1274, %v1278
    %v1281 = vmul.f32 %v1269, %v1279
    %v1282 = vld [vmem:[%s8] sm:$0x1]
    %v1284 = vlaneseq
    %v1285 = vshrl.u32 %v1284, 7
    %v1286 = vsub.s32 0, %v1285
    %v1287 = vrot.slane %v1282, %v1286
    %v1289 = vadd.f32 %v1281, %v1287
    %1290 = vst [vmem:[#allocation11] sm:$0xff] %v1289
    // Predicated region
    $region58: #{tpu_custom_call.1} parent=1 // pred_check
      _
    $region59: #{tpu_custom_call.1} parent=1 // pred_check_branch
      %1292 = sbr.rel (0) target = $region61
    $region60: #{tpu_custom_call.1} parent=1 // pred_region
      %s1294 = ssub.s32 128, 128
      %1295 = vsyncadd [#allocation4], %s1294
      %s1297 = sshll.u32 [#allocation11], 4
      %s1298 = int_to_ptr.vmem [resolvable:$true] %s1297
      %1300 = dma.vmem_to_hbm [thread:$0]  %s1298, 128, %s9, [#allocation4]
    $region61: #{tpu_custom_call.1} parent=1 // pred_fallthru
      _
    // Predicated region
    $region62: #{tpu_custom_call.1} parent=1 // pred_check
      _
    $region63: #{tpu_custom_call.1} parent=1 // pred_check_branch
      %1302 = sbr.rel (0) target = $region65
    $region64: #{tpu_custom_call.1} parent=1 // pred_region
      %1303 = dma.done [#allocation4], 128
    $region65: #{tpu_custom_call.1} parent=1 // pred_fallthru
      _
    %1304 = vsyncpa [#allocation3], 1
    %1305 = vsyncpa [#allocation6], 1
    %1306 = vsyncpa [#allocation9], 1
    %1307 = vsyncpa [#allocation4], 1

// kernel: tpu_custom_call.1
$region0: #{tpu_custom_call.1}
  #allocation0 [shape = 'u32[]', space=smem, size = 0x4, offset = 0x4, fixed_abs, tag = 'smem constant byte address 0x4 - core index']
  #allocation1 [shape = 'u32[144,128]{1,0:T(1,128)}', space=vmem, size = 0x12000, scoped, tag = 'internal scratch']
  %s0 = inlined_call_operand.hbm [shape: f32[8,16], index: 0, kind: input, shape index: {}]
  %s1 = inlined_call_operand.hbm [shape: bf16[16,1024], index: 1, kind: input, shape index: {}]
  %s2 = inlined_call_operand.hbm [shape: f32[1,1024], index: 2, kind: input, shape index: {}]
  %s3 = inlined_call_operand.hbm [shape: s8[1024,512], index: 3, kind: input, shape index: {}]
  %s4 = inlined_call_operand.vmem [shape: f32[1,512], index: 4, kind: input, shape index: {}]
  %s5 = inlined_call_operand.vmem [shape: f32[1,512], index: 5, kind: input, shape index: {}]
  %s6 = inlined_call_operand.hbm [shape: s8[512,128], index: 6, kind: input, shape index: {}]
  %s7 = inlined_call_operand.vmem [shape: f32[1,128], index: 7, kind: input, shape index: {}]
  %s8 = inlined_call_operand.vmem [shape: f32[1,128], index: 8, kind: input, shape index: {}]
  %s9 = inlined_call_operand.hbm [shape: f32[8,128], index: 9, kind: output, shape index: {}]
  %s10 = sld [smem:[#allocation0]]
  $region66: #{tpu_custom_call.1} parent=0
    _
  %s12 = ssub.s32 1, %s10
  %s13 = scalar_select 0, %s12, %s10
  $region1: #{tpu_custom_call.1} parent=0
    #allocation2 [shape = 'u8[4096]{0}', space=vmem, size = 0x1000, scoped, tag = 'input window, operand 0, single buffered']
    #allocation3 [shape = 's32[1]{0}', space=sflag, size = 0x4, scoped, tag = 'scoped memory for tpu_custom_call.1']
    #allocation4 [shape = 's32[1]{0}', space=sflag, size = 0x4, scoped, tag = 'scoped memory for tpu_custom_call.1']
    #allocation5 [shape = 'u8[32768]{0}', space=vmem, size = 0x8000, scoped, tag = 'input window, operand 1, single buffered']
    #allocation6 [shape = 's32[1]{0}', space=sflag, size = 0x4, scoped, tag = 'scoped memory for tpu_custom_call.1']
    #allocation7 [shape = 'u8[4096]{0}', space=vmem, size = 0x1000, scoped, tag = 'input window, operand 2, single buffered']
    #allocation8 [shape = 'u8[524288]{0}', space=vmem, size = 0x80000, scoped, tag = 'input window, operand 3, single buffered']
    #allocation9 [shape = 's32[1]{0}', space=sflag, size = 0x4, scoped, tag = 'scoped memory for tpu_custom_call.1']
    #allocation10 [shape = 'u8[65536]{0}', space=vmem, size = 0x10000, scoped, tag = 'input window, operand 6, single buffered']
    #allocation11 [shape = 'u8[4096]{0}', space=vmem, size = 0x1000, scoped, tag = 'output window, operand 0, single buffered']
    %14 = vsyncpa [#allocation3], 0
    %15 = vsyncpa [#allocation6], 0
    %16 = vsyncpa [#allocation9], 0
    %17 = vsyncpa [#allocation4], 0
    // Predicated region
    $region2: #{tpu_custom_call.1} parent=1 // pred_check
      _
    $region3: #{tpu_custom_call.1} parent=1 // pred_check_branch
      %19 = sbr.rel (0) target = $region5
    $region4: #{tpu_custom_call.1} parent=1 // pred_region
      %s21 = ssub.s32 128, 128
      %22 = vsyncadd [#allocation3], %s21
      %s24 = sshll.u32 [#allocation2], 4
      %s25 = int_to_ptr.vmem [resolvable:$true] %s24
      %27 = dma.hbm_to_vmem [thread:$0]  %s0, 128, %s25, [#allocation3]
    $region5: #{tpu_custom_call.1} parent=1 // pred_fallthru
      _
    // Predicated region
    $region6: #{tpu_custom_call.1} parent=1 // pred_check
      _
    $region7: #{tpu_custom_call.1} parent=1 // pred_check_branch
      %29 = sbr.rel (0) target = $region9
    $region8: #{tpu_custom_call.1} parent=1 // pred_region
      %s31 = ssub.s32 1024, 1024
      %32 = vsyncadd [#allocation6], %s31
      %s33 = sshll.u32 [#allocation5], 4
      %s34 = int_to_ptr.vmem [resolvable:$true] %s33
      %39 = dma.hbm_to_vmem [thread:$0]  %s1, 1024, %s34, [#allocation6], 512, 512, 32
    $region9: #{tpu_custom_call.1} parent=1 // pred_fallthru
      _
    // Predicated region
    $region10: #{tpu_custom_call.1} parent=1 // pred_check
      _
    $region11: #{tpu_custom_call.1} parent=1 // pred_check_branch
      %41 = sbr.rel (0) target = $region13
    $region12: #{tpu_custom_call.1} parent=1 // pred_region
      %s43 = ssub.s32 128, 128
      %44 = vsyncadd [#allocation6], %s43
      %s46 = sshll.u32 [#allocation7], 4
      %s47 = int_to_ptr.vmem [resolvable:$true] %s46
      %49 = dma.hbm_to_vmem [thread:$0]  %s2, 128, %s47, [#allocation6]
    $region13: #{tpu_custom_call.1} parent=1 // pred_fallthru
      _
    // Predicated region
    $region14: #{tpu_custom_call.1} parent=1 // pred_check
      _
    $region15: #{tpu_custom_call.1} parent=1 // pred_check_branch
      %51 = sbr.rel (0) target = $region17
    $region16: #{tpu_custom_call.1} parent=1 // pred_region
      %s53 = ssub.s32 16384, 16384
      %54 = vsyncadd [#allocation9], %s53
      %s55 = sshll.u32 [#allocation8], 4
      %s56 = int_to_ptr.vmem [resolvable:$true] %s55
      %61 = dma.hbm_to_vmem [thread:$0]  %s3, 16384, %s56, [#allocation9], 512, 512, 32
    $region17: #{tpu_custom_call.1} parent=1 // pred_fallthru
      _
    // Predicated region
    $region18: #{tpu_custom_call.1} parent=1 // pred_check
      _
    $region19: #{tpu_custom_call.1} parent=1 // pred_check_branch
      %63 = sbr.rel (0) target = $region21
    $region20: #{tpu_custom_call.1} parent=1 // pred_region
      _
    $region21: #{tpu_custom_call.1} parent=1 // pred_fallthru
      _
    // Predicated region
    $region22: #{tpu_custom_call.1} parent=1 // pred_check
      _
    $region23: #{tpu_custom_call.1} parent=1 // pred_check_branch
      %65 = sbr.rel (0) target = $region25
    $region24: #{tpu_custom_call.1} parent=1 // pred_region
      _
    $region25: #{tpu_custom_call.1} parent=1 // pred_fallthru
      _
    // Predicated region
    $region26: #{tpu_custom_call.1} parent=1 // pred_check
      _
    $region27: #{tpu_custom_call.1} parent=1 // pred_check_branch
      %67 = sbr.rel (0) target = $region29
    $region28: #{tpu_custom_call.1} parent=1 // pred_region
      %s69 = ssub.s32 2048, 2048
      %70 = vsyncadd [#allocation9], %s69
      %s71 = sshll.u32 [#allocation10], 4
      %s72 = int_to_ptr.vmem [resolvable:$true] %s71
      %77 = dma.hbm_to_vmem [thread:$0]  %s6, 2048, %s72, [#allocation9], 128, 128, 8
    $region29: #{tpu_custom_call.1} parent=1 // pred_fallthru
      _
    // Predicated region
    $region30: #{tpu_custom_call.1} parent=1 // pred_check
      _
    $region31: #{tpu_custom_call.1} parent=1 // pred_check_branch
      %79 = sbr.rel (0) target = $region33
    $region32: #{tpu_custom_call.1} parent=1 // pred_region
      _
    $region33: #{tpu_custom_call.1} parent=1 // pred_fallthru
      _
    // Predicated region
    $region34: #{tpu_custom_call.1} parent=1 // pred_check
      _
    $region35: #{tpu_custom_call.1} parent=1 // pred_check_branch
      %81 = sbr.rel (0) target = $region37
    $region36: #{tpu_custom_call.1} parent=1 // pred_region
      _
    $region37: #{tpu_custom_call.1} parent=1 // pred_fallthru
      _
    // Predicated region
    $region38: #{tpu_custom_call.1} parent=1 // pred_check
      _
    $region39: #{tpu_custom_call.1} parent=1 // pred_check_branch
      %83 = sbr.rel (0) target = $region41
    $region40: #{tpu_custom_call.1} parent=1 // pred_region
      %84 = dma.done [#allocation3], 128
    $region41: #{tpu_custom_call.1} parent=1 // pred_fallthru
      _
    // Predicated region
    $region42: #{tpu_custom_call.1} parent=1 // pred_check
      _
    $region43: #{tpu_custom_call.1} parent=1 // pred_check_branch
      %86 = sbr.rel (0) target = $region45
    $region44: #{tpu_custom_call.1} parent=1 // pred_region
      %87 = dma.done [#allocation6], 1024
    $region45: #{tpu_custom_call.1} parent=1 // pred_fallthru
      _
    // Predicated region
    $region46: #{tpu_custom_call.1} parent=1 // pred_check
      _
    $region47: #{tpu_custom_call.1} parent=1 // pred_check_branch
      %89 = sbr.rel (0) target = $region49
    $region48: #{tpu_custom_call.1} parent=1 // pred_region
      %90 = dma.done [#allocation6], 128
    $region49: #{tpu_custom_call.1} parent=1 // pred_fallthru
      _
    // Predicated region
    $region50: #{tpu_custom_call.1} parent=1 // pred_check
      _
    $region51: #{tpu_custom_call.1} parent=1 // pred_check_branch
      %92 = sbr.rel (0) target = $region53
    $region52: #{tpu_custom_call.1} parent=1 // pred_region
      %93 = dma.done [#allocation9], 16384
    $region53: #{tpu_custom_call.1} parent=1 // pred_fallthru
      _
    // Predicated region
    $region54: #{tpu_custom_call.1} parent=1 // pred_check
      _
    $region55: #{tpu_custom_call.1} parent=1 // pred_check_branch
      %95 = sbr.rel (0) target = $region57
    $region56: #{tpu_custom_call.1} parent=1 // pred_region
      %96 = dma.done [#allocation9], 2048
    $region57: #{tpu_custom_call.1} parent=1 // pred_fallthru
      _
    %v98 = vld [vmem:[#allocation2] sm:$0xff]
    %v99 = vpack.c.bf16 %v98, %v98
    %v100 = vld [vmem:[#allocation5] sm:$0xff]
    %v101 = vld [vmem:[#allocation5 + $0x8] sm:$0xff]
    %v102 = vld [vmem:[#allocation5 + $0x10] sm:$0xff]
    %v103 = vld [vmem:[#allocation5 + $0x18] sm:$0xff]
    %v104 = vld [vmem:[#allocation5 + $0x20] sm:$0xff]
    %v105 = vld [vmem:[#allocation5 + $0x28] sm:$0xff]
    %v106 = vld [vmem:[#allocation5 + $0x30] sm:$0xff]
    %v107 = vld [vmem:[#allocation5 + $0x38] sm:$0xff]
    %v108 = vld [vmem:[#allocation7] sm:$0xff]
    %v110 = vlaneseq
    %v111 = vshrl.u32 %v110, 7
    %v112 = vsub.s32 0, %v111
    %v113 = vrot.slane %v108, %v112
    %v114 = vlaneseq
    %v115 = vshrl.u32 %v114, 7
    %v116 = vsub.s32 1, %v115
    %v117 = vrot.slane %v108, %v116
    %v118 = vlaneseq
    %v119 = vshrl.u32 %v118, 7
    %v120 = vsub.s32 2, %v119
    %v121 = vrot.slane %v108, %v120
    %v122 = vlaneseq
    %v123 = vshrl.u32 %v122, 7
    %v124 = vsub.s32 3, %v123
    %v125 = vrot.slane %v108, %v124
    %v126 = vlaneseq
    %v127 = vshrl.u32 %v126, 7
    %v128 = vsub.s32 4, %v127
    %v129 = vrot.slane %v108, %v128
    %v130 = vlaneseq
    %v131 = vshrl.u32 %v130, 7
    %v132 = vsub.s32 5, %v131
    %v133 = vrot.slane %v108, %v132
    %v134 = vlaneseq
    %v135 = vshrl.u32 %v134, 7
    %v136 = vsub.s32 6, %v135
    %v137 = vrot.slane %v108, %v136
    %v138 = vlaneseq
    %v139 = vshrl.u32 %v138, 7
    %v140 = vsub.s32 7, %v139
    %v141 = vrot.slane %v108, %v140
    %v158 = vunpack.c.l.b16 %v100
    %v159 = vunpack.c.h.b16 %v100
    %v160 = vunpack.c.l.b16 %v101
    %v161 = vunpack.c.h.b16 %v101
    %v162 = vunpack.c.l.b16 %v102
    %v163 = vunpack.c.h.b16 %v102
    %v164 = vunpack.c.l.b16 %v103
    %v165 = vunpack.c.h.b16 %v103
    %v166 = vunpack.c.l.b16 %v104
    %v167 = vunpack.c.h.b16 %v104
    %v168 = vunpack.c.l.b16 %v105
    %v169 = vunpack.c.h.b16 %v105
    %v170 = vunpack.c.l.b16 %v106
    %v171 = vunpack.c.h.b16 %v106
    %v172 = vunpack.c.l.b16 %v107
    %v173 = vunpack.c.h.b16 %v107
    %v174 = vpack.c.b16 %v166, %v158
    %v175 = vpack.c.b16 %v167, %v159
    %v176 = vpack.c.b16 %v168, %v160
    %v177 = vpack.c.b16 %v169, %v161
    %v178 = vpack.c.b16 %v170, %v162
    %v179 = vpack.c.b16 %v171, %v163
    %v180 = vpack.c.b16 %v172, %v164
    %v181 = vpack.c.b16 %v173, %v165
    %vm190 = vcmask 130048
    %v192 = vsel %vm190, %v99, 0
    %194 = vmatprep.subr.bf16.mxu0 %v175
    %195 = vmatpush1.bf16.msra.mxu0 %v174
    %196 = vmatprep.subr.bf16.mxu0 0
    %197 = vmatpush1.bf16.msra.mxu0 0
    %198 = vmatprep.subr.bf16.mxu0 0
    %199 = vmatpush1.bf16.msra.mxu0 0
    %200 = vmatprep.subr.bf16.mxu0 0
    %201 = vmatpush1.bf16.msra.mxu0 0
    %202 = vmatprep.subr.bf16.mxu0 0
    %203 = vmatpush1.bf16.msra.mxu0 0
    %204 = vmatprep.subr.bf16.mxu0 0
    %205 = vmatpush1.bf16.msra.mxu0 0
    %206 = vmatprep.subr.bf16.mxu0 0
    %207 = vmatpush1.bf16.msra.mxu0 0
    %208 = vmatprep.subr.bf16.mxu0 0
    %209 = vmatpush1.bf16.msra.mxu0 0
    %210 = vmatprep.subr.bf16.mxu0 0
    %211 = vmatpush1.bf16.msra.mxu0 0
    %212 = vmatprep.subr.bf16.mxu0 0
    %213 = vmatpush1.bf16.msra.mxu0 0
    %214 = vmatprep.subr.bf16.mxu0 0
    %215 = vmatpush1.bf16.msra.mxu0 0
    %216 = vmatprep.subr.bf16.mxu0 0
    %217 = vmatpush1.bf16.msra.mxu0 0
    %218 = vmatprep.subr.bf16.mxu0 0
    %219 = vmatpush1.bf16.msra.mxu0 0
    %220 = vmatprep.subr.bf16.mxu0 0
    %221 = vmatpush1.bf16.msra.mxu0 0
    %222 = vmatprep.subr.bf16.mxu0 0
    %223 = vmatpush1.bf16.msra.mxu0 0
    %224 = vmatprep.subr.bf16.mxu0 0
    %225 = vmatpush1.bf16.msra.mxu0 0
    %226 = vmatprep.mubr.bf16.mxu0 0
    %227 = vmatmul.mubr.bf16.gmra.mrb[0].mxu0 %v192
    %v228 = vpop.f32.mrb[0].mxu0
    %v229 = vadd.f32 %v113, %v228
    %v230 = vpop.f32.mrb[0].mxu0
    %v231 = vadd.f32 %v117, %v230
    %v232 = vpop.f32.mrb[0].mxu0
    %v233 = vpop.f32.mrb[0].mxu0
    %234 = vdwg.mxu0
    %235 = vmatprep.subr.bf16.mxu0 %v177
    %236 = vmatpush1.bf16.msra.mxu0 %v176
    %237 = vmatprep.subr.bf16.mxu0 0
    %238 = vmatpush1.bf16.msra.mxu0 0
    %239 = vmatprep.subr.bf16.mxu0 0
    %240 = vmatpush1.bf16.msra.mxu0 0
    %241 = vmatprep.subr.bf16.mxu0 0
    %242 = vmatpush1.bf16.msra.mxu0 0
    %243 = vmatprep.subr.bf16.mxu0 0
    %244 = vmatpush1.bf16.msra.mxu0 0
    %245 = vmatprep.subr.bf16.mxu0 0
    %246 = vmatpush1.bf16.msra.mxu0 0
    %247 = vmatprep.subr.bf16.mxu0 0
    %248 = vmatpush1.bf16.msra.mxu0 0
    %249 = vmatprep.subr.bf16.mxu0 0
    %250 = vmatpush1.bf16.msra.mxu0 0
    %251 = vmatprep.subr.bf16.mxu0 0
    %252 = vmatpush1.bf16.msra.mxu0 0
    %253 = vmatprep.subr.bf16.mxu0 0
    %254 = vmatpush1.bf16.msra.mxu0 0
    %255 = vmatprep.subr.bf16.mxu0 0
    %256 = vmatpush1.bf16.msra.mxu0 0
    %257 = vmatprep.subr.bf16.mxu0 0
    %258 = vmatpush1.bf16.msra.mxu0 0
    %259 = vmatprep.subr.bf16.mxu0 0
    %260 = vmatpush1.bf16.msra.mxu0 0
    %261 = vmatprep.subr.bf16.mxu0 0
    %262 = vmatpush1.bf16.msra.mxu0 0
    %263 = vmatprep.subr.bf16.mxu0 0
    %264 = vmatpush1.bf16.msra.mxu0 0
    %265 = vmatprep.subr.bf16.mxu0 0
    %266 = vmatpush1.bf16.msra.mxu0 0
    %267 = vmatprep.mubr.bf16.mxu0 0
    %268 = vmatmul.mubr.bf16.gmra.mrb[0].mxu0 %v192
    %v269 = vpop.f32.mrb[0].mxu0
    %v270 = vadd.f32 %v121, %v269
    %v271 = vpop.f32.mrb[0].mxu0
    %v272 = vadd.f32 %v125, %v271
    %v273 = vpop.f32.mrb[0].mxu0
    %v274 = vpop.f32.mrb[0].mxu0
    %275 = vdwg.mxu0
    %276 = vmatprep.subr.bf16.mxu0 %v179
    %277 = vmatpush1.bf16.msra.mxu0 %v178
    %278 = vmatprep.subr.bf16.mxu0 0
    %279 = vmatpush1.bf16.msra.mxu0 0
    %280 = vmatprep.subr.bf16.mxu0 0
    %281 = vmatpush1.bf16.msra.mxu0 0
    %282 = vmatprep.subr.bf16.mxu0 0
    %283 = vmatpush1.bf16.msra.mxu0 0
    %284 = vmatprep.subr.bf16.mxu0 0
    %285 = vmatpush1.bf16.msra.mxu0 0
    %286 = vmatprep.subr.bf16.mxu0 0
    %287 = vmatpush1.bf16.msra.mxu0 0
    %288 = vmatprep.subr.bf16.mxu0 0
    %289 = vmatpush1.bf16.msra.mxu0 0
    %290 = vmatprep.subr.bf16.mxu0 0
    %291 = vmatpush1.bf16.msra.mxu0 0
    %292 = vmatprep.subr.bf16.mxu0 0
    %293 = vmatpush1.bf16.msra.mxu0 0
    %294 = vmatprep.subr.bf16.mxu0 0
    %295 = vmatpush1.bf16.msra.mxu0 0
    %296 = vmatprep.subr.bf16.mxu0 0
    %297 = vmatpush1.bf16.msra.mxu0 0
    %298 = vmatprep.subr.bf16.mxu0 0
    %299 = vmatpush1.bf16.msra.mxu0 0
    %300 = vmatprep.subr.bf16.mxu0 0
    %301 = vmatpush1.bf16.msra.mxu0 0
    %302 = vmatprep.subr.bf16.mxu0 0
    %303 = vmatpush1.bf16.msra.mxu0 0
    %304 = vmatprep.subr.bf16.mxu0 0
    %305 = vmatpush1.bf16.msra.mxu0 0
    %306 = vmatprep.subr.bf16.mxu0 0
    %307 = vmatpush1.bf16.msra.mxu0 0
    %308 = vmatprep.mubr.bf16.mxu0 0
    %309 = vmatmul.mubr.bf16.gmra.mrb[0].mxu0 %v192
    %v310 = vpop.f32.mrb[0].mxu0
    %v311 = vadd.f32 %v129, %v310
    %v312 = vpop.f32.mrb[0].mxu0
    %v313 = vadd.f32 %v133, %v312
    %v314 = vpop.f32.mrb[0].mxu0
    %v315 = vpop.f32.mrb[0].mxu0
    %316 = vdwg.mxu0
    %317 = vmatprep.subr.bf16.mxu0 %v181
    %318 = vmatpush1.bf16.msra.mxu0 %v180
    %319 = vmatprep.subr.bf16.mxu0 0
    %320 = vmatpush1.bf16.msra.mxu0 0
    %321 = vmatprep.subr.bf16.mxu0 0
    %322 = vmatpush1.bf16.msra.mxu0 0
    %323 = vmatprep.subr.bf16.mxu0 0
    %324 = vmatpush1.bf16.msra.mxu0 0
    %325 = vmatprep.subr.bf16.mxu0 0
    %326 = vmatpush1.bf16.msra.mxu0 0
    %327 = vmatprep.subr.bf16.mxu0 0
    %328 = vmatpush1.bf16.msra.mxu0 0
    %329 = vmatprep.subr.bf16.mxu0 0
    %330 = vmatpush1.bf16.msra.mxu0 0
    %331 = vmatprep.subr.bf16.mxu0 0
    %332 = vmatpush1.bf16.msra.mxu0 0
    %333 = vmatprep.subr.bf16.mxu0 0
    %334 = vmatpush1.bf16.msra.mxu0 0
    %335 = vmatprep.subr.bf16.mxu0 0
    %336 = vmatpush1.bf16.msra.mxu0 0
    %337 = vmatprep.subr.bf16.mxu0 0
    %338 = vmatpush1.bf16.msra.mxu0 0
    %339 = vmatprep.subr.bf16.mxu0 0
    %340 = vmatpush1.bf16.msra.mxu0 0
    %341 = vmatprep.subr.bf16.mxu0 0
    %342 = vmatpush1.bf16.msra.mxu0 0
    %343 = vmatprep.subr.bf16.mxu0 0
    %344 = vmatpush1.bf16.msra.mxu0 0
    %345 = vmatprep.subr.bf16.mxu0 0
    %346 = vmatpush1.bf16.msra.mxu0 0
    %347 = vmatprep.subr.bf16.mxu0 0
    %348 = vmatpush1.bf16.msra.mxu0 0
    %349 = vmatprep.mubr.bf16.mxu0 0
    %350 = vmatmul.mubr.bf16.gmra.mrb[0].mxu0 %v192
    %v351 = vpop.f32.mrb[0].mxu0
    %v352 = vadd.f32 %v137, %v351
    %v353 = vpop.f32.mrb[0].mxu0
    %v354 = vadd.f32 %v141, %v353
    %v355 = vpop.f32.mrb[0].mxu0
    %v356 = vpop.f32.mrb[0].mxu0
    %357 = vdwg.mxu0
    %v358 = vmax.f32 %v229, 0.0
    %v359 = vmax.f32 %v231, 0.0
    %v360 = vmax.f32 %v270, 0.0
    %v361 = vmax.f32 %v272, 0.0
    %v362 = vmax.f32 %v311, 0.0
    %v363 = vmax.f32 %v313, 0.0
    %v364 = vmax.f32 %v352, 0.0
    %v365 = vmax.f32 %v354, 0.0
    %v366 = vpack.c.bf16 %v358, %v358
    %v367 = vpack.c.bf16 %v359, %v359
    %v368 = vpack.c.bf16 %v360, %v360
    %v369 = vpack.c.bf16 %v361, %v361
    %v370 = vpack.c.bf16 %v362, %v362
    %v371 = vpack.c.bf16 %v363, %v363
    %v372 = vpack.c.bf16 %v364, %v364
    %v373 = vpack.c.bf16 %v365, %v365
    %v374 = vld [vmem:[#allocation8] sm:$0xff]
    %v375 = vld [vmem:[#allocation8 + $0x8] sm:$0xff]
    %v376 = vld [vmem:[#allocation8 + $0x10] sm:$0xff]
    %v377 = vld [vmem:[#allocation8 + $0x18] sm:$0xff]
    %v378 = vld [vmem:[#allocation8 + $0x20] sm:$0xff]
    %v379 = vld [vmem:[#allocation8 + $0x28] sm:$0xff]
    %v380 = vld [vmem:[#allocation8 + $0x30] sm:$0xff]
    %v381 = vld [vmem:[#allocation8 + $0x38] sm:$0xff]
    %v382 = vld [vmem:[#allocation8 + $0x40] sm:$0xff]
    %v383 = vld [vmem:[#allocation8 + $0x48] sm:$0xff]
    %v384 = vld [vmem:[#allocation8 + $0x50] sm:$0xff]
    %v385 = vld [vmem:[#allocation8 + $0x58] sm:$0xff]
    %v386 = vld [vmem:[#allocation8 + $0x60] sm:$0xff]
    %v387 = vld [vmem:[#allocation8 + $0x68] sm:$0xff]
    %v388 = vld [vmem:[#allocation8 + $0x70] sm:$0xff]
    %v389 = vld [vmem:[#allocation8 + $0x78] sm:$0xff]
    %v390 = vld [vmem:[#allocation8 + $0x80] sm:$0xff]
    %v391 = vld [vmem:[#allocation8 + $0x88] sm:$0xff]
    %v392 = vld [vmem:[#allocation8 + $0x90] sm:$0xff]
    %v393 = vld [vmem:[#allocation8 + $0x98] sm:$0xff]
    %v394 = vld [vmem:[#allocation8 + $0xa0] sm:$0xff]
    %v395 = vld [vmem:[#allocation8 + $0xa8] sm:$0xff]
    %v396 = vld [vmem:[#allocation8 + $0xb0] sm:$0xff]
    %v397 = vld [vmem:[#allocation8 + $0xb8] sm:$0xff]
    %v398 = vld [vmem:[#allocation8 + $0xc0] sm:$0xff]
    %v399 = vld [vmem:[#allocation8 + $0xc8] sm:$0xff]
    %v400 = vld [vmem:[#allocation8 + $0xd0] sm:$0xff]
    %v401 = vld [vmem:[#allocation8 + $0xd8] sm:$0xff]
    %v402 = vld [vmem:[#allocation8 + $0xe0] sm:$0xff]
    %v403 = vld [vmem:[#allocation8 + $0xe8] sm:$0xff]
    %v404 = vld [vmem:[#allocation8 + $0xf0] sm:$0xff]
    %v405 = vld [vmem:[#allocation8 + $0xf8] sm:$0xff]
    %v406 = vld [vmem:[#allocation8 + $0x100] sm:$0xff]
    %v407 = vld [vmem:[#allocation8 + $0x108] sm:$0xff]
    %v408 = vld [vmem:[#allocation8 + $0x110] sm:$0xff]
    %v409 = vld [vmem:[#allocation8 + $0x118] sm:$0xff]
    %v410 = vld [vmem:[#allocation8 + $0x120] sm:$0xff]
    %v411 = vld [vmem:[#allocation8 + $0x128] sm:$0xff]
    %v412 = vld [vmem:[#allocation8 + $0x130] sm:$0xff]
    %v413 = vld [vmem:[#allocation8 + $0x138] sm:$0xff]
    %v414 = vld [vmem:[#allocation8 + $0x140] sm:$0xff]
    %v415 = vld [vmem:[#allocation8 + $0x148] sm:$0xff]
    %v416 = vld [vmem:[#allocation8 + $0x150] sm:$0xff]
    %v417 = vld [vmem:[#allocation8 + $0x158] sm:$0xff]
    %v418 = vld [vmem:[#allocation8 + $0x160] sm:$0xff]
    %v419 = vld [vmem:[#allocation8 + $0x168] sm:$0xff]
    %v420 = vld [vmem:[#allocation8 + $0x170] sm:$0xff]
    %v421 = vld [vmem:[#allocation8 + $0x178] sm:$0xff]
    %v422 = vld [vmem:[#allocation8 + $0x180] sm:$0xff]
    %v423 = vld [vmem:[#allocation8 + $0x188] sm:$0xff]
    %v424 = vld [vmem:[#allocation8 + $0x190] sm:$0xff]
    %v425 = vld [vmem:[#allocation8 + $0x198] sm:$0xff]
    %v426 = vld [vmem:[#allocation8 + $0x1a0] sm:$0xff]
    %v427 = vld [vmem:[#allocation8 + $0x1a8] sm:$0xff]
    %v428 = vld [vmem:[#allocation8 + $0x1b0] sm:$0xff]
    %v429 = vld [vmem:[#allocation8 + $0x1b8] sm:$0xff]
    %v430 = vld [vmem:[#allocation8 + $0x1c0] sm:$0xff]
    %v431 = vld [vmem:[#allocation8 + $0x1c8] sm:$0xff]
    %v432 = vld [vmem:[#allocation8 + $0x1d0] sm:$0xff]
    %v433 = vld [vmem:[#allocation8 + $0x1d8] sm:$0xff]
    %v434 = vld [vmem:[#allocation8 + $0x1e0] sm:$0xff]
    %v435 = vld [vmem:[#allocation8 + $0x1e8] sm:$0xff]
    %v436 = vld [vmem:[#allocation8 + $0x1f0] sm:$0xff]
    %v437 = vld [vmem:[#allocation8 + $0x1f8] sm:$0xff]
    %v438 = vld [vmem:[#allocation8 + $0x200] sm:$0xff]
    %v439 = vld [vmem:[#allocation8 + $0x208] sm:$0xff]
    %v440 = vld [vmem:[#allocation8 + $0x210] sm:$0xff]
    %v441 = vld [vmem:[#allocation8 + $0x218] sm:$0xff]
    %v442 = vld [vmem:[#allocation8 + $0x220] sm:$0xff]
    %v443 = vld [vmem:[#allocation8 + $0x228] sm:$0xff]
    %v444 = vld [vmem:[#allocation8 + $0x230] sm:$0xff]
    %v445 = vld [vmem:[#allocation8 + $0x238] sm:$0xff]
    %v446 = vld [vmem:[#allocation8 + $0x240] sm:$0xff]
    %v447 = vld [vmem:[#allocation8 + $0x248] sm:$0xff]
    %v448 = vld [vmem:[#allocation8 + $0x250] sm:$0xff]
    %v449 = vld [vmem:[#allocation8 + $0x258] sm:$0xff]
    %v450 = vld [vmem:[#allocation8 + $0x260] sm:$0xff]
    %v451 = vld [vmem:[#allocation8 + $0x268] sm:$0xff]
    %v452 = vld [vmem:[#allocation8 + $0x270] sm:$0xff]
    %v453 = vld [vmem:[#allocation8 + $0x278] sm:$0xff]
    %v454 = vld [vmem:[#allocation8 + $0x280] sm:$0xff]
    %v455 = vld [vmem:[#allocation8 + $0x288] sm:$0xff]
    %v456 = vld [vmem:[#allocation8 + $0x290] sm:$0xff]
    %v457 = vld [vmem:[#allocation8 + $0x298] sm:$0xff]
    %v458 = vld [vmem:[#allocation8 + $0x2a0] sm:$0xff]
    %v459 = vld [vmem:[#allocation8 + $0x2a8] sm:$0xff]
    %v460 = vld [vmem:[#allocation8 + $0x2b0] sm:$0xff]
    %v461 = vld [vmem:[#allocation8 + $0x2b8] sm:$0xff]
    %v462 = vld [vmem:[#allocation8 + $0x2c0] sm:$0xff]
    %v463 = vld [vmem:[#allocation8 + $0x2c8] sm:$0xff]
    %v464 = vld [vmem:[#allocation8 + $0x2d0] sm:$0xff]
    %v465 = vld [vmem:[#allocation8 + $0x2d8] sm:$0xff]
    %v466 = vld [vmem:[#allocation8 + $0x2e0] sm:$0xff]
    %v467 = vld [vmem:[#allocation8 + $0x2e8] sm:$0xff]
    %v468 = vld [vmem:[#allocation8 + $0x2f0] sm:$0xff]
    %v469 = vld [vmem:[#allocation8 + $0x2f8] sm:$0xff]
    %v470 = vld [vmem:[#allocation8 + $0x300] sm:$0xff]
    %v471 = vld [vmem:[#allocation8 + $0x308] sm:$0xff]
    %v472 = vld [vmem:[#allocation8 + $0x310] sm:$0xff]
    %v473 = vld [vmem:[#allocation8 + $0x318] sm:$0xff]
    %v474 = vld [vmem:[#allocation8 + $0x320] sm:$0xff]
    %v475 = vld [vmem:[#allocation8 + $0x328] sm:$0xff]
    %v476 = vld [vmem:[#allocation8 + $0x330] sm:$0xff]
    %v477 = vld [vmem:[#allocation8 + $0x338] sm:$0xff]
    %v478 = vld [vmem:[#allocation8 + $0x340] sm:$0xff]
    %v479 = vld [vmem:[#allocation8 + $0x348] sm:$0xff]
    %v480 = vld [vmem:[#allocation8 + $0x350] sm:$0xff]
    %v481 = vld [vmem:[#allocation8 + $0x358] sm:$0xff]
    %v482 = vld [vmem:[#allocation8 + $0x360] sm:$0xff]
    %v483 = vld [vmem:[#allocation8 + $0x368] sm:$0xff]
    %v484 = vld [vmem:[#allocation8 + $0x370] sm:$0xff]
    %v485 = vld [vmem:[#allocation8 + $0x378] sm:$0xff]
    %v486 = vld [vmem:[#allocation8 + $0x380] sm:$0xff]
    %v487 = vld [vmem:[#allocation8 + $0x388] sm:$0xff]
    %v488 = vld [vmem:[#allocation8 + $0x390] sm:$0xff]
    %v489 = vld [vmem:[#allocation8 + $0x398] sm:$0xff]
    %v490 = vld [vmem:[#allocation8 + $0x3a0] sm:$0xff]
    %v491 = vld [vmem:[#allocation8 + $0x3a8] sm:$0xff]
    %v492 = vld [vmem:[#allocation8 + $0x3b0] sm:$0xff]
    %v493 = vld [vmem:[#allocation8 + $0x3b8] sm:$0xff]
    %v494 = vld [vmem:[#allocation8 + $0x3c0] sm:$0xff]
    %v495 = vld [vmem:[#allocation8 + $0x3c8] sm:$0xff]
    %v496 = vld [vmem:[#allocation8 + $0x3d0] sm:$0xff]
    %v497 = vld [vmem:[#allocation8 + $0x3d8] sm:$0xff]
    %v498 = vld [vmem:[#allocation8 + $0x3e0] sm:$0xff]
    %v499 = vld [vmem:[#allocation8 + $0x3e8] sm:$0xff]
    %v500 = vld [vmem:[#allocation8 + $0x3f0] sm:$0xff]
    %v501 = vld [vmem:[#allocation8 + $0x3f8] sm:$0xff]
    %v502 = vunpack.c.l.s8.bf16 %v374
    %v503 = vunpack.c.l.s8.bf16 %v375
    %v504 = vunpack.c.l.s8.bf16 %v376
    %v505 = vunpack.c.l.s8.bf16 %v377
    %v506 = vunpack.c.h.s8.bf16 %v374
    %v507 = vunpack.c.h.s8.bf16 %v375
    %v508 = vunpack.c.h.s8.bf16 %v376
    %v509 = vunpack.c.h.s8.bf16 %v377
    %v510 = vunpack.c.l.s8.bf16 %v378
    %v511 = vunpack.c.l.s8.bf16 %v379
    %v512 = vunpack.c.l.s8.bf16 %v380
    %v513 = vunpack.c.l.s8.bf16 %v381
    %v514 = vunpack.c.h.s8.bf16 %v378
    %v515 = vunpack.c.h.s8.bf16 %v379
    %v516 = vunpack.c.h.s8.bf16 %v380
    %v517 = vunpack.c.h.s8.bf16 %v381
    %v518 = vunpack.c.l.s8.bf16 %v382
    %v519 = vunpack.c.l.s8.bf16 %v383
    %v520 = vunpack.c.l.s8.bf16 %v384
    %v521 = vunpack.c.l.s8.bf16 %v385
    %v522 = vunpack.c.h.s8.bf16 %v382
    %v523 = vunpack.c.h.s8.bf16 %v383
    %v524 = vunpack.c.h.s8.bf16 %v384
    %v525 = vunpack.c.h.s8.bf16 %v385
    %v526 = vunpack.c.l.s8.bf16 %v386
    %v527 = vunpack.c.l.s8.bf16 %v387
    %v528 = vunpack.c.l.s8.bf16 %v388
    %v529 = vunpack.c.l.s8.bf16 %v389
    %v530 = vunpack.c.h.s8.bf16 %v386
    %v531 = vunpack.c.h.s8.bf16 %v387
    %v532 = vunpack.c.h.s8.bf16 %v388
    %v533 = vunpack.c.h.s8.bf16 %v389
    %v534 = vunpack.c.l.s8.bf16 %v390
    %v535 = vunpack.c.l.s8.bf16 %v391
    %v536 = vunpack.c.l.s8.bf16 %v392
    %v537 = vunpack.c.l.s8.bf16 %v393
    %v538 = vunpack.c.h.s8.bf16 %v390
    %v539 = vunpack.c.h.s8.bf16 %v391
    %v540 = vunpack.c.h.s8.bf16 %v392
    %v541 = vunpack.c.h.s8.bf16 %v393
    %v542 = vunpack.c.l.s8.bf16 %v394
    %v543 = vunpack.c.l.s8.bf16 %v395
    %v544 = vunpack.c.l.s8.bf16 %v396
    %v545 = vunpack.c.l.s8.bf16 %v397
    %v546 = vunpack.c.h.s8.bf16 %v394
    %v547 = vunpack.c.h.s8.bf16 %v395
    %v548 = vunpack.c.h.s8.bf16 %v396
    %v549 = vunpack.c.h.s8.bf16 %v397
    %v550 = vunpack.c.l.s8.bf16 %v398
    %v551 = vunpack.c.l.s8.bf16 %v399
    %v552 = vunpack.c.l.s8.bf16 %v400
    %v553 = vunpack.c.l.s8.bf16 %v401
    %v554 = vunpack.c.h.s8.bf16 %v398
    %v555 = vunpack.c.h.s8.bf16 %v399
    %v556 = vunpack.c.h.s8.bf16 %v400
    %v557 = vunpack.c.h.s8.bf16 %v401
    %v558 = vunpack.c.l.s8.bf16 %v402
    %v559 = vunpack.c.l.s8.bf16 %v403
    %v560 = vunpack.c.l.s8.bf16 %v404
    %v561 = vunpack.c.l.s8.bf16 %v405
    %v562 = vunpack.c.h.s8.bf16 %v402
    %v563 = vunpack.c.h.s8.bf16 %v403
    %v564 = vunpack.c.h.s8.bf16 %v404
    %v565 = vunpack.c.h.s8.bf16 %v405
    %v566 = vunpack.c.l.s8.bf16 %v406
    %v567 = vunpack.c.l.s8.bf16 %v407
    %v568 = vunpack.c.l.s8.bf16 %v408
    %v569 = vunpack.c.l.s8.bf16 %v409
    %v570 = vunpack.c.h.s8.bf16 %v406
    %v571 = vunpack.c.h.s8.bf16 %v407
    %v572 = vunpack.c.h.s8.bf16 %v408
    %v573 = vunpack.c.h.s8.bf16 %v409
    %v574 = vunpack.c.l.s8.bf16 %v410
    %v575 = vunpack.c.l.s8.bf16 %v411
    %v576 = vunpack.c.l.s8.bf16 %v412
    %v577 = vunpack.c.l.s8.bf16 %v413
    %v578 = vunpack.c.h.s8.bf16 %v410
    %v579 = vunpack.c.h.s8.bf16 %v411
    %v580 = vunpack.c.h.s8.bf16 %v412
    %v581 = vunpack.c.h.s8.bf16 %v413
    %v582 = vunpack.c.l.s8.bf16 %v414
    %v583 = vunpack.c.l.s8.bf16 %v415
    %v584 = vunpack.c.l.s8.bf16 %v416
    %v585 = vunpack.c.l.s8.bf16 %v417
    %v586 = vunpack.c.h.s8.bf16 %v414
    %v587 = vunpack.c.h.s8.bf16 %v415
    %v588 = vunpack.c.h.s8.bf16 %v416
    %v589 = vunpack.c.h.s8.bf16 %v417
    %v590 = vunpack.c.l.s8.bf16 %v418
    %v591 = vunpack.c.l.s8.bf16 %v419
    %v592 = vunpack.c.l.s8.bf16 %v420
    %v593 = vunpack.c.l.s8.bf16 %v421
    %v594 = vunpack.c.h.s8.bf16 %v418
    %v595 = vunpack.c.h.s8.bf16 %v419
    %v596 = vunpack.c.h.s8.bf16 %v420
    %v597 = vunpack.c.h.s8.bf16 %v421
    %v598 = vunpack.c.l.s8.bf16 %v422
    %v599 = vunpack.c.l.s8.bf16 %v423
    %v600 = vunpack.c.l.s8.bf16 %v424
    %v601 = vunpack.c.l.s8.bf16 %v425
    %v602 = vunpack.c.h.s8.bf16 %v422
    %v603 = vunpack.c.h.s8.bf16 %v423
    %v604 = vunpack.c.h.s8.bf16 %v424
    %v605 = vunpack.c.h.s8.bf16 %v425
    %v606 = vunpack.c.l.s8.bf16 %v426
    %v607 = vunpack.c.l.s8.bf16 %v427
    %v608 = vunpack.c.l.s8.bf16 %v428
    %v609 = vunpack.c.l.s8.bf16 %v429
    %v610 = vunpack.c.h.s8.bf16 %v426
    %v611 = vunpack.c.h.s8.bf16 %v427
    %v612 = vunpack.c.h.s8.bf16 %v428
    %v613 = vunpack.c.h.s8.bf16 %v429
    %v614 = vunpack.c.l.s8.bf16 %v430
    %v615 = vunpack.c.l.s8.bf16 %v431
    %v616 = vunpack.c.l.s8.bf16 %v432
    %v617 = vunpack.c.l.s8.bf16 %v433
    %v618 = vunpack.c.h.s8.bf16 %v430
    %v619 = vunpack.c.h.s8.bf16 %v431
    %v620 = vunpack.c.h.s8.bf16 %v432
    %v621 = vunpack.c.h.s8.bf16 %v433
    %v622 = vunpack.c.l.s8.bf16 %v434
    %v623 = vunpack.c.l.s8.bf16 %v435
    %v624 = vunpack.c.l.s8.bf16 %v436
    %v625 = vunpack.c.l.s8.bf16 %v437
    %v626 = vunpack.c.h.s8.bf16 %v434
    %v627 = vunpack.c.h.s8.bf16 %v435
    %v628 = vunpack.c.h.s8.bf16 %v436
    %v629 = vunpack.c.h.s8.bf16 %v437
    %v630 = vunpack.c.l.s8.bf16 %v438
    %v631 = vunpack.c.l.s8.bf16 %v439
    %v632 = vunpack.c.l.s8.bf16 %v440
    %v633 = vunpack.c.l.s8.bf16 %v441
    %v634 = vunpack.c.h.s8.bf16 %v438
    %v635 = vunpack.c.h.s8.bf16 %v439
    %v636 = vunpack.c.h.s8.bf16 %v440
    %v637 = vunpack.c.h.s8.bf16 %v441
    %v638 = vunpack.c.l.s8.bf16 %v442
    %v639 = vunpack.c.l.s8.bf16 %v443
    %v640 = vunpack.c.l.s8.bf16 %v444
    %v641 = vunpack.c.l.s8.bf16 %v445
    %v642 = vunpack.c.h.s8.bf16 %v442
    %v643 = vunpack.c.h.s8.bf16 %v443
    %v644 = vunpack.c.h.s8.bf16 %v444
    %v645 = vunpack.c.h.s8.bf16 %v445
    %v646 = vunpack.c.l.s8.bf16 %v446
    %v647 = vunpack.c.l.s8.bf16 %v447
    %v648 = vunpack.c.l.s8.bf16 %v448
    %v649 = vunpack.c.l.s8.bf16 %v449
    %v650 = vunpack.c.h.s8.bf16 %v446
    %v651 = vunpack.c.h.s8.bf16 %v447
    %v652 = vunpack.c.h.s8.bf16 %v448
    %v653 = vunpack.c.h.s8.bf16 %v449
    %v654 = vunpack.c.l.s8.bf16 %v450
    %v655 = vunpack.c.l.s8.bf16 %v451
    %v656 = vunpack.c.l.s8.bf16 %v452
    %v657 = vunpack.c.l.s8.bf16 %v453
    %v658 = vunpack.c.h.s8.bf16 %v450
    %v659 = vunpack.c.h.s8.bf16 %v451
    %v660 = vunpack.c.h.s8.bf16 %v452
    %v661 = vunpack.c.h.s8.bf16 %v453
    %v662 = vunpack.c.l.s8.bf16 %v454
    %v663 = vunpack.c.l.s8.bf16 %v455
    %v664 = vunpack.c.l.s8.bf16 %v456
    %v665 = vunpack.c.l.s8.bf16 %v457
    %v666 = vunpack.c.h.s8.bf16 %v454
    %v667 = vunpack.c.h.s8.bf16 %v455
    %v668 = vunpack.c.h.s8.bf16 %v456
    %v669 = vunpack.c.h.s8.bf16 %v457
    %v670 = vunpack.c.l.s8.bf16 %v458
    %v671 = vunpack.c.l.s8.bf16 %v459
    %v672 = vunpack.c.l.s8.bf16 %v460
    %v673 = vunpack.c.l.s8.bf16 %v461
    %v674 = vunpack.c.h.s8.bf16 %v458
    %v675 = vunpack.c.h.s8.bf16 %v459
    %v676 = vunpack.c.h.s8.bf16 %v460
    %v677 = vunpack.c.h.s8.bf16 %v461
    %v678 = vunpack.c.l.s8.bf16 %v462
    %v679 = vunpack.c.l.s8.bf16 %v463
    %v680 = vunpack.c.l.s8.bf16 %v464
    %v681 = vunpack.c.l.s8.bf16 %v465
    %v682 = vunpack.c.h.s8.bf16 %v462
    %v683 = vunpack.c.h.s8.bf16 %v463
    %v684 = vunpack.c.h.s8.bf16 %v464
    %v685 = vunpack.c.h.s8.bf16 %v465
    %v686 = vunpack.c.l.s8.bf16 %v466
    %v687 = vunpack.c.l.s8.bf16 %v467
    %v688 = vunpack.c.l.s8.bf16 %v468
    %v689 = vunpack.c.l.s8.bf16 %v469
    %v690 = vunpack.c.h.s8.bf16 %v466
    %v691 = vunpack.c.h.s8.bf16 %v467
    %v692 = vunpack.c.h.s8.bf16 %v468
    %v693 = vunpack.c.h.s8.bf16 %v469
    %v694 = vunpack.c.l.s8.bf16 %v470
    %v695 = vunpack.c.l.s8.bf16 %v471
    %v696 = vunpack.c.l.s8.bf16 %v472
    %v697 = vunpack.c.l.s8.bf16 %v473
    %v698 = vunpack.c.h.s8.bf16 %v470
    %v699 = vunpack.c.h.s8.bf16 %v471
    %v700 = vunpack.c.h.s8.bf16 %v472
    %v701 = vunpack.c.h.s8.bf16 %v473
    %v702 = vunpack.c.l.s8.bf16 %v474
    %v703 = vunpack.c.l.s8.bf16 %v475
    %v704 = vunpack.c.l.s8.bf16 %v476
    %v705 = vunpack.c.l.s8.bf16 %v477
    %v706 = vunpack.c.h.s8.bf16 %v474
    %v707 = vunpack.c.h.s8.bf16 %v475
    %v708 = vunpack.c.h.s8.bf16 %v476
    %v709 = vunpack.c.h.s8.bf16 %v477
    %v710 = vunpack.c.l.s8.bf16 %v478
    %v711 = vunpack.c.l.s8.bf16 %v479
    %v712 = vunpack.c.l.s8.bf16 %v480
    %v713 = vunpack.c.l.s8.bf16 %v481
    %v714 = vunpack.c.h.s8.bf16 %v478
    %v715 = vunpack.c.h.s8.bf16 %v479
    %v716 = vunpack.c.h.s8.bf16 %v480
    %v717 = vunpack.c.h.s8.bf16 %v481
    %v718 = vunpack.c.l.s8.bf16 %v482
    %v719 = vunpack.c.l.s8.bf16 %v483
    %v720 = vunpack.c.l.s8.bf16 %v484
    %v721 = vunpack.c.l.s8.bf16 %v485
    %v722 = vunpack.c.h.s8.bf16 %v482
    %v723 = vunpack.c.h.s8.bf16 %v483
    %v724 = vunpack.c.h.s8.bf16 %v484
    %v725 = vunpack.c.h.s8.bf16 %v485
    %v726 = vunpack.c.l.s8.bf16 %v486
    %v727 = vunpack.c.l.s8.bf16 %v487
    %v728 = vunpack.c.l.s8.bf16 %v488
    %v729 = vunpack.c.l.s8.bf16 %v489
    %v730 = vunpack.c.h.s8.bf16 %v486
    %v731 = vunpack.c.h.s8.bf16 %v487
    %v732 = vunpack.c.h.s8.bf16 %v488
    %v733 = vunpack.c.h.s8.bf16 %v489
    %v734 = vunpack.c.l.s8.bf16 %v490
    %v735 = vunpack.c.l.s8.bf16 %v491
    %v736 = vunpack.c.l.s8.bf16 %v492
    %v737 = vunpack.c.l.s8.bf16 %v493
    %v738 = vunpack.c.h.s8.bf16 %v490
    %v739 = vunpack.c.h.s8.bf16 %v491
    %v740 = vunpack.c.h.s8.bf16 %v492
    %v741 = vunpack.c.h.s8.bf16 %v493
    %v742 = vunpack.c.l.s8.bf16 %v494
    %v743 = vunpack.c.l.s8.bf16 %v495
    %v744 = vunpack.c.l.s8.bf16 %v496
    %v745 = vunpack.c.l.s8.bf16 %v497
    %v746 = vunpack.c.h.s8.bf16 %v494
    %v747 = vunpack.c.h.s8.bf16 %v495
    %v748 = vunpack.c.h.s8.bf16 %v496
    %v749 = vunpack.c.h.s8.bf16 %v497
    %v750 = vunpack.c.l.s8.bf16 %v498
    %v751 = vunpack.c.l.s8.bf16 %v499
    %v752 = vunpack.c.l.s8.bf16 %v500
    %v753 = vunpack.c.l.s8.bf16 %v501
    %v754 = vunpack.c.h.s8.bf16 %v498
    %v755 = vunpack.c.h.s8.bf16 %v499
    %v756 = vunpack.c.h.s8.bf16 %v500
    %v757 = vunpack.c.h.s8.bf16 %v501
    %758 = vmatprep.subr.bf16.mxu0 %v503
    %759 = vmatpush1.bf16.msra.mxu0 %v502
    %760 = vmatprep.subr.bf16.mxu0 %v507
    %761 = vmatpush1.bf16.msra.mxu0 %v506
    %762 = vmatprep.subr.bf16.mxu0 %v511
    %763 = vmatpush1.bf16.msra.mxu0 %v510
    %764 = vmatprep.subr.bf16.mxu0 %v515
    %765 = vmatpush1.bf16.msra.mxu0 %v514
    %766 = vmatprep.subr.bf16.mxu0 %v519
    %767 = vmatpush1.bf16.msra.mxu0 %v518
    %768 = vmatprep.subr.bf16.mxu0 %v523
    %769 = vmatpush1.bf16.msra.mxu0 %v522
    %770 = vmatprep.subr.bf16.mxu0 %v527
    %771 = vmatpush1.bf16.msra.mxu0 %v526
    %772 = vmatprep.subr.bf16.mxu0 %v531
    %773 = vmatpush1.bf16.msra.mxu0 %v530
    %774 = vmatprep.subr.bf16.mxu0 %v535
    %775 = vmatpush1.bf16.msra.mxu0 %v534
    %776 = vmatprep.subr.bf16.mxu0 %v539
    %777 = vmatpush1.bf16.msra.mxu0 %v538
    %778 = vmatprep.subr.bf16.mxu0 %v543
    %779 = vmatpush1.bf16.msra.mxu0 %v542
    %780 = vmatprep.subr.bf16.mxu0 %v547
    %781 = vmatpush1.bf16.msra.mxu0 %v546
    %782 = vmatprep.subr.bf16.mxu0 %v551
    %783 = vmatpush1.bf16.msra.mxu0 %v550
    %784 = vmatprep.subr.bf16.mxu0 %v555
    %785 = vmatpush1.bf16.msra.mxu0 %v554
    %786 = vmatprep.subr.bf16.mxu0 %v559
    %787 = vmatpush1.bf16.msra.mxu0 %v558
    %788 = vmatprep.subr.bf16.mxu0 %v563
    %789 = vmatpush1.bf16.msra.mxu0 %v562
    %790 = vmatprep.mubr.bf16.mxu0 %v367
    %791 = vmatmul.mubr.bf16.gmra.mrb[0].mxu0 %v366
    %v792 = vpop.f32.mrb[0].mxu0
    %v793 = vadd.f32 0.0, %v792
    %v794 = vpop.f32.mrb[0].mxu0
    %v795 = vadd.f32 0.0, %v794
    %v796 = vpop.f32.mrb[0].mxu0
    %v797 = vpop.f32.mrb[0].mxu0
    %798 = vdwg.mxu0
    %799 = vmatprep.subr.bf16.mxu0 %v567
    %800 = vmatpush1.bf16.msra.mxu0 %v566
    %801 = vmatprep.subr.bf16.mxu0 %v571
    %802 = vmatpush1.bf16.msra.mxu0 %v570
    %803 = vmatprep.subr.bf16.mxu0 %v575
    %804 = vmatpush1.bf16.msra.mxu0 %v574
    %805 = vmatprep.subr.bf16.mxu0 %v579
    %806 = vmatpush1.bf16.msra.mxu0 %v578
    %807 = vmatprep.subr.bf16.mxu0 %v583
    %808 = vmatpush1.bf16.msra.mxu0 %v582
    %809 = vmatprep.subr.bf16.mxu0 %v587
    %810 = vmatpush1.bf16.msra.mxu0 %v586
    %811 = vmatprep.subr.bf16.mxu0 %v591
    %812 = vmatpush1.bf16.msra.mxu0 %v590
    %813 = vmatprep.subr.bf16.mxu0 %v595
    %814 = vmatpush1.bf16.msra.mxu0 %v594
    %815 = vmatprep.subr.bf16.mxu0 %v599
    %816 = vmatpush1.bf16.msra.mxu0 %v598
    %817 = vmatprep.subr.bf16.mxu0 %v603
    %818 = vmatpush1.bf16.msra.mxu0 %v602
    %819 = vmatprep.subr.bf16.mxu0 %v607
    %820 = vmatpush1.bf16.msra.mxu0 %v606
    %821 = vmatprep.subr.bf16.mxu0 %v611
    %822 = vmatpush1.bf16.msra.mxu0 %v610
    %823 = vmatprep.subr.bf16.mxu0 %v615
    %824 = vmatpush1.bf16.msra.mxu0 %v614
    %825 = vmatprep.subr.bf16.mxu0 %v619
    %826 = vmatpush1.bf16.msra.mxu0 %v618
    %827 = vmatprep.subr.bf16.mxu0 %v623
    %828 = vmatpush1.bf16.msra.mxu0 %v622
    %829 = vmatprep.subr.bf16.mxu0 %v627
    %830 = vmatpush1.bf16.msra.mxu0 %v626
    %831 = vmatprep.mubr.bf16.mxu0 %v369
    %832 = vmatmul.mubr.bf16.gmra.mrb[0].mxu0 %v368
    %v833 = vpop.f32.mrb[0].mxu0
    %v834 = vadd.f32 %v793, %v833
    %v835 = vpop.f32.mrb[0].mxu0
    %v836 = vadd.f32 %v795, %v835
    %v837 = vpop.f32.mrb[0].mxu0
    %v838 = vpop.f32.mrb[0].mxu0
    %839 = vdwg.mxu0
    %840 = vmatprep.subr.bf16.mxu0 %v631
    %841 = vmatpush1.bf16.msra.mxu0 %v630
    %842 = vmatprep.subr.bf16.mxu0 %v635
    %843 = vmatpush1.bf16.msra.mxu0 %v634
    %844 = vmatprep.subr.bf16.mxu0 %v639
    %845 = vmatpush1.bf16.msra.mxu0 %v638
    %846 = vmatprep.subr.bf16.mxu0 %v643
    %847 = vmatpush1.bf16.msra.mxu0 %v642
    %848 = vmatprep.subr.bf16.mxu0 %v647
    %849 = vmatpush1.bf16.msra.mxu0 %v646
    %850 = vmatprep.subr.bf16.mxu0 %v651
    %851 = vmatpush1.bf16.msra.mxu0 %v650
    %852 = vmatprep.subr.bf16.mxu0 %v655
    %853 = vmatpush1.bf16.msra.mxu0 %v654
    %854 = vmatprep.subr.bf16.mxu0 %v659
    %855 = vmatpush1.bf16.msra.mxu0 %v658
    %856 = vmatprep.subr.bf16.mxu0 %v663
    %857 = vmatpush1.bf16.msra.mxu0 %v662
    %858 = vmatprep.subr.bf16.mxu0 %v667
    %859 = vmatpush1.bf16.msra.mxu0 %v666
    %860 = vmatprep.subr.bf16.mxu0 %v671
    %861 = vmatpush1.bf16.msra.mxu0 %v670
    %862 = vmatprep.subr.bf16.mxu0 %v675
    %863 = vmatpush1.bf16.msra.mxu0 %v674
    %864 = vmatprep.subr.bf16.mxu0 %v679
    %865 = vmatpush1.bf16.msra.mxu0 %v678
    %866 = vmatprep.subr.bf16.mxu0 %v683
    %867 = vmatpush1.bf16.msra.mxu0 %v682
    %868 = vmatprep.subr.bf16.mxu0 %v687
    %869 = vmatpush1.bf16.msra.mxu0 %v686
    %870 = vmatprep.subr.bf16.mxu0 %v691
    %871 = vmatpush1.bf16.msra.mxu0 %v690
    %872 = vmatprep.mubr.bf16.mxu0 %v371
    %873 = vmatmul.mubr.bf16.gmra.mrb[0].mxu0 %v370
    %v874 = vpop.f32.mrb[0].mxu0
    %v875 = vadd.f32 %v834, %v874
    %v876 = vpop.f32.mrb[0].mxu0
    %v877 = vadd.f32 %v836, %v876
    %v878 = vpop.f32.mrb[0].mxu0
    %v879 = vpop.f32.mrb[0].mxu0
    %880 = vdwg.mxu0
    %881 = vmatprep.subr.bf16.mxu0 %v695
    %882 = vmatpush1.bf16.msra.mxu0 %v694
    %883 = vmatprep.subr.bf16.mxu0 %v699
    %884 = vmatpush1.bf16.msra.mxu0 %v698
    %885 = vmatprep.subr.bf16.mxu0 %v703
    %886 = vmatpush1.bf16.msra.mxu0 %v702
    %887 = vmatprep.subr.bf16.mxu0 %v707
    %888 = vmatpush1.bf16.msra.mxu0 %v706
    %889 = vmatprep.subr.bf16.mxu0 %v711
    %890 = vmatpush1.bf16.msra.mxu0 %v710
    %891 = vmatprep.subr.bf16.mxu0 %v715
    %892 = vmatpush1.bf16.msra.mxu0 %v714
    %893 = vmatprep.subr.bf16.mxu0 %v719
    %894 = vmatpush1.bf16.msra.mxu0 %v718
    %895 = vmatprep.subr.bf16.mxu0 %v723
    %896 = vmatpush1.bf16.msra.mxu0 %v722
    %897 = vmatprep.subr.bf16.mxu0 %v727
    %898 = vmatpush1.bf16.msra.mxu0 %v726
    %899 = vmatprep.subr.bf16.mxu0 %v731
    %900 = vmatpush1.bf16.msra.mxu0 %v730
    %901 = vmatprep.subr.bf16.mxu0 %v735
    %902 = vmatpush1.bf16.msra.mxu0 %v734
    %903 = vmatprep.subr.bf16.mxu0 %v739
    %904 = vmatpush1.bf16.msra.mxu0 %v738
    %905 = vmatprep.subr.bf16.mxu0 %v743
    %906 = vmatpush1.bf16.msra.mxu0 %v742
    %907 = vmatprep.subr.bf16.mxu0 %v747
    %908 = vmatpush1.bf16.msra.mxu0 %v746
    %909 = vmatprep.subr.bf16.mxu0 %v751
    %910 = vmatpush1.bf16.msra.mxu0 %v750
    %911 = vmatprep.subr.bf16.mxu0 %v755
    %912 = vmatpush1.bf16.msra.mxu0 %v754
    %913 = vmatprep.mubr.bf16.mxu0 %v373
    %914 = vmatmul.mubr.bf16.gmra.mrb[0].mxu0 %v372
    %v915 = vpop.f32.mrb[0].mxu0
    %v916 = vadd.f32 %v875, %v915
    %v917 = vpop.f32.mrb[0].mxu0
    %v918 = vadd.f32 %v877, %v917
    %v919 = vpop.f32.mrb[0].mxu0
    %v920 = vpop.f32.mrb[0].mxu0
    %921 = vdwg.mxu0
    %922 = vmatprep.subr.bf16.mxu0 %v505
    %923 = vmatpush1.bf16.msra.mxu0 %v504
    %924 = vmatprep.subr.bf16.mxu0 %v509
    %925 = vmatpush1.bf16.msra.mxu0 %v508
    %926 = vmatprep.subr.bf16.mxu0 %v513
    %927 = vmatpush1.bf16.msra.mxu0 %v512
    %928 = vmatprep.subr.bf16.mxu0 %v517
    %929 = vmatpush1.bf16.msra.mxu0 %v516
    %930 = vmatprep.subr.bf16.mxu0 %v521
    %931 = vmatpush1.bf16.msra.mxu0 %v520
    %932 = vmatprep.subr.bf16.mxu0 %v525
    %933 = vmatpush1.bf16.msra.mxu0 %v524
    %934 = vmatprep.subr.bf16.mxu0 %v529
    %935 = vmatpush1.bf16.msra.mxu0 %v528
    %936 = vmatprep.subr.bf16.mxu0 %v533
    %937 = vmatpush1.bf16.msra.mxu0 %v532
    %938 = vmatprep.subr.bf16.mxu0 %v537
    %939 = vmatpush1.bf16.msra.mxu0 %v536
    %940 = vmatprep.subr.bf16.mxu0 %v541
    %941 = vmatpush1.bf16.msra.mxu0 %v540
    %942 = vmatprep.subr.bf16.mxu0 %v545
    %943 = vmatpush1.bf16.msra.mxu0 %v544
    %944 = vmatprep.subr.bf16.mxu0 %v549
    %945 = vmatpush1.bf16.msra.mxu0 %v548
    %946 = vmatprep.subr.bf16.mxu0 %v553
    %947 = vmatpush1.bf16.msra.mxu0 %v552
    %948 = vmatprep.subr.bf16.mxu0 %v557
    %949 = vmatpush1.bf16.msra.mxu0 %v556
    %950 = vmatprep.subr.bf16.mxu0 %v561
    %951 = vmatpush1.bf16.msra.mxu0 %v560
    %952 = vmatprep.subr.bf16.mxu0 %v565
    %953 = vmatpush1.bf16.msra.mxu0 %v564
    %954 = vmatprep.mubr.bf16.mxu0 %v367
    %955 = vmatmul.mubr.bf16.gmra.mrb[0].mxu0 %v366
    %v956 = vpop.f32.mrb[0].mxu0
    %v957 = vadd.f32 0.0, %v956
    %v958 = vpop.f32.mrb[0].mxu0
    %v959 = vadd.f32 0.0, %v958
    %v960 = vpop.f32.mrb[0].mxu0
    %v961 = vpop.f32.mrb[0].mxu0
    %962 = vdwg.mxu0
    %963 = vmatprep.subr.bf16.mxu0 %v569
    %964 = vmatpush1.bf16.msra.mxu0 %v568
    %965 = vmatprep.subr.bf16.mxu0 %v573
    %966 = vmatpush1.bf16.msra.mxu0 %v572
    %967 = vmatprep.subr.bf16.mxu0 %v577
    %968 = vmatpush1.bf16.msra.mxu0 %v576
    %969 = vmatprep.subr.bf16.mxu0 %v581
    %970 = vmatpush1.bf16.msra.mxu0 %v580
    %971 = vmatprep.subr.bf16.mxu0 %v585
    %972 = vmatpush1.bf16.msra.mxu0 %v584
    %973 = vmatprep.subr.bf16.mxu0 %v589
    %974 = vmatpush1.bf16.msra.mxu0 %v588
    %975 = vmatprep.subr.bf16.mxu0 %v593
    %976 = vmatpush1.bf16.msra.mxu0 %v592
    %977 = vmatprep.subr.bf16.mxu0 %v597
    %978 = vmatpush1.bf16.msra.mxu0 %v596
    %979 = vmatprep.subr.bf16.mxu0 %v601
    %980 = vmatpush1.bf16.msra.mxu0 %v600
    %981 = vmatprep.subr.bf16.mxu0 %v605
    %982 = vmatpush1.bf16.msra.mxu0 %v604
    %983 = vmatprep.subr.bf16.mxu0 %v609
    %984 = vmatpush1.bf16.msra.mxu0 %v608
    %985 = vmatprep.subr.bf16.mxu0 %v613
    %986 = vmatpush1.bf16.msra.mxu0 %v612
    %987 = vmatprep.subr.bf16.mxu0 %v617
    %988 = vmatpush1.bf16.msra.mxu0 %v616
    %989 = vmatprep.subr.bf16.mxu0 %v621
    %990 = vmatpush1.bf16.msra.mxu0 %v620
    %991 = vmatprep.subr.bf16.mxu0 %v625
    %992 = vmatpush1.bf16.msra.mxu0 %v624
    %993 = vmatprep.subr.bf16.mxu0 %v629
    %994 = vmatpush1.bf16.msra.mxu0 %v628
    %995 = vmatprep.mubr.bf16.mxu0 %v369
    %996 = vmatmul.mubr.bf16.gmra.mrb[0].mxu0 %v368
    %v997 = vpop.f32.mrb[0].mxu0
    %v998 = vadd.f32 %v957, %v997
    %v999 = vpop.f32.mrb[0].mxu0
    %v1000 = vadd.f32 %v959, %v999
    %v1001 = vpop.f32.mrb[0].mxu0
    %v1002 = vpop.f32.mrb[0].mxu0
    %1003 = vdwg.mxu0
    %1004 = vmatprep.subr.bf16.mxu0 %v633
    %1005 = vmatpush1.bf16.msra.mxu0 %v632
    %1006 = vmatprep.subr.bf16.mxu0 %v637
    %1007 = vmatpush1.bf16.msra.mxu0 %v636
    %1008 = vmatprep.subr.bf16.mxu0 %v641
    %1009 = vmatpush1.bf16.msra.mxu0 %v640
    %1010 = vmatprep.subr.bf16.mxu0 %v645
    %1011 = vmatpush1.bf16.msra.mxu0 %v644
    %1012 = vmatprep.subr.bf16.mxu0 %v649
    %1013 = vmatpush1.bf16.msra.mxu0 %v648
    %1014 = vmatprep.subr.bf16.mxu0 %v653
    %1015 = vmatpush1.bf16.msra.mxu0 %v652
    %1016 = vmatprep.subr.bf16.mxu0 %v657
    %1017 = vmatpush1.bf16.msra.mxu0 %v656
    %1018 = vmatprep.subr.bf16.mxu0 %v661
    %1019 = vmatpush1.bf16.msra.mxu0 %v660
    %1020 = vmatprep.subr.bf16.mxu0 %v665
    %1021 = vmatpush1.bf16.msra.mxu0 %v664
    %1022 = vmatprep.subr.bf16.mxu0 %v669
    %1023 = vmatpush1.bf16.msra.mxu0 %v668
    %1024 = vmatprep.subr.bf16.mxu0 %v673
    %1025 = vmatpush1.bf16.msra.mxu0 %v672
    %1026 = vmatprep.subr.bf16.mxu0 %v677
    %1027 = vmatpush1.bf16.msra.mxu0 %v676
    %1028 = vmatprep.subr.bf16.mxu0 %v681
    %1029 = vmatpush1.bf16.msra.mxu0 %v680
    %1030 = vmatprep.subr.bf16.mxu0 %v685
    %1031 = vmatpush1.bf16.msra.mxu0 %v684
    %1032 = vmatprep.subr.bf16.mxu0 %v689
    %1033 = vmatpush1.bf16.msra.mxu0 %v688
    %1034 = vmatprep.subr.bf16.mxu0 %v693
    %1035 = vmatpush1.bf16.msra.mxu0 %v692
    %1036 = vmatprep.mubr.bf16.mxu0 %v371
    %1037 = vmatmul.mubr.bf16.gmra.mrb[0].mxu0 %v370
    %v1038 = vpop.f32.mrb[0].mxu0
    %v1039 = vadd.f32 %v998, %v1038
    %v1040 = vpop.f32.mrb[0].mxu0
    %v1041 = vadd.f32 %v1000, %v1040
    %v1042 = vpop.f32.mrb[0].mxu0
    %v1043 = vpop.f32.mrb[0].mxu0
    %1044 = vdwg.mxu0
    %1045 = vmatprep.subr.bf16.mxu0 %v697
    %1046 = vmatpush1.bf16.msra.mxu0 %v696
    %1047 = vmatprep.subr.bf16.mxu0 %v701
    %1048 = vmatpush1.bf16.msra.mxu0 %v700
    %1049 = vmatprep.subr.bf16.mxu0 %v705
    %1050 = vmatpush1.bf16.msra.mxu0 %v704
    %1051 = vmatprep.subr.bf16.mxu0 %v709
    %1052 = vmatpush1.bf16.msra.mxu0 %v708
    %1053 = vmatprep.subr.bf16.mxu0 %v713
    %1054 = vmatpush1.bf16.msra.mxu0 %v712
    %1055 = vmatprep.subr.bf16.mxu0 %v717
    %1056 = vmatpush1.bf16.msra.mxu0 %v716
    %1057 = vmatprep.subr.bf16.mxu0 %v721
    %1058 = vmatpush1.bf16.msra.mxu0 %v720
    %1059 = vmatprep.subr.bf16.mxu0 %v725
    %1060 = vmatpush1.bf16.msra.mxu0 %v724
    %1061 = vmatprep.subr.bf16.mxu0 %v729
    %1062 = vmatpush1.bf16.msra.mxu0 %v728
    %1063 = vmatprep.subr.bf16.mxu0 %v733
    %1064 = vmatpush1.bf16.msra.mxu0 %v732
    %1065 = vmatprep.subr.bf16.mxu0 %v737
    %1066 = vmatpush1.bf16.msra.mxu0 %v736
    %1067 = vmatprep.subr.bf16.mxu0 %v741
    %1068 = vmatpush1.bf16.msra.mxu0 %v740
    %1069 = vmatprep.subr.bf16.mxu0 %v745
    %1070 = vmatpush1.bf16.msra.mxu0 %v744
    %1071 = vmatprep.subr.bf16.mxu0 %v749
    %1072 = vmatpush1.bf16.msra.mxu0 %v748
    %1073 = vmatprep.subr.bf16.mxu0 %v753
    %1074 = vmatpush1.bf16.msra.mxu0 %v752
    %1075 = vmatprep.subr.bf16.mxu0 %v757
    %1076 = vmatpush1.bf16.msra.mxu0 %v756
    %1077 = vmatprep.mubr.bf16.mxu0 %v373
    %1078 = vmatmul.mubr.bf16.gmra.mrb[0].mxu0 %v372
    %v1079 = vpop.f32.mrb[0].mxu0
    %v1080 = vadd.f32 %v1039, %v1079
    %v1081 = vpop.f32.mrb[0].mxu0
    %v1082 = vadd.f32 %v1041, %v1081
    %v1083 = vpop.f32.mrb[0].mxu0
    %v1084 = vpop.f32.mrb[0].mxu0
    %1085 = vdwg.mxu0
    %v1086 = vld [vmem:[%s4] sm:$0xf]
    %v1088 = vlaneseq
    %v1089 = vshrl.u32 %v1088, 7
    %v1090 = vsub.s32 0, %v1089
    %v1091 = vrot.slane %v1086, %v1090
    %v1092 = vlaneseq
    %v1093 = vshrl.u32 %v1092, 7
    %v1094 = vsub.s32 1, %v1093
    %v1095 = vrot.slane %v1086, %v1094
    %v1096 = vlaneseq
    %v1097 = vshrl.u32 %v1096, 7
    %v1098 = vsub.s32 2, %v1097
    %v1099 = vrot.slane %v1086, %v1098
    %v1100 = vlaneseq
    %v1101 = vshrl.u32 %v1100, 7
    %v1102 = vsub.s32 3, %v1101
    %v1103 = vrot.slane %v1086, %v1102
    %v1108 = vmul.f32 %v916, %v1091
    %v1109 = vmul.f32 %v918, %v1095
    %v1110 = vmul.f32 %v1080, %v1099
    %v1111 = vmul.f32 %v1082, %v1103
    %v1112 = vld [vmem:[%s5] sm:$0xf]
    %v1114 = vlaneseq
    %v1115 = vshrl.u32 %v1114, 7
    %v1116 = vsub.s32 0, %v1115
    %v1117 = vrot.slane %v1112, %v1116
    %v1118 = vlaneseq
    %v1119 = vshrl.u32 %v1118, 7
    %v1120 = vsub.s32 1, %v1119
    %v1121 = vrot.slane %v1112, %v1120
    %v1122 = vlaneseq
    %v1123 = vshrl.u32 %v1122, 7
    %v1124 = vsub.s32 2, %v1123
    %v1125 = vrot.slane %v1112, %v1124
    %v1126 = vlaneseq
    %v1127 = vshrl.u32 %v1126, 7
    %v1128 = vsub.s32 3, %v1127
    %v1129 = vrot.slane %v1112, %v1128
    %v1134 = vadd.f32 %v1108, %v1117
    %v1135 = vadd.f32 %v1109, %v1121
    %v1136 = vadd.f32 %v1110, %v1125
    %v1137 = vadd.f32 %v1111, %v1129
    %v1138 = vmax.f32 %v1134, 0.0
    %v1139 = vmax.f32 %v1135, 0.0
    %v1140 = vmax.f32 %v1136, 0.0
    %v1141 = vmax.f32 %v1137, 0.0
    %v1142 = vpack.c.bf16 %v1138, %v1138
    %v1143 = vpack.c.bf16 %v1139, %v1139
    %v1144 = vpack.c.bf16 %v1140, %v1140
    %v1145 = vpack.c.bf16 %v1141, %v1141
    %v1146 = vld [vmem:[#allocation10] sm:$0xff]
    %v1147 = vld [vmem:[#allocation10 + $0x8] sm:$0xff]
    %v1148 = vld [vmem:[#allocation10 + $0x10] sm:$0xff]
    %v1149 = vld [vmem:[#allocation10 + $0x18] sm:$0xff]
    %v1150 = vld [vmem:[#allocation10 + $0x20] sm:$0xff]
    %v1151 = vld [vmem:[#allocation10 + $0x28] sm:$0xff]
    %v1152 = vld [vmem:[#allocation10 + $0x30] sm:$0xff]
    %v1153 = vld [vmem:[#allocation10 + $0x38] sm:$0xff]
    %v1154 = vld [vmem:[#allocation10 + $0x40] sm:$0xff]
    %v1155 = vld [vmem:[#allocation10 + $0x48] sm:$0xff]
    %v1156 = vld [vmem:[#allocation10 + $0x50] sm:$0xff]
    %v1157 = vld [vmem:[#allocation10 + $0x58] sm:$0xff]
    %v1158 = vld [vmem:[#allocation10 + $0x60] sm:$0xff]
    %v1159 = vld [vmem:[#allocation10 + $0x68] sm:$0xff]
    %v1160 = vld [vmem:[#allocation10 + $0x70] sm:$0xff]
    %v1161 = vld [vmem:[#allocation10 + $0x78] sm:$0xff]
    %v1162 = vunpack.c.l.s8.bf16 %v1146
    %v1163 = vunpack.c.h.s8.bf16 %v1146
    %v1164 = vunpack.c.l.s8.bf16 %v1147
    %v1165 = vunpack.c.h.s8.bf16 %v1147
    %v1166 = vunpack.c.l.s8.bf16 %v1148
    %v1167 = vunpack.c.h.s8.bf16 %v1148
    %v1168 = vunpack.c.l.s8.bf16 %v1149
    %v1169 = vunpack.c.h.s8.bf16 %v1149
    %v1170 = vunpack.c.l.s8.bf16 %v1150
    %v1171 = vunpack.c.h.s8.bf16 %v1150
    %v1172 = vunpack.c.l.s8.bf16 %v1151
    %v1173 = vunpack.c.h.s8.bf16 %v1151
    %v1174 = vunpack.c.l.s8.bf16 %v1152
    %v1175 = vunpack.c.h.s8.bf16 %v1152
    %v1176 = vunpack.c.l.s8.bf16 %v1153
    %v1177 = vunpack.c.h.s8.bf16 %v1153
    %v1178 = vunpack.c.l.s8.bf16 %v1154
    %v1179 = vunpack.c.h.s8.bf16 %v1154
    %v1180 = vunpack.c.l.s8.bf16 %v1155
    %v1181 = vunpack.c.h.s8.bf16 %v1155
    %v1182 = vunpack.c.l.s8.bf16 %v1156
    %v1183 = vunpack.c.h.s8.bf16 %v1156
    %v1184 = vunpack.c.l.s8.bf16 %v1157
    %v1185 = vunpack.c.h.s8.bf16 %v1157
    %v1186 = vunpack.c.l.s8.bf16 %v1158
    %v1187 = vunpack.c.h.s8.bf16 %v1158
    %v1188 = vunpack.c.l.s8.bf16 %v1159
    %v1189 = vunpack.c.h.s8.bf16 %v1159
    %v1190 = vunpack.c.l.s8.bf16 %v1160
    %v1191 = vunpack.c.h.s8.bf16 %v1160
    %v1192 = vunpack.c.l.s8.bf16 %v1161
    %v1193 = vunpack.c.h.s8.bf16 %v1161
    %1194 = vmatprep.subr.bf16.mxu0 0
    %1195 = vmatpush1.bf16.msra.mxu0 %v1162
    %1196 = vmatprep.subr.bf16.mxu0 0
    %1197 = vmatpush1.bf16.msra.mxu0 %v1163
    %1198 = vmatprep.subr.bf16.mxu0 0
    %1199 = vmatpush1.bf16.msra.mxu0 %v1164
    %1200 = vmatprep.subr.bf16.mxu0 0
    %1201 = vmatpush1.bf16.msra.mxu0 %v1165
    %1202 = vmatprep.subr.bf16.mxu0 0
    %1203 = vmatpush1.bf16.msra.mxu0 %v1166
    %1204 = vmatprep.subr.bf16.mxu0 0
    %1205 = vmatpush1.bf16.msra.mxu0 %v1167
    %1206 = vmatprep.subr.bf16.mxu0 0
    %1207 = vmatpush1.bf16.msra.mxu0 %v1168
    %1208 = vmatprep.subr.bf16.mxu0 0
    %1209 = vmatpush1.bf16.msra.mxu0 %v1169
    %1210 = vmatprep.subr.bf16.mxu0 0
    %1211 = vmatpush1.bf16.msra.mxu0 %v1170
    %1212 = vmatprep.subr.bf16.mxu0 0
    %1213 = vmatpush1.bf16.msra.mxu0 %v1171
    %1214 = vmatprep.subr.bf16.mxu0 0
    %1215 = vmatpush1.bf16.msra.mxu0 %v1172
    %1216 = vmatprep.subr.bf16.mxu0 0
    %1217 = vmatpush1.bf16.msra.mxu0 %v1173
    %1218 = vmatprep.subr.bf16.mxu0 0
    %1219 = vmatpush1.bf16.msra.mxu0 %v1174
    %1220 = vmatprep.subr.bf16.mxu0 0
    %1221 = vmatpush1.bf16.msra.mxu0 %v1175
    %1222 = vmatprep.subr.bf16.mxu0 0
    %1223 = vmatpush1.bf16.msra.mxu0 %v1176
    %1224 = vmatprep.subr.bf16.mxu0 0
    %1225 = vmatpush1.bf16.msra.mxu0 %v1177
    %1226 = vmatprep.mubr.bf16.mxu0 %v1143
    %1227 = vmatmul.mubr.bf16.gmra.mrb[0].mxu0 %v1142
    %v1228 = vpop.f32.mrb[0].mxu0
    %v1229 = vadd.f32 0.0, %v1228
    %v1230 = vpop.f32.mrb[0].mxu0
    %v1231 = vpop.f32.mrb[0].mxu0
    %v1232 = vpop.f32.mrb[0].mxu0
    %1233 = vdwg.mxu0
    %1234 = vmatprep.subr.bf16.mxu0 0
    %1235 = vmatpush1.bf16.msra.mxu0 %v1178
    %1236 = vmatprep.subr.bf16.mxu0 0
    %1237 = vmatpush1.bf16.msra.mxu0 %v1179
    %1238 = vmatprep.subr.bf16.mxu0 0
    %1239 = vmatpush1.bf16.msra.mxu0 %v1180
    %1240 = vmatprep.subr.bf16.mxu0 0
    %1241 = vmatpush1.bf16.msra.mxu0 %v1181
    %1242 = vmatprep.subr.bf16.mxu0 0
    %1243 = vmatpush1.bf16.msra.mxu0 %v1182
    %1244 = vmatprep.subr.bf16.mxu0 0
    %1245 = vmatpush1.bf16.msra.mxu0 %v1183
    %1246 = vmatprep.subr.bf16.mxu0 0
    %1247 = vmatpush1.bf16.msra.mxu0 %v1184
    %1248 = vmatprep.subr.bf16.mxu0 0
    %1249 = vmatpush1.bf16.msra.mxu0 %v1185
    %1250 = vmatprep.subr.bf16.mxu0 0
    %1251 = vmatpush1.bf16.msra.mxu0 %v1186
    %1252 = vmatprep.subr.bf16.mxu0 0
    %1253 = vmatpush1.bf16.msra.mxu0 %v1187
    %1254 = vmatprep.subr.bf16.mxu0 0
    %1255 = vmatpush1.bf16.msra.mxu0 %v1188
    %1256 = vmatprep.subr.bf16.mxu0 0
    %1257 = vmatpush1.bf16.msra.mxu0 %v1189
    %1258 = vmatprep.subr.bf16.mxu0 0
    %1259 = vmatpush1.bf16.msra.mxu0 %v1190
    %1260 = vmatprep.subr.bf16.mxu0 0
    %1261 = vmatpush1.bf16.msra.mxu0 %v1191
    %1262 = vmatprep.subr.bf16.mxu0 0
    %1263 = vmatpush1.bf16.msra.mxu0 %v1192
    %1264 = vmatprep.subr.bf16.mxu0 0
    %1265 = vmatpush1.bf16.msra.mxu0 %v1193
    %1266 = vmatprep.mubr.bf16.mxu0 %v1145
    %1267 = vmatmul.mubr.bf16.gmra.mrb[0].mxu0 %v1144
    %v1268 = vpop.f32.mrb[0].mxu0
    %v1269 = vadd.f32 %v1229, %v1268
    %v1270 = vpop.f32.mrb[0].mxu0
    %v1271 = vpop.f32.mrb[0].mxu0
    %v1272 = vpop.f32.mrb[0].mxu0
    %1273 = vdwg.mxu0
    %v1274 = vld [vmem:[%s7] sm:$0x1]
    %v1276 = vlaneseq
    %v1277 = vshrl.u32 %v1276, 7
    %v1278 = vsub.s32 0, %v1277
    %v1279 = vrot.slane %v1274, %v1278
    %v1281 = vmul.f32 %v1269, %v1279
    %v1282 = vld [vmem:[%s8] sm:$0x1]
    %v1284 = vlaneseq
    %v1285 = vshrl.u32 %v1284, 7
    %v1286 = vsub.s32 0, %v1285
    %v1287 = vrot.slane %v1282, %v1286
    %v1289 = vadd.f32 %v1281, %v1287
    %1290 = vst [vmem:[#allocation11] sm:$0xff] %v1289
    // Predicated region
    $region58: #{tpu_custom_call.1} parent=1 // pred_check
      _
    $region59: #{tpu_custom_call.1} parent=1 // pred_check_branch
      %1292 = sbr.rel (0) target = $region61
    $region60: #{tpu_custom_call.1} parent=1 // pred_region
      %s1294 = ssub.s32 128, 128
      %1295 = vsyncadd [#allocation4], %s1294
      %s1297 = sshll.u32 [#allocation11], 4
      %s1298 = int_to_ptr.vmem [resolvable:$true] %s1297
      %1300 = dma.vmem_to_hbm [thread:$0]  %s1298, 128, %s9, [#allocation4]
    $region61: #{tpu_custom_call.1} parent=1 // pred_fallthru
      _
    // Predicated region
    $region62: #{tpu_custom_call.1} parent=1 // pred_check
      _
    $region63: #{tpu_custom_call.1} parent=1 // pred_check_branch
      %1302 = sbr.rel (0) target = $region65
    $region64: #{tpu_custom_call.1} parent=1 // pred_region
      %1303 = dma.done [#allocation4], 128
    $region65: #{tpu_custom_call.1} parent=1 // pred_fallthru
      _
    %1304 = vsyncpa [#allocation3], 1
    %1305 = vsyncpa [#allocation6], 1
    %1306 = vsyncpa [#allocation9], 1
    %1307 = vsyncpa [#allocation4], 1

</llo_original>
